<compile_context>
chip_gen: v5e
topology: v5e:2x2
jax: 0.10.0
libtpu: 0.0.40
codegen_flags: <defaults>
</compile_context>

<pallas_src>
import jax
import jax.numpy as jnp
from jax.experimental import pallas as pl
from jax.experimental.pallas import tpu as pltpu

# ----- scaled-down ViT config (stand-in for ViT-Large) -----
IMG = 32
PATCH = 16
IN_CH = 3
DIM = 128              # stands in for 1024
HEADS = 4
HEAD_DIM = DIM // HEADS
DEPTH = 2              # stands in for 24
MLP = 4 * DIM
EPS = 1e-6             # timm ViT LayerNorm eps
NPATCH = (IMG // PATCH) ** 2        # 4
TOKENS = NPATCH + 1                 # 5 (cls + patches)
TPAD = 8                            # tokens padded to a sublane multiple of 8
PATCH_DIM = IN_CH * PATCH * PATCH   # 768
BATCH = 2
B_TILE = 2                          # images per grid step (2B / B_TILE steps)


# ---------------------------------------------------------------------------
# BlockSpec helpers
# ---------------------------------------------------------------------------
def _wspec(shape):
    """Grid-invariant (weight) spec: same block every grid step."""
    n = len(shape)
    return pl.BlockSpec(shape, lambda i, _n=n: (0,) * _n)


def _bspec(shape):
    """Batch-tiled spec: block i along the leading axis."""
    n = len(shape)
    return pl.BlockSpec(shape, lambda i, _n=n: (i,) + (0,) * (_n - 1))


# ---------------------------------------------------------------------------
# in-kernel helpers
# ---------------------------------------------------------------------------
def _ln(x2d, g, b):
    """Row LayerNorm in f32; g/b are (1, D)."""
    xf = x2d.astype(jnp.float32)
    mu = jnp.mean(xf, axis=-1, keepdims=True)
    xc = xf - mu
    var = jnp.mean(xc * xc, axis=-1, keepdims=True)
    return xc * jax.lax.rsqrt(var + EPS) * g.astype(jnp.float32) + b.astype(jnp.float32)


def _mm(x, w, b):
    """bf16 MXU matmul with f32 accumulation + f32 bias epilogue."""
    y = jnp.dot(x.astype(jnp.bfloat16), w, preferred_element_type=jnp.float32)
    return y + b.astype(jnp.float32)


# ---------------------------------------------------------------------------
# single fused kernel: patch-embed -> DEPTH transformer blocks -> LN -> head
# ---------------------------------------------------------------------------
def _vit_kernel(patches_ref, base_ref, patch_w_ref,
                ln1_g_ref, ln1_b_ref, qkv_w_ref, qkv_b_ref,
                proj_w_ref, proj_b_ref, ln2_g_ref, ln2_b_ref,
                fc1_w_ref, fc1_b_ref, fc2_w_ref, fc2_b_ref,
                norm_g_ref, norm_b_ref, cl_w1_ref, cl_b1_ref,
                cl_w2_ref, cl_b2_ref,
                tok_ref, feat_ref):
    BT, TP, PD = patches_ref.shape
    D = DIM

    # Masks built ONCE per kernel (not per block / per head).
    kmask = jax.lax.broadcasted_iota(jnp.int32, (1, 1, TP), 2) < TOKENS
    tmask = (jax.lax.broadcasted_iota(jnp.int32, (1, TP, 1), 1)
             < TOKENS).astype(jnp.float32)

    # ---- patch embed: cls + pos + conv-bias folded into `base`; pad rows of
    # `patches` are zero so their embed is zero and base keeps them at 0. ----
    emb = jnp.dot(patches_ref[...].reshape(BT * TP, PD).astype(jnp.bfloat16),
                  patch_w_ref[...], preferred_element_type=jnp.float32)
    x = emb.reshape(BT, TP, D) + base_ref[...]          # (BT, TP, D) f32
    x = x.reshape(BT * TP, D)

    scale = 1.0 / (HEAD_DIM ** 0.5)
    for d in range(DEPTH):
        # ---- attention: LN1 -> fused QKV -> per-head exact-size MHA -> proj
        h = _ln(x, ln1_g_ref[d], ln1_b_ref[d])
        qkv = _mm(h, qkv_w_ref[d], qkv_b_ref[d]).reshape(BT, TP, 3 * D)
        heads_out = []
        for hh in range(HEADS):
            lo = hh * HEAD_DIM
            qh = qkv[:, :, lo:lo + HEAD_DIM]                     # (BT,TP,32)
            kh = qkv[:, :, D + lo:D + lo + HEAD_DIM]
            vh = qkv[:, :, 2 * D + lo:2 * D + lo + HEAD_DIM]
            s = jnp.einsum("bqd,bkd->bqk", qh, kh,
                           preferred_element_type=jnp.float32) * scale
            s = jnp.where(kmask, s, -1e30)           # mask padded key tokens
            s = s - jnp.max(s, axis=-1, keepdims=True)
            p = jnp.exp(s)
            p = p * pl.reciprocal(jnp.sum(p, axis=-1, keepdims=True),
                                  approx=True)
            heads_out.append(jnp.einsum("bqk,bkd->bqd", p, vh,
                                        preferred_element_type=jnp.float32))
        att = jnp.concatenate(heads_out, axis=-1).reshape(BT * TP, D)
        x = x + _mm(att, proj_w_ref[d], proj_b_ref[d])           # residual

        # ---- MLP: LN2 -> fc1 + GELU -> fc2 (+ residual) ----
        h2 = _ln(x, ln2_g_ref[d], ln2_b_ref[d])
        m = _mm(h2, fc1_w_ref[d], fc1_b_ref[d])
        m = jax.nn.gelu(m, approximate=True)
        x = x + _mm(m, fc2_w_ref[d], fc2_b_ref[d])

    # ---- tail: final LN -> tokens out; masked token mean -> Linear-ReLU-Linear
    h3 = _ln(x, norm_g_ref[...], norm_b_ref[...]).reshape(BT, TP, D)
    tok_ref[...] = h3.astype(tok_ref.dtype)
    mean = jnp.sum(h3 * tmask, axis=1) * (1.0 / TOKENS)          # (BT, D)
    z = jnp.maximum(_mm(mean, cl_w1_ref[...], cl_b1_ref[...]), 0.0)
    z = _mm(z, cl_w2_ref[...], cl_b2_ref[...])
    feat_ref[...] = z.reshape(BT, 1, D).astype(feat_ref.dtype)


def vit_forward(x, p):
    """x: (N, C, H, W) f32 -> tokens (N, TOKENS, DIM) f32, feat (N, DIM) f32."""
    N = x.shape[0]
    assert N % B_TILE == 0
    gh = IMG // PATCH

    # Patch extraction (layout plumbing) with channel-major (c, ph, pw)
    # flattening, matching PyTorch Conv2d weight.reshape(DIM, -1).
    patches = x.reshape(N, IN_CH, gh, PATCH, gh, PATCH)
    patches = patches.transpose(0, 2, 4, 1, 3, 5).reshape(N, NPATCH, PATCH_DIM)
    # Pre-pad to TPAD rows: row 0 (cls slot) and rows TOKENS.. are zero patches.
    patches = jnp.concatenate(
        [jnp.zeros((N, 1, PATCH_DIM), jnp.float32),
         patches.astype(jnp.float32),
         jnp.zeros((N, TPAD - TOKENS, PATCH_DIM), jnp.float32)], axis=1)

    # Token base slab: row0 = cls + pos0 ; rows 1..NPATCH = pos + conv bias ;
    # pad rows = 0.  Parameter-only preprocessing (constant w.r.t. the data).
    base = jnp.concatenate(
        [(p["cls"][:, 0, :] + p["pos"][:, 0, :])[:, None, :],
         p["pos"][:, 1:TOKENS, :] + p["patch_b"][:, None, :],
         jnp.zeros((1, TPAD - TOKENS, DIM), jnp.float32)], axis=1)

    grid = (N // B_TILE,)
    tok, feat = pl.pallas_call(
        _vit_kernel,
        out_shape=(jax.ShapeDtypeStruct((N, TPAD, DIM), jnp.float32),
                   jax.ShapeDtypeStruct((N, 1, DIM), jnp.float32)),
        grid=grid,
        in_specs=[
            _bspec((B_TILE, TPAD, PATCH_DIM)),      # patches (batch-tiled)
            _wspec((1, TPAD, DIM)),                 # token base
            _wspec((PATCH_DIM, DIM)),               # patch_w
            _wspec((DEPTH, 1, DIM)), _wspec((DEPTH, 1, DIM)),          # ln1
            _wspec((DEPTH, DIM, 3 * DIM)), _wspec((DEPTH, 1, 3 * DIM)),# qkv
            _wspec((DEPTH, DIM, DIM)), _wspec((DEPTH, 1, DIM)),        # proj
            _wspec((DEPTH, 1, DIM)), _wspec((DEPTH, 1, DIM)),          # ln2
            _wspec((DEPTH, DIM, MLP)), _wspec((DEPTH, 1, MLP)),        # fc1
            _wspec((DEPTH, MLP, DIM)), _wspec((DEPTH, 1, DIM)),        # fc2
            _wspec((1, DIM)), _wspec((1, DIM)),                        # norm
            _wspec((DIM, DIM)), _wspec((1, DIM)),                      # cl_w1
            _wspec((DIM, DIM)), _wspec((1, DIM)),                      # cl_w2
        ],
        out_specs=(_bspec((B_TILE, TPAD, DIM)), _bspec((B_TILE, 1, DIM))),
        compiler_params=pltpu.CompilerParams(
            dimension_semantics=("parallel",)),      # 2 TCs on v7x split 2B
    )(patches, base, p["patch_w"],
      p["ln1_g"], p["ln1_b"], p["qkv_w"], p["qkv_b"],
      p["proj_w"], p["proj_b"], p["ln2_g"], p["ln2_b"],
      p["fc1_w"], p["fc1_b"], p["fc2_w"], p["fc2_b"],
      p["norm_g"], p["norm_b"], p["cl_w1"], p["cl_b1"],
      p["cl_w2"], p["cl_b2"])

    return tok[:, :TOKENS], feat[:, 0, :]


# ---------------------------------------------------------------------------
# Parameters (deterministic; matmul weights bf16, stored (in, out) so kernels
# compute x @ W + b, equivalent to PyTorch's x @ W.T + b).  Per-block tensors
# are stacked along a leading DEPTH axis so one ref feeds the in-kernel loop.
# ---------------------------------------------------------------------------
def init_params(key):
    keys = iter(jax.random.split(key, 64))
    bf = jnp.bfloat16

    def nrm(shape, dtype=jnp.float32, scale=0.02):
        return (scale * jax.random.normal(next(keys), shape, jnp.float32)).astype(dtype)

    p = {
        # patch-embed conv lowered to matmul: equals PyTorch Conv2d weight
        # (DIM, IN_CH, P, P).reshape(DIM, -1).T, stored (PATCH_DIM, DIM) bf16.
        "patch_w": nrm((PATCH_DIM, DIM), bf),
        "patch_b": jnp.zeros((1, DIM), jnp.float32),
        "cls": nrm((1, 1, DIM)),
        "pos": nrm((1, TOKENS, DIM)),
        "norm_g": jnp.ones((1, DIM), jnp.float32),
        "norm_b": jnp.zeros((1, DIM), jnp.float32),
        # linear_cl = Sequential(Linear, ReLU, Linear)
        "cl_w1": nrm((DIM, DIM), bf), "cl_b1": jnp.zeros((1, DIM), jnp.float32),
        "cl_w2": nrm((DIM, DIM), bf), "cl_b2": jnp.zeros((1, DIM), jnp.float32),
        # linear_cb exists in the module but is unused in forward().
        "cb_w": nrm((DIM, DIM), bf), "cb_b": jnp.zeros((1, DIM), jnp.float32),
        # transformer blocks, stacked along DEPTH
        "ln1_g": jnp.ones((DEPTH, 1, DIM), jnp.float32),
        "ln1_b": jnp.zeros((DEPTH, 1, DIM), jnp.float32),
        "qkv_w": nrm((DEPTH, DIM, 3 * DIM), bf),
        "qkv_b": jnp.zeros((DEPTH, 1, 3 * DIM), jnp.float32),
        "proj_w": nrm((DEPTH, DIM, DIM), bf),
        "proj_b": jnp.zeros((DEPTH, 1, DIM), jnp.float32),
        "ln2_g": jnp.ones((DEPTH, 1, DIM), jnp.float32),
        "ln2_b": jnp.zeros((DEPTH, 1, DIM), jnp.float32),
        "fc1_w": nrm((DEPTH, DIM, MLP), bf),
        "fc1_b": jnp.zeros((DEPTH, 1, MLP), jnp.float32),
        "fc2_w": nrm((DEPTH, MLP, DIM), bf),
        "fc2_b": jnp.zeros((DEPTH, 1, DIM), jnp.float32),
    }
    return p


# ---------------------------------------------------------------------------
# Model forward
# ---------------------------------------------------------------------------
@jax.jit
def swin_model_forward(p, x_cl, x_cb):
    # swin_cb is swin_cl (shared weights) and both streams use linear_cl, so
    # both passes are batched into one backbone run on (2B, ...).
    B = x_cl.shape[0]
    x = jnp.concatenate([x_cl, x_cb], axis=0)
    tokens, feat = vit_forward(x, p)
    # NOTE: the PyTorch forward also computes linear_cl(tokens) but never
    # returns the result; that dead code is elided (XLA would DCE it anyway).
    return feat[:B], feat[B:], tokens[:B], tokens[B:]


if __name__ == "__main__":
    key = jax.random.PRNGKey(0)
    kp, kx1, kx2 = jax.random.split(key, 3)
    params = init_params(kp)
    x_cl = jax.random.normal(kx1, (BATCH, IN_CH, IMG, IMG), jnp.float32)
    x_cb = jax.random.normal(kx2, (BATCH, IN_CH, IMG, IMG), jnp.float32)

    outs = swin_model_forward(params, x_cl, x_cb)
    jax.block_until_ready(outs)

    a, b, t_cl, t_cb = outs
    assert a.shape == (BATCH, DIM) and b.shape == (BATCH, DIM)
    assert t_cl.shape == (BATCH, TOKENS, DIM) and t_cb.shape == (BATCH, TOKENS, DIM)
    assert all(bool(jnp.isfinite(o).all()) for o in outs)
    print("KERNEL_OK")
</pallas_src>

<mosaic_0001>
module attributes {stable_mosaic.version = 11 : i64} {
  func.func @_vit_kernel(%arg0: i32, %arg1: memref<2x8x768xf32, #tpu.memory_space<vmem>>, %arg2: memref<1x8x128xf32, #tpu.memory_space<vmem>>, %arg3: memref<768x128xbf16, #tpu.memory_space<vmem>>, %arg4: memref<2x1x128xf32, #tpu.memory_space<vmem>>, %arg5: memref<2x1x128xf32, #tpu.memory_space<vmem>>, %arg6: memref<2x128x384xbf16, #tpu.memory_space<vmem>>, %arg7: memref<2x1x384xf32, #tpu.memory_space<vmem>>, %arg8: memref<2x128x128xbf16, #tpu.memory_space<vmem>>, %arg9: memref<2x1x128xf32, #tpu.memory_space<vmem>>, %arg10: memref<2x1x128xf32, #tpu.memory_space<vmem>>, %arg11: memref<2x1x128xf32, #tpu.memory_space<vmem>>, %arg12: memref<2x128x512xbf16, #tpu.memory_space<vmem>>, %arg13: memref<2x1x512xf32, #tpu.memory_space<vmem>>, %arg14: memref<2x512x128xbf16, #tpu.memory_space<vmem>>, %arg15: memref<2x1x128xf32, #tpu.memory_space<vmem>>, %arg16: memref<1x128xf32, #tpu.memory_space<vmem>>, %arg17: memref<1x128xf32, #tpu.memory_space<vmem>>, %arg18: memref<128x128xbf16, #tpu.memory_space<vmem>>, %arg19: memref<1x128xf32, #tpu.memory_space<vmem>>, %arg20: memref<128x128xbf16, #tpu.memory_space<vmem>>, %arg21: memref<1x128xf32, #tpu.memory_space<vmem>>, %arg22: memref<2x8x128xf32, #tpu.memory_space<vmem>>, %arg23: memref<2x1x128xf32, #tpu.memory_space<vmem>>) attributes {dimension_semantics = [#tpu.dimension_semantics<parallel>], iteration_bounds = array<i64: 2>, scalar_prefetch = 0 : i64, scratch_operands = 0 : i64, tpu.core_type = #tpu.core_type<tc>, window_params = [{transform_indices = @transform_0, window_bounds = array<i64: 2, 8, 768>}, {pipeline_mode = #tpu.pipeline_mode<synchronous>, transform_indices = @transform_1, window_bounds = array<i64: 1, 8, 128>}, {pipeline_mode = #tpu.pipeline_mode<synchronous>, transform_indices = @transform_2, window_bounds = array<i64: 768, 128>}, {pipeline_mode = #tpu.pipeline_mode<synchronous>, transform_indices = @transform_3, window_bounds = array<i64: 2, 1, 128>}, {pipeline_mode = #tpu.pipeline_mode<synchronous>, transform_indices = @transform_4, window_bounds = array<i64: 2, 1, 128>}, {pipeline_mode = #tpu.pipeline_mode<synchronous>, transform_indices = @transform_5, window_bounds = array<i64: 2, 128, 384>}, {pipeline_mode = #tpu.pipeline_mode<synchronous>, transform_indices = @transform_6, window_bounds = array<i64: 2, 1, 384>}, {pipeline_mode = #tpu.pipeline_mode<synchronous>, transform_indices = @transform_7, window_bounds = array<i64: 2, 128, 128>}, {pipeline_mode = #tpu.pipeline_mode<synchronous>, transform_indices = @transform_8, window_bounds = array<i64: 2, 1, 128>}, {pipeline_mode = #tpu.pipeline_mode<synchronous>, transform_indices = @transform_9, window_bounds = array<i64: 2, 1, 128>}, {pipeline_mode = #tpu.pipeline_mode<synchronous>, transform_indices = @transform_10, window_bounds = array<i64: 2, 1, 128>}, {pipeline_mode = #tpu.pipeline_mode<synchronous>, transform_indices = @transform_11, window_bounds = array<i64: 2, 128, 512>}, {pipeline_mode = #tpu.pipeline_mode<synchronous>, transform_indices = @transform_12, window_bounds = array<i64: 2, 1, 512>}, {pipeline_mode = #tpu.pipeline_mode<synchronous>, transform_indices = @transform_13, window_bounds = array<i64: 2, 512, 128>}, {pipeline_mode = #tpu.pipeline_mode<synchronous>, transform_indices = @transform_14, window_bounds = array<i64: 2, 1, 128>}, {pipeline_mode = #tpu.pipeline_mode<synchronous>, transform_indices = @transform_15, window_bounds = array<i64: 1, 128>}, {pipeline_mode = #tpu.pipeline_mode<synchronous>, transform_indices = @transform_16, window_bounds = array<i64: 1, 128>}, {pipeline_mode = #tpu.pipeline_mode<synchronous>, transform_indices = @transform_17, window_bounds = array<i64: 128, 128>}, {pipeline_mode = #tpu.pipeline_mode<synchronous>, transform_indices = @transform_18, window_bounds = array<i64: 1, 128>}, {pipeline_mode = #tpu.pipeline_mode<synchronous>, transform_indices = @transform_19, window_bounds = array<i64: 128, 128>}, {pipeline_mode = #tpu.pipeline_mode<synchronous>, transform_indices = @transform_20, window_bounds = array<i64: 1, 128>}, {transform_indices = @transform_21, window_bounds = array<i64: 2, 8, 128>}, {transform_indices = @transform_22, window_bounds = array<i64: 2, 1, 128>}]} {
    %0 = tpu.iota {dimensions = array<i32: 2>} : vector<1x1x8xi32>
    %c5_i32 = arith.constant 5 : i32
    %1 = vector.broadcast %c5_i32 : i32 to vector<1x1x8xi32>
    %2 = arith.cmpi slt, %0, %1 : vector<1x1x8xi32>
    %3 = tpu.iota {dimensions = array<i32: 1>} : vector<1x8x1xi32>
    %c5_i32_0 = arith.constant 5 : i32
    %4 = vector.broadcast %c5_i32_0 : i32 to vector<1x8x1xi32>
    %5 = arith.cmpi slt, %3, %4 : vector<1x8x1xi32>
    %6 = arith.extui %5 : vector<1x8x1xi1> to vector<1x8x1xi32>
    %7 = arith.sitofp %6 : vector<1x8x1xi32> to vector<1x8x1xf32>
    %c0 = arith.constant 0 : index
    %c0_1 = arith.constant 0 : index
    %c0_2 = arith.constant 0 : index
    %8 = vector.load %arg1[%c0, %c0_1, %c0_2] : memref<2x8x768xf32, #tpu.memory_space<vmem>>, vector<2x8x768xf32>
    %9 = vector.shape_cast %8 : vector<2x8x768xf32> to vector<16x768xf32>
    %10 = arith.truncf %9 : vector<16x768xf32> to vector<16x768xbf16>
    %c0_3 = arith.constant 0 : index
    %c0_4 = arith.constant 0 : index
    %11 = vector.load %arg3[%c0_3, %c0_4] : memref<768x128xbf16, #tpu.memory_space<vmem>>, vector<768x128xbf16>
    %cst = arith.constant dense<0.000000e+00> : vector<16x128xf32>
    %12 = tpu.matmul %10, %11, %cst {dimension_numbers = #tpu.dot_dimension_numbers<[1], [0], [0], [1], [0, 0, 1, 1], [], []>} : vector<16x768xbf16>, vector<768x128xbf16>, vector<16x128xf32> -> vector<16x128xf32>
    %13 = vector.shape_cast %12 : vector<16x128xf32> to vector<2x8x128xf32>
    %c0_5 = arith.constant 0 : index
    %c0_6 = arith.constant 0 : index
    %c0_7 = arith.constant 0 : index
    %14 = vector.load %arg2[%c0_5, %c0_6, %c0_7] : memref<1x8x128xf32, #tpu.memory_space<vmem>>, vector<1x8x128xf32>
    %15 = vector.broadcast %14 : vector<1x8x128xf32> to vector<2x8x128xf32>
    %16 = arith.addf %13, %15 : vector<2x8x128xf32>
    %17 = vector.shape_cast %16 : vector<2x8x128xf32> to vector<16x128xf32>
    %c0_8 = arith.constant 0 : index
    %c0_9 = arith.constant 0 : index
    %c0_10 = arith.constant 0 : index
    %18 = vector.load %arg4[%c0_8, %c0_9, %c0_10] : memref<2x1x128xf32, #tpu.memory_space<vmem>>, vector<1x1x128xf32>
    %19 = vector.shape_cast %18 : vector<1x1x128xf32> to vector<1x128xf32>
    %c0_11 = arith.constant 0 : index
    %c0_12 = arith.constant 0 : index
    %c0_13 = arith.constant 0 : index
    %20 = vector.load %arg5[%c0_11, %c0_12, %c0_13] : memref<2x1x128xf32, #tpu.memory_space<vmem>>, vector<1x1x128xf32>
    %21 = vector.shape_cast %20 : vector<1x1x128xf32> to vector<1x128xf32>
    %cst_14 = arith.constant dense<0.000000e+00> : vector<16xf32>
    %22 = vector.multi_reduction <add>, %17, %cst_14 [1] : vector<16x128xf32> to vector<16xf32>
    %23 = vector.shape_cast %22 : vector<16xf32> to vector<16x1xf32>
    %cst_15 = arith.constant 1.280000e+02 : f32
    %24 = vector.broadcast %cst_15 : f32 to vector<16x1xf32>
    %25 = arith.divf %23, %24 : vector<16x1xf32>
    %26 = vector.broadcast %25 : vector<16x1xf32> to vector<16x128xf32>
    %27 = arith.subf %17, %26 : vector<16x128xf32>
    %28 = arith.mulf %27, %27 : vector<16x128xf32>
    %cst_16 = arith.constant dense<0.000000e+00> : vector<16xf32>
    %29 = vector.multi_reduction <add>, %28, %cst_16 [1] : vector<16x128xf32> to vector<16xf32>
    %30 = vector.shape_cast %29 : vector<16xf32> to vector<16x1xf32>
    %cst_17 = arith.constant 1.280000e+02 : f32
    %31 = vector.broadcast %cst_17 : f32 to vector<16x1xf32>
    %32 = arith.divf %30, %31 : vector<16x1xf32>
    %cst_18 = arith.constant 9.99999997E-7 : f32
    %33 = vector.broadcast %cst_18 : f32 to vector<16x1xf32>
    %34 = arith.addf %32, %33 : vector<16x1xf32>
    %35 = math.rsqrt %34 : vector<16x1xf32>
    %36 = vector.broadcast %35 : vector<16x1xf32> to vector<16x128xf32>
    %37 = arith.mulf %27, %36 : vector<16x128xf32>
    %38 = vector.broadcast %19 : vector<1x128xf32> to vector<16x128xf32>
    %39 = arith.mulf %37, %38 : vector<16x128xf32>
    %40 = vector.broadcast %21 : vector<1x128xf32> to vector<16x128xf32>
    %41 = arith.addf %39, %40 : vector<16x128xf32>
    %c0_19 = arith.constant 0 : index
    %c0_20 = arith.constant 0 : index
    %c0_21 = arith.constant 0 : index
    %42 = vector.load %arg6[%c0_19, %c0_20, %c0_21] : memref<2x128x384xbf16, #tpu.memory_space<vmem>>, vector<1x128x384xbf16>
    %43 = vector.shape_cast %42 : vector<1x128x384xbf16> to vector<128x384xbf16>
    %c0_22 = arith.constant 0 : index
    %c0_23 = arith.constant 0 : index
    %c0_24 = arith.constant 0 : index
    %44 = vector.load %arg7[%c0_22, %c0_23, %c0_24] : memref<2x1x384xf32, #tpu.memory_space<vmem>>, vector<1x1x384xf32>
    %45 = vector.shape_cast %44 : vector<1x1x384xf32> to vector<1x384xf32>
    %46 = arith.truncf %41 : vector<16x128xf32> to vector<16x128xbf16>
    %cst_25 = arith.constant dense<0.000000e+00> : vector<16x384xf32>
    %47 = tpu.matmul %46, %43, %cst_25 {dimension_numbers = #tpu.dot_dimension_numbers<[1], [0], [0], [1], [0, 0, 1, 1], [], []>} : vector<16x128xbf16>, vector<128x384xbf16>, vector<16x384xf32> -> vector<16x384xf32>
    %48 = vector.broadcast %45 : vector<1x384xf32> to vector<16x384xf32>
    %49 = arith.addf %47, %48 : vector<16x384xf32>
    %50 = vector.shape_cast %49 : vector<16x384xf32> to vector<2x8x384xf32>
    %51 = vector.extract_strided_slice %50 {offsets = [0, 0, 0], sizes = [2, 8, 32], strides = [1, 1, 1]} : vector<2x8x384xf32> to vector<2x8x32xf32>
    %52 = vector.extract_strided_slice %50 {offsets = [0, 0, 128], sizes = [2, 8, 32], strides = [1, 1, 1]} : vector<2x8x384xf32> to vector<2x8x32xf32>
    %53 = vector.extract_strided_slice %50 {offsets = [0, 0, 256], sizes = [2, 8, 32], strides = [1, 1, 1]} : vector<2x8x384xf32> to vector<2x8x32xf32>
    "tpu.trace_start"() <{level = 10 : i32, message = "bqd,bkd->bqk"}> : () -> ()
    %cst_26 = arith.constant dense<0.000000e+00> : vector<2x8x8xf32>
    %54 = tpu.matmul %51, %52, %cst_26 {dimension_numbers = #tpu.dot_dimension_numbers<[2], [2], [1], [1], [0, 0, 0, 1, 1, 1], [0], [0]>} : vector<2x8x32xf32>, vector<2x8x32xf32>, vector<2x8x8xf32> -> vector<2x8x8xf32>
    "tpu.trace_stop"() : () -> ()
    %cst_27 = arith.constant 0.176776692 : f32
    %55 = vector.broadcast %cst_27 : f32 to vector<2x8x8xf32>
    %56 = arith.mulf %54, %55 : vector<2x8x8xf32>
    %cst_28 = arith.constant -1.000000e+30 : f32
    %57 = vector.shape_cast %2 : vector<1x1x8xi1> to vector<1x1x8xi1>
    %58 = vector.broadcast %57 : vector<1x1x8xi1> to vector<2x8x8xi1>
    %59 = vector.broadcast %cst_28 : f32 to vector<2x8x8xf32>
    %60 = arith.select %58, %56, %59 : vector<2x8x8xi1>, vector<2x8x8xf32>
    %cst_29 = arith.constant dense<0xFF800000> : vector<2x8xf32>
    %61 = vector.multi_reduction <maximumf>, %60, %cst_29 [2] : vector<2x8x8xf32> to vector<2x8xf32>
    %62 = vector.shape_cast %61 : vector<2x8xf32> to vector<2x8x1xf32>
    %63 = vector.broadcast %62 : vector<2x8x1xf32> to vector<2x8x8xf32>
    %64 = arith.subf %60, %63 : vector<2x8x8xf32>
    %65 = math.exp %64 : vector<2x8x8xf32>
    %cst_30 = arith.constant dense<0.000000e+00> : vector<2x8xf32>
    %66 = vector.multi_reduction <add>, %65, %cst_30 [2] : vector<2x8x8xf32> to vector<2x8xf32>
    %67 = vector.shape_cast %66 : vector<2x8xf32> to vector<2x8x1xf32>
    %68 = tpu.reciprocal %67 {approx = true} : vector<2x8x1xf32> -> vector<2x8x1xf32>
    %69 = vector.broadcast %68 : vector<2x8x1xf32> to vector<2x8x8xf32>
    %70 = arith.mulf %65, %69 : vector<2x8x8xf32>
    "tpu.trace_start"() <{level = 10 : i32, message = "bqk,bkd->bqd"}> : () -> ()
    %cst_31 = arith.constant dense<0.000000e+00> : vector<2x8x32xf32>
    %71 = tpu.matmul %70, %53, %cst_31 {dimension_numbers = #tpu.dot_dimension_numbers<[2], [1], [1], [2], [0, 0, 0, 1, 1, 2], [0], [0]>} : vector<2x8x8xf32>, vector<2x8x32xf32>, vector<2x8x32xf32> -> vector<2x8x32xf32>
    "tpu.trace_stop"() : () -> ()
    %72 = vector.extract_strided_slice %50 {offsets = [0, 0, 32], sizes = [2, 8, 32], strides = [1, 1, 1]} : vector<2x8x384xf32> to vector<2x8x32xf32>
    %73 = vector.extract_strided_slice %50 {offsets = [0, 0, 160], sizes = [2, 8, 32], strides = [1, 1, 1]} : vector<2x8x384xf32> to vector<2x8x32xf32>
    %74 = vector.extract_strided_slice %50 {offsets = [0, 0, 288], sizes = [2, 8, 32], strides = [1, 1, 1]} : vector<2x8x384xf32> to vector<2x8x32xf32>
    "tpu.trace_start"() <{level = 10 : i32, message = "bqd,bkd->bqk"}> : () -> ()
    %cst_32 = arith.constant dense<0.000000e+00> : vector<2x8x8xf32>
    %75 = tpu.matmul %72, %73, %cst_32 {dimension_numbers = #tpu.dot_dimension_numbers<[2], [2], [1], [1], [0, 0, 0, 1, 1, 1], [0], [0]>} : vector<2x8x32xf32>, vector<2x8x32xf32>, vector<2x8x8xf32> -> vector<2x8x8xf32>
    "tpu.trace_stop"() : () -> ()
    %cst_33 = arith.constant 0.176776692 : f32
    %76 = vector.broadcast %cst_33 : f32 to vector<2x8x8xf32>
    %77 = arith.mulf %75, %76 : vector<2x8x8xf32>
    %cst_34 = arith.constant -1.000000e+30 : f32
    %78 = vector.shape_cast %2 : vector<1x1x8xi1> to vector<1x1x8xi1>
    %79 = vector.broadcast %78 : vector<1x1x8xi1> to vector<2x8x8xi1>
    %80 = vector.broadcast %cst_34 : f32 to vector<2x8x8xf32>
    %81 = arith.select %79, %77, %80 : vector<2x8x8xi1>, vector<2x8x8xf32>
    %cst_35 = arith.constant dense<0xFF800000> : vector<2x8xf32>
    %82 = vector.multi_reduction <maximumf>, %81, %cst_35 [2] : vector<2x8x8xf32> to vector<2x8xf32>
    %83 = vector.shape_cast %82 : vector<2x8xf32> to vector<2x8x1xf32>
    %84 = vector.broadcast %83 : vector<2x8x1xf32> to vector<2x8x8xf32>
    %85 = arith.subf %81, %84 : vector<2x8x8xf32>
    %86 = math.exp %85 : vector<2x8x8xf32>
    %cst_36 = arith.constant dense<0.000000e+00> : vector<2x8xf32>
    %87 = vector.multi_reduction <add>, %86, %cst_36 [2] : vector<2x8x8xf32> to vector<2x8xf32>
    %88 = vector.shape_cast %87 : vector<2x8xf32> to vector<2x8x1xf32>
    %89 = tpu.reciprocal %88 {approx = true} : vector<2x8x1xf32> -> vector<2x8x1xf32>
    %90 = vector.broadcast %89 : vector<2x8x1xf32> to vector<2x8x8xf32>
    %91 = arith.mulf %86, %90 : vector<2x8x8xf32>
    "tpu.trace_start"() <{level = 10 : i32, message = "bqk,bkd->bqd"}> : () -> ()
    %cst_37 = arith.constant dense<0.000000e+00> : vector<2x8x32xf32>
    %92 = tpu.matmul %91, %74, %cst_37 {dimension_numbers = #tpu.dot_dimension_numbers<[2], [1], [1], [2], [0, 0, 0, 1, 1, 2], [0], [0]>} : vector<2x8x8xf32>, vector<2x8x32xf32>, vector<2x8x32xf32> -> vector<2x8x32xf32>
    "tpu.trace_stop"() : () -> ()
    %93 = vector.extract_strided_slice %50 {offsets = [0, 0, 64], sizes = [2, 8, 32], strides = [1, 1, 1]} : vector<2x8x384xf32> to vector<2x8x32xf32>
    %94 = vector.extract_strided_slice %50 {offsets = [0, 0, 192], sizes = [2, 8, 32], strides = [1, 1, 1]} : vector<2x8x384xf32> to vector<2x8x32xf32>
    %95 = vector.extract_strided_slice %50 {offsets = [0, 0, 320], sizes = [2, 8, 32], strides = [1, 1, 1]} : vector<2x8x384xf32> to vector<2x8x32xf32>
    "tpu.trace_start"() <{level = 10 : i32, message = "bqd,bkd->bqk"}> : () -> ()
    %cst_38 = arith.constant dense<0.000000e+00> : vector<2x8x8xf32>
    %96 = tpu.matmul %93, %94, %cst_38 {dimension_numbers = #tpu.dot_dimension_numbers<[2], [2], [1], [1], [0, 0, 0, 1, 1, 1], [0], [0]>} : vector<2x8x32xf32>, vector<2x8x32xf32>, vector<2x8x8xf32> -> vector<2x8x8xf32>
    "tpu.trace_stop"() : () -> ()
    %cst_39 = arith.constant 0.176776692 : f32
    %97 = vector.broadcast %cst_39 : f32 to vector<2x8x8xf32>
    %98 = arith.mulf %96, %97 : vector<2x8x8xf32>
    %cst_40 = arith.constant -1.000000e+30 : f32
    %99 = vector.shape_cast %2 : vector<1x1x8xi1> to vector<1x1x8xi1>
    %100 = vector.broadcast %99 : vector<1x1x8xi1> to vector<2x8x8xi1>
    %101 = vector.broadcast %cst_40 : f32 to vector<2x8x8xf32>
    %102 = arith.select %100, %98, %101 : vector<2x8x8xi1>, vector<2x8x8xf32>
    %cst_41 = arith.constant dense<0xFF800000> : vector<2x8xf32>
    %103 = vector.multi_reduction <maximumf>, %102, %cst_41 [2] : vector<2x8x8xf32> to vector<2x8xf32>
    %104 = vector.shape_cast %103 : vector<2x8xf32> to vector<2x8x1xf32>
    %105 = vector.broadcast %104 : vector<2x8x1xf32> to vector<2x8x8xf32>
    %106 = arith.subf %102, %105 : vector<2x8x8xf32>
    %107 = math.exp %106 : vector<2x8x8xf32>
    %cst_42 = arith.constant dense<0.000000e+00> : vector<2x8xf32>
    %108 = vector.multi_reduction <add>, %107, %cst_42 [2] : vector<2x8x8xf32> to vector<2x8xf32>
    %109 = vector.shape_cast %108 : vector<2x8xf32> to vector<2x8x1xf32>
    %110 = tpu.reciprocal %109 {approx = true} : vector<2x8x1xf32> -> vector<2x8x1xf32>
    %111 = vector.broadcast %110 : vector<2x8x1xf32> to vector<2x8x8xf32>
    %112 = arith.mulf %107, %111 : vector<2x8x8xf32>
    "tpu.trace_start"() <{level = 10 : i32, message = "bqk,bkd->bqd"}> : () -> ()
    %cst_43 = arith.constant dense<0.000000e+00> : vector<2x8x32xf32>
    %113 = tpu.matmul %112, %95, %cst_43 {dimension_numbers = #tpu.dot_dimension_numbers<[2], [1], [1], [2], [0, 0, 0, 1, 1, 2], [0], [0]>} : vector<2x8x8xf32>, vector<2x8x32xf32>, vector<2x8x32xf32> -> vector<2x8x32xf32>
    "tpu.trace_stop"() : () -> ()
    %114 = vector.extract_strided_slice %50 {offsets = [0, 0, 96], sizes = [2, 8, 32], strides = [1, 1, 1]} : vector<2x8x384xf32> to vector<2x8x32xf32>
    %115 = vector.extract_strided_slice %50 {offsets = [0, 0, 224], sizes = [2, 8, 32], strides = [1, 1, 1]} : vector<2x8x384xf32> to vector<2x8x32xf32>
    %116 = vector.extract_strided_slice %50 {offsets = [0, 0, 352], sizes = [2, 8, 32], strides = [1, 1, 1]} : vector<2x8x384xf32> to vector<2x8x32xf32>
    "tpu.trace_start"() <{level = 10 : i32, message = "bqd,bkd->bqk"}> : () -> ()
    %cst_44 = arith.constant dense<0.000000e+00> : vector<2x8x8xf32>
    %117 = tpu.matmul %114, %115, %cst_44 {dimension_numbers = #tpu.dot_dimension_numbers<[2], [2], [1], [1], [0, 0, 0, 1, 1, 1], [0], [0]>} : vector<2x8x32xf32>, vector<2x8x32xf32>, vector<2x8x8xf32> -> vector<2x8x8xf32>
    "tpu.trace_stop"() : () -> ()
    %cst_45 = arith.constant 0.176776692 : f32
    %118 = vector.broadcast %cst_45 : f32 to vector<2x8x8xf32>
    %119 = arith.mulf %117, %118 : vector<2x8x8xf32>
    %cst_46 = arith.constant -1.000000e+30 : f32
    %120 = vector.shape_cast %2 : vector<1x1x8xi1> to vector<1x1x8xi1>
    %121 = vector.broadcast %120 : vector<1x1x8xi1> to vector<2x8x8xi1>
    %122 = vector.broadcast %cst_46 : f32 to vector<2x8x8xf32>
    %123 = arith.select %121, %119, %122 : vector<2x8x8xi1>, vector<2x8x8xf32>
    %cst_47 = arith.constant dense<0xFF800000> : vector<2x8xf32>
    %124 = vector.multi_reduction <maximumf>, %123, %cst_47 [2] : vector<2x8x8xf32> to vector<2x8xf32>
    %125 = vector.shape_cast %124 : vector<2x8xf32> to vector<2x8x1xf32>
    %126 = vector.broadcast %125 : vector<2x8x1xf32> to vector<2x8x8xf32>
    %127 = arith.subf %123, %126 : vector<2x8x8xf32>
    %128 = math.exp %127 : vector<2x8x8xf32>
    %cst_48 = arith.constant dense<0.000000e+00> : vector<2x8xf32>
    %129 = vector.multi_reduction <add>, %128, %cst_48 [2] : vector<2x8x8xf32> to vector<2x8xf32>
    %130 = vector.shape_cast %129 : vector<2x8xf32> to vector<2x8x1xf32>
    %131 = tpu.reciprocal %130 {approx = true} : vector<2x8x1xf32> -> vector<2x8x1xf32>
    %132 = vector.broadcast %131 : vector<2x8x1xf32> to vector<2x8x8xf32>
    %133 = arith.mulf %128, %132 : vector<2x8x8xf32>
    "tpu.trace_start"() <{level = 10 : i32, message = "bqk,bkd->bqd"}> : () -> ()
    %cst_49 = arith.constant dense<0.000000e+00> : vector<2x8x32xf32>
    %134 = tpu.matmul %133, %116, %cst_49 {dimension_numbers = #tpu.dot_dimension_numbers<[2], [1], [1], [2], [0, 0, 0, 1, 1, 2], [0], [0]>} : vector<2x8x8xf32>, vector<2x8x32xf32>, vector<2x8x32xf32> -> vector<2x8x32xf32>
    "tpu.trace_stop"() : () -> ()
    %135 = tpu.concatenate %71, %92, %113, %134 in 2 : vector<2x8x32xf32>, vector<2x8x32xf32>, vector<2x8x32xf32>, vector<2x8x32xf32> -> vector<2x8x128xf32>
    %136 = vector.shape_cast %135 : vector<2x8x128xf32> to vector<16x128xf32>
    %c0_50 = arith.constant 0 : index
    %c0_51 = arith.constant 0 : index
    %c0_52 = arith.constant 0 : index
    %137 = vector.load %arg8[%c0_50, %c0_51, %c0_52] : memref<2x128x128xbf16, #tpu.memory_space<vmem>>, vector<1x128x128xbf16>
    %138 = vector.shape_cast %137 : vector<1x128x128xbf16> to vector<128x128xbf16>
    %c0_53 = arith.constant 0 : index
    %c0_54 = arith.constant 0 : index
    %c0_55 = arith.constant 0 : index
    %139 = vector.load %arg9[%c0_53, %c0_54, %c0_55] : memref<2x1x128xf32, #tpu.memory_space<vmem>>, vector<1x1x128xf32>
    %140 = vector.shape_cast %139 : vector<1x1x128xf32> to vector<1x128xf32>
    %141 = arith.truncf %136 : vector<16x128xf32> to vector<16x128xbf16>
    %cst_56 = arith.constant dense<0.000000e+00> : vector<16x128xf32>
    %142 = tpu.matmul %141, %138, %cst_56 {dimension_numbers = #tpu.dot_dimension_numbers<[1], [0], [0], [1], [0, 0, 1, 1], [], []>} : vector<16x128xbf16>, vector<128x128xbf16>, vector<16x128xf32> -> vector<16x128xf32>
    %143 = vector.broadcast %140 : vector<1x128xf32> to vector<16x128xf32>
    %144 = arith.addf %142, %143 : vector<16x128xf32>
    %145 = arith.addf %17, %144 : vector<16x128xf32>
    %c0_57 = arith.constant 0 : index
    %c0_58 = arith.constant 0 : index
    %c0_59 = arith.constant 0 : index
    %146 = vector.load %arg10[%c0_57, %c0_58, %c0_59] : memref<2x1x128xf32, #tpu.memory_space<vmem>>, vector<1x1x128xf32>
    %147 = vector.shape_cast %146 : vector<1x1x128xf32> to vector<1x128xf32>
    %c0_60 = arith.constant 0 : index
    %c0_61 = arith.constant 0 : index
    %c0_62 = arith.constant 0 : index
    %148 = vector.load %arg11[%c0_60, %c0_61, %c0_62] : memref<2x1x128xf32, #tpu.memory_space<vmem>>, vector<1x1x128xf32>
    %149 = vector.shape_cast %148 : vector<1x1x128xf32> to vector<1x128xf32>
    %cst_63 = arith.constant dense<0.000000e+00> : vector<16xf32>
    %150 = vector.multi_reduction <add>, %145, %cst_63 [1] : vector<16x128xf32> to vector<16xf32>
    %151 = vector.shape_cast %150 : vector<16xf32> to vector<16x1xf32>
    %cst_64 = arith.constant 1.280000e+02 : f32
    %152 = vector.broadcast %cst_64 : f32 to vector<16x1xf32>
    %153 = arith.divf %151, %152 : vector<16x1xf32>
    %154 = vector.broadcast %153 : vector<16x1xf32> to vector<16x128xf32>
    %155 = arith.subf %145, %154 : vector<16x128xf32>
    %156 = arith.mulf %155, %155 : vector<16x128xf32>
    %cst_65 = arith.constant dense<0.000000e+00> : vector<16xf32>
    %157 = vector.multi_reduction <add>, %156, %cst_65 [1] : vector<16x128xf32> to vector<16xf32>
    %158 = vector.shape_cast %157 : vector<16xf32> to vector<16x1xf32>
    %cst_66 = arith.constant 1.280000e+02 : f32
    %159 = vector.broadcast %cst_66 : f32 to vector<16x1xf32>
    %160 = arith.divf %158, %159 : vector<16x1xf32>
    %cst_67 = arith.constant 9.99999997E-7 : f32
    %161 = vector.broadcast %cst_67 : f32 to vector<16x1xf32>
    %162 = arith.addf %160, %161 : vector<16x1xf32>
    %163 = math.rsqrt %162 : vector<16x1xf32>
    %164 = vector.broadcast %163 : vector<16x1xf32> to vector<16x128xf32>
    %165 = arith.mulf %155, %164 : vector<16x128xf32>
    %166 = vector.broadcast %147 : vector<1x128xf32> to vector<16x128xf32>
    %167 = arith.mulf %165, %166 : vector<16x128xf32>
    %168 = vector.broadcast %149 : vector<1x128xf32> to vector<16x128xf32>
    %169 = arith.addf %167, %168 : vector<16x128xf32>
    %c0_68 = arith.constant 0 : index
    %c0_69 = arith.constant 0 : index
    %c0_70 = arith.constant 0 : index
    %170 = vector.load %arg12[%c0_68, %c0_69, %c0_70] : memref<2x128x512xbf16, #tpu.memory_space<vmem>>, vector<1x128x512xbf16>
    %171 = vector.shape_cast %170 : vector<1x128x512xbf16> to vector<128x512xbf16>
    %c0_71 = arith.constant 0 : index
    %c0_72 = arith.constant 0 : index
    %c0_73 = arith.constant 0 : index
    %172 = vector.load %arg13[%c0_71, %c0_72, %c0_73] : memref<2x1x512xf32, #tpu.memory_space<vmem>>, vector<1x1x512xf32>
    %173 = vector.shape_cast %172 : vector<1x1x512xf32> to vector<1x512xf32>
    %174 = arith.truncf %169 : vector<16x128xf32> to vector<16x128xbf16>
    %cst_74 = arith.constant dense<0.000000e+00> : vector<16x512xf32>
    %175 = tpu.matmul %174, %171, %cst_74 {dimension_numbers = #tpu.dot_dimension_numbers<[1], [0], [0], [1], [0, 0, 1, 1], [], []>} : vector<16x128xbf16>, vector<128x512xbf16>, vector<16x512xf32> -> vector<16x512xf32>
    %176 = vector.broadcast %173 : vector<1x512xf32> to vector<16x512xf32>
    %177 = arith.addf %175, %176 : vector<16x512xf32>
    %178 = arith.mulf %177, %177 : vector<16x512xf32>
    %179 = arith.mulf %177, %178 : vector<16x512xf32>
    %cst_75 = arith.constant 4.471500e-02 : f32
    %180 = vector.broadcast %cst_75 : f32 to vector<16x512xf32>
    %181 = arith.mulf %180, %179 : vector<16x512xf32>
    %182 = arith.addf %177, %181 : vector<16x512xf32>
    %cst_76 = arith.constant 0.797884583 : f32
    %183 = vector.broadcast %cst_76 : f32 to vector<16x512xf32>
    %184 = arith.mulf %183, %182 : vector<16x512xf32>
    %185 = math.tanh %184 : vector<16x512xf32>
    %cst_77 = arith.constant 1.000000e+00 : f32
    %186 = vector.broadcast %cst_77 : f32 to vector<16x512xf32>
    %187 = arith.addf %186, %185 : vector<16x512xf32>
    %cst_78 = arith.constant 5.000000e-01 : f32
    %188 = vector.broadcast %cst_78 : f32 to vector<16x512xf32>
    %189 = arith.mulf %188, %187 : vector<16x512xf32>
    %190 = arith.mulf %177, %189 : vector<16x512xf32>
    %c0_79 = arith.constant 0 : index
    %c0_80 = arith.constant 0 : index
    %c0_81 = arith.constant 0 : index
    %191 = vector.load %arg14[%c0_79, %c0_80, %c0_81] : memref<2x512x128xbf16, #tpu.memory_space<vmem>>, vector<1x512x128xbf16>
    %192 = vector.shape_cast %191 : vector<1x512x128xbf16> to vector<512x128xbf16>
    %c0_82 = arith.constant 0 : index
    %c0_83 = arith.constant 0 : index
    %c0_84 = arith.constant 0 : index
    %193 = vector.load %arg15[%c0_82, %c0_83, %c0_84] : memref<2x1x128xf32, #tpu.memory_space<vmem>>, vector<1x1x128xf32>
    %194 = vector.shape_cast %193 : vector<1x1x128xf32> to vector<1x128xf32>
    %195 = arith.truncf %190 : vector<16x512xf32> to vector<16x512xbf16>
    %cst_85 = arith.constant dense<0.000000e+00> : vector<16x128xf32>
    %196 = tpu.matmul %195, %192, %cst_85 {dimension_numbers = #tpu.dot_dimension_numbers<[1], [0], [0], [1], [0, 0, 1, 1], [], []>} : vector<16x512xbf16>, vector<512x128xbf16>, vector<16x128xf32> -> vector<16x128xf32>
    %197 = vector.broadcast %194 : vector<1x128xf32> to vector<16x128xf32>
    %198 = arith.addf %196, %197 : vector<16x128xf32>
    %199 = arith.addf %145, %198 : vector<16x128xf32>
    %c1 = arith.constant 1 : index
    %c0_86 = arith.constant 0 : index
    %c0_87 = arith.constant 0 : index
    %200 = vector.load %arg4[%c1, %c0_86, %c0_87] : memref<2x1x128xf32, #tpu.memory_space<vmem>>, vector<1x1x128xf32>
    %201 = vector.shape_cast %200 : vector<1x1x128xf32> to vector<1x128xf32>
    %c1_88 = arith.constant 1 : index
    %c0_89 = arith.constant 0 : index
    %c0_90 = arith.constant 0 : index
    %202 = vector.load %arg5[%c1_88, %c0_89, %c0_90] : memref<2x1x128xf32, #tpu.memory_space<vmem>>, vector<1x1x128xf32>
    %203 = vector.shape_cast %202 : vector<1x1x128xf32> to vector<1x128xf32>
    %cst_91 = arith.constant dense<0.000000e+00> : vector<16xf32>
    %204 = vector.multi_reduction <add>, %199, %cst_91 [1] : vector<16x128xf32> to vector<16xf32>
    %205 = vector.shape_cast %204 : vector<16xf32> to vector<16x1xf32>
    %cst_92 = arith.constant 1.280000e+02 : f32
    %206 = vector.broadcast %cst_92 : f32 to vector<16x1xf32>
    %207 = arith.divf %205, %206 : vector<16x1xf32>
    %208 = vector.broadcast %207 : vector<16x1xf32> to vector<16x128xf32>
    %209 = arith.subf %199, %208 : vector<16x128xf32>
    %210 = arith.mulf %209, %209 : vector<16x128xf32>
    %cst_93 = arith.constant dense<0.000000e+00> : vector<16xf32>
    %211 = vector.multi_reduction <add>, %210, %cst_93 [1] : vector<16x128xf32> to vector<16xf32>
    %212 = vector.shape_cast %211 : vector<16xf32> to vector<16x1xf32>
    %cst_94 = arith.constant 1.280000e+02 : f32
    %213 = vector.broadcast %cst_94 : f32 to vector<16x1xf32>
    %214 = arith.divf %212, %213 : vector<16x1xf32>
    %cst_95 = arith.constant 9.99999997E-7 : f32
    %215 = vector.broadcast %cst_95 : f32 to vector<16x1xf32>
    %216 = arith.addf %214, %215 : vector<16x1xf32>
    %217 = math.rsqrt %216 : vector<16x1xf32>
    %218 = vector.broadcast %217 : vector<16x1xf32> to vector<16x128xf32>
    %219 = arith.mulf %209, %218 : vector<16x128xf32>
    %220 = vector.broadcast %201 : vector<1x128xf32> to vector<16x128xf32>
    %221 = arith.mulf %219, %220 : vector<16x128xf32>
    %222 = vector.broadcast %203 : vector<1x128xf32> to vector<16x128xf32>
    %223 = arith.addf %221, %222 : vector<16x128xf32>
    %c1_96 = arith.constant 1 : index
    %c0_97 = arith.constant 0 : index
    %c0_98 = arith.constant 0 : index
    %224 = vector.load %arg6[%c1_96, %c0_97, %c0_98] : memref<2x128x384xbf16, #tpu.memory_space<vmem>>, vector<1x128x384xbf16>
    %225 = vector.shape_cast %224 : vector<1x128x384xbf16> to vector<128x384xbf16>
    %c1_99 = arith.constant 1 : index
    %c0_100 = arith.constant 0 : index
    %c0_101 = arith.constant 0 : index
    %226 = vector.load %arg7[%c1_99, %c0_100, %c0_101] : memref<2x1x384xf32, #tpu.memory_space<vmem>>, vector<1x1x384xf32>
    %227 = vector.shape_cast %226 : vector<1x1x384xf32> to vector<1x384xf32>
    %228 = arith.truncf %223 : vector<16x128xf32> to vector<16x128xbf16>
    %cst_102 = arith.constant dense<0.000000e+00> : vector<16x384xf32>
    %229 = tpu.matmul %228, %225, %cst_102 {dimension_numbers = #tpu.dot_dimension_numbers<[1], [0], [0], [1], [0, 0, 1, 1], [], []>} : vector<16x128xbf16>, vector<128x384xbf16>, vector<16x384xf32> -> vector<16x384xf32>
    %230 = vector.broadcast %227 : vector<1x384xf32> to vector<16x384xf32>
    %231 = arith.addf %229, %230 : vector<16x384xf32>
    %232 = vector.shape_cast %231 : vector<16x384xf32> to vector<2x8x384xf32>
    %233 = vector.extract_strided_slice %232 {offsets = [0, 0, 0], sizes = [2, 8, 32], strides = [1, 1, 1]} : vector<2x8x384xf32> to vector<2x8x32xf32>
    %234 = vector.extract_strided_slice %232 {offsets = [0, 0, 128], sizes = [2, 8, 32], strides = [1, 1, 1]} : vector<2x8x384xf32> to vector<2x8x32xf32>
    %235 = vector.extract_strided_slice %232 {offsets = [0, 0, 256], sizes = [2, 8, 32], strides = [1, 1, 1]} : vector<2x8x384xf32> to vector<2x8x32xf32>
    "tpu.trace_start"() <{level = 10 : i32, message = "bqd,bkd->bqk"}> : () -> ()
    %cst_103 = arith.constant dense<0.000000e+00> : vector<2x8x8xf32>
    %236 = tpu.matmul %233, %234, %cst_103 {dimension_numbers = #tpu.dot_dimension_numbers<[2], [2], [1], [1], [0, 0, 0, 1, 1, 1], [0], [0]>} : vector<2x8x32xf32>, vector<2x8x32xf32>, vector<2x8x8xf32> -> vector<2x8x8xf32>
    "tpu.trace_stop"() : () -> ()
    %cst_104 = arith.constant 0.176776692 : f32
    %237 = vector.broadcast %cst_104 : f32 to vector<2x8x8xf32>
    %238 = arith.mulf %236, %237 : vector<2x8x8xf32>
    %cst_105 = arith.constant -1.000000e+30 : f32
    %239 = vector.shape_cast %2 : vector<1x1x8xi1> to vector<1x1x8xi1>
    %240 = vector.broadcast %239 : vector<1x1x8xi1> to vector<2x8x8xi1>
    %241 = vector.broadcast %cst_105 : f32 to vector<2x8x8xf32>
    %242 = arith.select %240, %238, %241 : vector<2x8x8xi1>, vector<2x8x8xf32>
    %cst_106 = arith.constant dense<0xFF800000> : vector<2x8xf32>
    %243 = vector.multi_reduction <maximumf>, %242, %cst_106 [2] : vector<2x8x8xf32> to vector<2x8xf32>
    %244 = vector.shape_cast %243 : vector<2x8xf32> to vector<2x8x1xf32>
    %245 = vector.broadcast %244 : vector<2x8x1xf32> to vector<2x8x8xf32>
    %246 = arith.subf %242, %245 : vector<2x8x8xf32>
    %247 = math.exp %246 : vector<2x8x8xf32>
    %cst_107 = arith.constant dense<0.000000e+00> : vector<2x8xf32>
    %248 = vector.multi_reduction <add>, %247, %cst_107 [2] : vector<2x8x8xf32> to vector<2x8xf32>
    %249 = vector.shape_cast %248 : vector<2x8xf32> to vector<2x8x1xf32>
    %250 = tpu.reciprocal %249 {approx = true} : vector<2x8x1xf32> -> vector<2x8x1xf32>
    %251 = vector.broadcast %250 : vector<2x8x1xf32> to vector<2x8x8xf32>
    %252 = arith.mulf %247, %251 : vector<2x8x8xf32>
    "tpu.trace_start"() <{level = 10 : i32, message = "bqk,bkd->bqd"}> : () -> ()
    %cst_108 = arith.constant dense<0.000000e+00> : vector<2x8x32xf32>
    %253 = tpu.matmul %252, %235, %cst_108 {dimension_numbers = #tpu.dot_dimension_numbers<[2], [1], [1], [2], [0, 0, 0, 1, 1, 2], [0], [0]>} : vector<2x8x8xf32>, vector<2x8x32xf32>, vector<2x8x32xf32> -> vector<2x8x32xf32>
    "tpu.trace_stop"() : () -> ()
    %254 = vector.extract_strided_slice %232 {offsets = [0, 0, 32], sizes = [2, 8, 32], strides = [1, 1, 1]} : vector<2x8x384xf32> to vector<2x8x32xf32>
    %255 = vector.extract_strided_slice %232 {offsets = [0, 0, 160], sizes = [2, 8, 32], strides = [1, 1, 1]} : vector<2x8x384xf32> to vector<2x8x32xf32>
    %256 = vector.extract_strided_slice %232 {offsets = [0, 0, 288], sizes = [2, 8, 32], strides = [1, 1, 1]} : vector<2x8x384xf32> to vector<2x8x32xf32>
    "tpu.trace_start"() <{level = 10 : i32, message = "bqd,bkd->bqk"}> : () -> ()
    %cst_109 = arith.constant dense<0.000000e+00> : vector<2x8x8xf32>
    %257 = tpu.matmul %254, %255, %cst_109 {dimension_numbers = #tpu.dot_dimension_numbers<[2], [2], [1], [1], [0, 0, 0, 1, 1, 1], [0], [0]>} : vector<2x8x32xf32>, vector<2x8x32xf32>, vector<2x8x8xf32> -> vector<2x8x8xf32>
    "tpu.trace_stop"() : () -> ()
    %cst_110 = arith.constant 0.176776692 : f32
    %258 = vector.broadcast %cst_110 : f32 to vector<2x8x8xf32>
    %259 = arith.mulf %257, %258 : vector<2x8x8xf32>
    %cst_111 = arith.constant -1.000000e+30 : f32
    %260 = vector.shape_cast %2 : vector<1x1x8xi1> to vector<1x1x8xi1>
    %261 = vector.broadcast %260 : vector<1x1x8xi1> to vector<2x8x8xi1>
    %262 = vector.broadcast %cst_111 : f32 to vector<2x8x8xf32>
    %263 = arith.select %261, %259, %262 : vector<2x8x8xi1>, vector<2x8x8xf32>
    %cst_112 = arith.constant dense<0xFF800000> : vector<2x8xf32>
    %264 = vector.multi_reduction <maximumf>, %263, %cst_112 [2] : vector<2x8x8xf32> to vector<2x8xf32>
    %265 = vector.shape_cast %264 : vector<2x8xf32> to vector<2x8x1xf32>
    %266 = vector.broadcast %265 : vector<2x8x1xf32> to vector<2x8x8xf32>
    %267 = arith.subf %263, %266 : vector<2x8x8xf32>
    %268 = math.exp %267 : vector<2x8x8xf32>
    %cst_113 = arith.constant dense<0.000000e+00> : vector<2x8xf32>
    %269 = vector.multi_reduction <add>, %268, %cst_113 [2] : vector<2x8x8xf32> to vector<2x8xf32>
    %270 = vector.shape_cast %269 : vector<2x8xf32> to vector<2x8x1xf32>
    %271 = tpu.reciprocal %270 {approx = true} : vector<2x8x1xf32> -> vector<2x8x1xf32>
    %272 = vector.broadcast %271 : vector<2x8x1xf32> to vector<2x8x8xf32>
    %273 = arith.mulf %268, %272 : vector<2x8x8xf32>
    "tpu.trace_start"() <{level = 10 : i32, message = "bqk,bkd->bqd"}> : () -> ()
    %cst_114 = arith.constant dense<0.000000e+00> : vector<2x8x32xf32>
    %274 = tpu.matmul %273, %256, %cst_114 {dimension_numbers = #tpu.dot_dimension_numbers<[2], [1], [1], [2], [0, 0, 0, 1, 1, 2], [0], [0]>} : vector<2x8x8xf32>, vector<2x8x32xf32>, vector<2x8x32xf32> -> vector<2x8x32xf32>
    "tpu.trace_stop"() : () -> ()
    %275 = vector.extract_strided_slice %232 {offsets = [0, 0, 64], sizes = [2, 8, 32], strides = [1, 1, 1]} : vector<2x8x384xf32> to vector<2x8x32xf32>
    %276 = vector.extract_strided_slice %232 {offsets = [0, 0, 192], sizes = [2, 8, 32], strides = [1, 1, 1]} : vector<2x8x384xf32> to vector<2x8x32xf32>
    %277 = vector.extract_strided_slice %232 {offsets = [0, 0, 320], sizes = [2, 8, 32], strides = [1, 1, 1]} : vector<2x8x384xf32> to vector<2x8x32xf32>
    "tpu.trace_start"() <{level = 10 : i32, message = "bqd,bkd->bqk"}> : () -> ()
    %cst_115 = arith.constant dense<0.000000e+00> : vector<2x8x8xf32>
    %278 = tpu.matmul %275, %276, %cst_115 {dimension_numbers = #tpu.dot_dimension_numbers<[2], [2], [1], [1], [0, 0, 0, 1, 1, 1], [0], [0]>} : vector<2x8x32xf32>, vector<2x8x32xf32>, vector<2x8x8xf32> -> vector<2x8x8xf32>
    "tpu.trace_stop"() : () -> ()
    %cst_116 = arith.constant 0.176776692 : f32
    %279 = vector.broadcast %cst_116 : f32 to vector<2x8x8xf32>
    %280 = arith.mulf %278, %279 : vector<2x8x8xf32>
    %cst_117 = arith.constant -1.000000e+30 : f32
    %281 = vector.shape_cast %2 : vector<1x1x8xi1> to vector<1x1x8xi1>
    %282 = vector.broadcast %281 : vector<1x1x8xi1> to vector<2x8x8xi1>
    %283 = vector.broadcast %cst_117 : f32 to vector<2x8x8xf32>
    %284 = arith.select %282, %280, %283 : vector<2x8x8xi1>, vector<2x8x8xf32>
    %cst_118 = arith.constant dense<0xFF800000> : vector<2x8xf32>
    %285 = vector.multi_reduction <maximumf>, %284, %cst_118 [2] : vector<2x8x8xf32> to vector<2x8xf32>
    %286 = vector.shape_cast %285 : vector<2x8xf32> to vector<2x8x1xf32>
    %287 = vector.broadcast %286 : vector<2x8x1xf32> to vector<2x8x8xf32>
    %288 = arith.subf %284, %287 : vector<2x8x8xf32>
    %289 = math.exp %288 : vector<2x8x8xf32>
    %cst_119 = arith.constant dense<0.000000e+00> : vector<2x8xf32>
    %290 = vector.multi_reduction <add>, %289, %cst_119 [2] : vector<2x8x8xf32> to vector<2x8xf32>
    %291 = vector.shape_cast %290 : vector<2x8xf32> to vector<2x8x1xf32>
    %292 = tpu.reciprocal %291 {approx = true} : vector<2x8x1xf32> -> vector<2x8x1xf32>
    %293 = vector.broadcast %292 : vector<2x8x1xf32> to vector<2x8x8xf32>
    %294 = arith.mulf %289, %293 : vector<2x8x8xf32>
    "tpu.trace_start"() <{level = 10 : i32, message = "bqk,bkd->bqd"}> : () -> ()
    %cst_120 = arith.constant dense<0.000000e+00> : vector<2x8x32xf32>
    %295 = tpu.matmul %294, %277, %cst_120 {dimension_numbers = #tpu.dot_dimension_numbers<[2], [1], [1], [2], [0, 0, 0, 1, 1, 2], [0], [0]>} : vector<2x8x8xf32>, vector<2x8x32xf32>, vector<2x8x32xf32> -> vector<2x8x32xf32>
    "tpu.trace_stop"() : () -> ()
    %296 = vector.extract_strided_slice %232 {offsets = [0, 0, 96], sizes = [2, 8, 32], strides = [1, 1, 1]} : vector<2x8x384xf32> to vector<2x8x32xf32>
    %297 = vector.extract_strided_slice %232 {offsets = [0, 0, 224], sizes = [2, 8, 32], strides = [1, 1, 1]} : vector<2x8x384xf32> to vector<2x8x32xf32>
    %298 = vector.extract_strided_slice %232 {offsets = [0, 0, 352], sizes = [2, 8, 32], strides = [1, 1, 1]} : vector<2x8x384xf32> to vector<2x8x32xf32>
    "tpu.trace_start"() <{level = 10 : i32, message = "bqd,bkd->bqk"}> : () -> ()
    %cst_121 = arith.constant dense<0.000000e+00> : vector<2x8x8xf32>
    %299 = tpu.matmul %296, %297, %cst_121 {dimension_numbers = #tpu.dot_dimension_numbers<[2], [2], [1], [1], [0, 0, 0, 1, 1, 1], [0], [0]>} : vector<2x8x32xf32>, vector<2x8x32xf32>, vector<2x8x8xf32> -> vector<2x8x8xf32>
    "tpu.trace_stop"() : () -> ()
    %cst_122 = arith.constant 0.176776692 : f32
    %300 = vector.broadcast %cst_122 : f32 to vector<2x8x8xf32>
    %301 = arith.mulf %299, %300 : vector<2x8x8xf32>
    %cst_123 = arith.constant -1.000000e+30 : f32
    %302 = vector.shape_cast %2 : vector<1x1x8xi1> to vector<1x1x8xi1>
    %303 = vector.broadcast %302 : vector<1x1x8xi1> to vector<2x8x8xi1>
    %304 = vector.broadcast %cst_123 : f32 to vector<2x8x8xf32>
    %305 = arith.select %303, %301, %304 : vector<2x8x8xi1>, vector<2x8x8xf32>
    %cst_124 = arith.constant dense<0xFF800000> : vector<2x8xf32>
    %306 = vector.multi_reduction <maximumf>, %305, %cst_124 [2] : vector<2x8x8xf32> to vector<2x8xf32>
    %307 = vector.shape_cast %306 : vector<2x8xf32> to vector<2x8x1xf32>
    %308 = vector.broadcast %307 : vector<2x8x1xf32> to vector<2x8x8xf32>
    %309 = arith.subf %305, %308 : vector<2x8x8xf32>
    %310 = math.exp %309 : vector<2x8x8xf32>
    %cst_125 = arith.constant dense<0.000000e+00> : vector<2x8xf32>
    %311 = vector.multi_reduction <add>, %310, %cst_125 [2] : vector<2x8x8xf32> to vector<2x8xf32>
    %312 = vector.shape_cast %311 : vector<2x8xf32> to vector<2x8x1xf32>
    %313 = tpu.reciprocal %312 {approx = true} : vector<2x8x1xf32> -> vector<2x8x1xf32>
    %314 = vector.broadcast %313 : vector<2x8x1xf32> to vector<2x8x8xf32>
    %315 = arith.mulf %310, %314 : vector<2x8x8xf32>
    "tpu.trace_start"() <{level = 10 : i32, message = "bqk,bkd->bqd"}> : () -> ()
    %cst_126 = arith.constant dense<0.000000e+00> : vector<2x8x32xf32>
    %316 = tpu.matmul %315, %298, %cst_126 {dimension_numbers = #tpu.dot_dimension_numbers<[2], [1], [1], [2], [0, 0, 0, 1, 1, 2], [0], [0]>} : vector<2x8x8xf32>, vector<2x8x32xf32>, vector<2x8x32xf32> -> vector<2x8x32xf32>
    "tpu.trace_stop"() : () -> ()
    %317 = tpu.concatenate %253, %274, %295, %316 in 2 : vector<2x8x32xf32>, vector<2x8x32xf32>, vector<2x8x32xf32>, vector<2x8x32xf32> -> vector<2x8x128xf32>
    %318 = vector.shape_cast %317 : vector<2x8x128xf32> to vector<16x128xf32>
    %c1_127 = arith.constant 1 : index
    %c0_128 = arith.constant 0 : index
    %c0_129 = arith.constant 0 : index
    %319 = vector.load %arg8[%c1_127, %c0_128, %c0_129] : memref<2x128x128xbf16, #tpu.memory_space<vmem>>, vector<1x128x128xbf16>
    %320 = vector.shape_cast %319 : vector<1x128x128xbf16> to vector<128x128xbf16>
    %c1_130 = arith.constant 1 : index
    %c0_131 = arith.constant 0 : index
    %c0_132 = arith.constant 0 : index
    %321 = vector.load %arg9[%c1_130, %c0_131, %c0_132] : memref<2x1x128xf32, #tpu.memory_space<vmem>>, vector<1x1x128xf32>
    %322 = vector.shape_cast %321 : vector<1x1x128xf32> to vector<1x128xf32>
    %323 = arith.truncf %318 : vector<16x128xf32> to vector<16x128xbf16>
    %cst_133 = arith.constant dense<0.000000e+00> : vector<16x128xf32>
    %324 = tpu.matmul %323, %320, %cst_133 {dimension_numbers = #tpu.dot_dimension_numbers<[1], [0], [0], [1], [0, 0, 1, 1], [], []>} : vector<16x128xbf16>, vector<128x128xbf16>, vector<16x128xf32> -> vector<16x128xf32>
    %325 = vector.broadcast %322 : vector<1x128xf32> to vector<16x128xf32>
    %326 = arith.addf %324, %325 : vector<16x128xf32>
    %327 = arith.addf %199, %326 : vector<16x128xf32>
    %c1_134 = arith.constant 1 : index
    %c0_135 = arith.constant 0 : index
    %c0_136 = arith.constant 0 : index
    %328 = vector.load %arg10[%c1_134, %c0_135, %c0_136] : memref<2x1x128xf32, #tpu.memory_space<vmem>>, vector<1x1x128xf32>
    %329 = vector.shape_cast %328 : vector<1x1x128xf32> to vector<1x128xf32>
    %c1_137 = arith.constant 1 : index
    %c0_138 = arith.constant 0 : index
    %c0_139 = arith.constant 0 : index
    %330 = vector.load %arg11[%c1_137, %c0_138, %c0_139] : memref<2x1x128xf32, #tpu.memory_space<vmem>>, vector<1x1x128xf32>
    %331 = vector.shape_cast %330 : vector<1x1x128xf32> to vector<1x128xf32>
    %cst_140 = arith.constant dense<0.000000e+00> : vector<16xf32>
    %332 = vector.multi_reduction <add>, %327, %cst_140 [1] : vector<16x128xf32> to vector<16xf32>
    %333 = vector.shape_cast %332 : vector<16xf32> to vector<16x1xf32>
    %cst_141 = arith.constant 1.280000e+02 : f32
    %334 = vector.broadcast %cst_141 : f32 to vector<16x1xf32>
    %335 = arith.divf %333, %334 : vector<16x1xf32>
    %336 = vector.broadcast %335 : vector<16x1xf32> to vector<16x128xf32>
    %337 = arith.subf %327, %336 : vector<16x128xf32>
    %338 = arith.mulf %337, %337 : vector<16x128xf32>
    %cst_142 = arith.constant dense<0.000000e+00> : vector<16xf32>
    %339 = vector.multi_reduction <add>, %338, %cst_142 [1] : vector<16x128xf32> to vector<16xf32>
    %340 = vector.shape_cast %339 : vector<16xf32> to vector<16x1xf32>
    %cst_143 = arith.constant 1.280000e+02 : f32
    %341 = vector.broadcast %cst_143 : f32 to vector<16x1xf32>
    %342 = arith.divf %340, %341 : vector<16x1xf32>
    %cst_144 = arith.constant 9.99999997E-7 : f32
    %343 = vector.broadcast %cst_144 : f32 to vector<16x1xf32>
    %344 = arith.addf %342, %343 : vector<16x1xf32>
    %345 = math.rsqrt %344 : vector<16x1xf32>
    %346 = vector.broadcast %345 : vector<16x1xf32> to vector<16x128xf32>
    %347 = arith.mulf %337, %346 : vector<16x128xf32>
    %348 = vector.broadcast %329 : vector<1x128xf32> to vector<16x128xf32>
    %349 = arith.mulf %347, %348 : vector<16x128xf32>
    %350 = vector.broadcast %331 : vector<1x128xf32> to vector<16x128xf32>
    %351 = arith.addf %349, %350 : vector<16x128xf32>
    %c1_145 = arith.constant 1 : index
    %c0_146 = arith.constant 0 : index
    %c0_147 = arith.constant 0 : index
    %352 = vector.load %arg12[%c1_145, %c0_146, %c0_147] : memref<2x128x512xbf16, #tpu.memory_space<vmem>>, vector<1x128x512xbf16>
    %353 = vector.shape_cast %352 : vector<1x128x512xbf16> to vector<128x512xbf16>
    %c1_148 = arith.constant 1 : index
    %c0_149 = arith.constant 0 : index
    %c0_150 = arith.constant 0 : index
    %354 = vector.load %arg13[%c1_148, %c0_149, %c0_150] : memref<2x1x512xf32, #tpu.memory_space<vmem>>, vector<1x1x512xf32>
    %355 = vector.shape_cast %354 : vector<1x1x512xf32> to vector<1x512xf32>
    %356 = arith.truncf %351 : vector<16x128xf32> to vector<16x128xbf16>
    %cst_151 = arith.constant dense<0.000000e+00> : vector<16x512xf32>
    %357 = tpu.matmul %356, %353, %cst_151 {dimension_numbers = #tpu.dot_dimension_numbers<[1], [0], [0], [1], [0, 0, 1, 1], [], []>} : vector<16x128xbf16>, vector<128x512xbf16>, vector<16x512xf32> -> vector<16x512xf32>
    %358 = vector.broadcast %355 : vector<1x512xf32> to vector<16x512xf32>
    %359 = arith.addf %357, %358 : vector<16x512xf32>
    %360 = arith.mulf %359, %359 : vector<16x512xf32>
    %361 = arith.mulf %359, %360 : vector<16x512xf32>
    %cst_152 = arith.constant 4.471500e-02 : f32
    %362 = vector.broadcast %cst_152 : f32 to vector<16x512xf32>
    %363 = arith.mulf %362, %361 : vector<16x512xf32>
    %364 = arith.addf %359, %363 : vector<16x512xf32>
    %cst_153 = arith.constant 0.797884583 : f32
    %365 = vector.broadcast %cst_153 : f32 to vector<16x512xf32>
    %366 = arith.mulf %365, %364 : vector<16x512xf32>
    %367 = math.tanh %366 : vector<16x512xf32>
    %cst_154 = arith.constant 1.000000e+00 : f32
    %368 = vector.broadcast %cst_154 : f32 to vector<16x512xf32>
    %369 = arith.addf %368, %367 : vector<16x512xf32>
    %cst_155 = arith.constant 5.000000e-01 : f32
    %370 = vector.broadcast %cst_155 : f32 to vector<16x512xf32>
    %371 = arith.mulf %370, %369 : vector<16x512xf32>
    %372 = arith.mulf %359, %371 : vector<16x512xf32>
    %c1_156 = arith.constant 1 : index
    %c0_157 = arith.constant 0 : index
    %c0_158 = arith.constant 0 : index
    %373 = vector.load %arg14[%c1_156, %c0_157, %c0_158] : memref<2x512x128xbf16, #tpu.memory_space<vmem>>, vector<1x512x128xbf16>
    %374 = vector.shape_cast %373 : vector<1x512x128xbf16> to vector<512x128xbf16>
    %c1_159 = arith.constant 1 : index
    %c0_160 = arith.constant 0 : index
    %c0_161 = arith.constant 0 : index
    %375 = vector.load %arg15[%c1_159, %c0_160, %c0_161] : memref<2x1x128xf32, #tpu.memory_space<vmem>>, vector<1x1x128xf32>
    %376 = vector.shape_cast %375 : vector<1x1x128xf32> to vector<1x128xf32>
    %377 = arith.truncf %372 : vector<16x512xf32> to vector<16x512xbf16>
    %cst_162 = arith.constant dense<0.000000e+00> : vector<16x128xf32>
    %378 = tpu.matmul %377, %374, %cst_162 {dimension_numbers = #tpu.dot_dimension_numbers<[1], [0], [0], [1], [0, 0, 1, 1], [], []>} : vector<16x512xbf16>, vector<512x128xbf16>, vector<16x128xf32> -> vector<16x128xf32>
    %379 = vector.broadcast %376 : vector<1x128xf32> to vector<16x128xf32>
    %380 = arith.addf %378, %379 : vector<16x128xf32>
    %381 = arith.addf %327, %380 : vector<16x128xf32>
    %c0_163 = arith.constant 0 : index
    %c0_164 = arith.constant 0 : index
    %382 = vector.load %arg16[%c0_163, %c0_164] : memref<1x128xf32, #tpu.memory_space<vmem>>, vector<1x128xf32>
    %c0_165 = arith.constant 0 : index
    %c0_166 = arith.constant 0 : index
    %383 = vector.load %arg17[%c0_165, %c0_166] : memref<1x128xf32, #tpu.memory_space<vmem>>, vector<1x128xf32>
    %cst_167 = arith.constant dense<0.000000e+00> : vector<16xf32>
    %384 = vector.multi_reduction <add>, %381, %cst_167 [1] : vector<16x128xf32> to vector<16xf32>
    %385 = vector.shape_cast %384 : vector<16xf32> to vector<16x1xf32>
    %cst_168 = arith.constant 1.280000e+02 : f32
    %386 = vector.broadcast %cst_168 : f32 to vector<16x1xf32>
    %387 = arith.divf %385, %386 : vector<16x1xf32>
    %388 = vector.broadcast %387 : vector<16x1xf32> to vector<16x128xf32>
    %389 = arith.subf %381, %388 : vector<16x128xf32>
    %390 = arith.mulf %389, %389 : vector<16x128xf32>
    %cst_169 = arith.constant dense<0.000000e+00> : vector<16xf32>
    %391 = vector.multi_reduction <add>, %390, %cst_169 [1] : vector<16x128xf32> to vector<16xf32>
    %392 = vector.shape_cast %391 : vector<16xf32> to vector<16x1xf32>
    %cst_170 = arith.constant 1.280000e+02 : f32
    %393 = vector.broadcast %cst_170 : f32 to vector<16x1xf32>
    %394 = arith.divf %392, %393 : vector<16x1xf32>
    %cst_171 = arith.constant 9.99999997E-7 : f32
    %395 = vector.broadcast %cst_171 : f32 to vector<16x1xf32>
    %396 = arith.addf %394, %395 : vector<16x1xf32>
    %397 = math.rsqrt %396 : vector<16x1xf32>
    %398 = vector.broadcast %397 : vector<16x1xf32> to vector<16x128xf32>
    %399 = arith.mulf %389, %398 : vector<16x128xf32>
    %400 = vector.broadcast %382 : vector<1x128xf32> to vector<16x128xf32>
    %401 = arith.mulf %399, %400 : vector<16x128xf32>
    %402 = vector.broadcast %383 : vector<1x128xf32> to vector<16x128xf32>
    %403 = arith.addf %401, %402 : vector<16x128xf32>
    %404 = vector.shape_cast %403 : vector<16x128xf32> to vector<2x8x128xf32>
    %c0_172 = arith.constant 0 : index
    %c0_173 = arith.constant 0 : index
    %c0_174 = arith.constant 0 : index
    %405 = vector.load %arg22[%c0_172, %c0_173, %c0_174] : memref<2x8x128xf32, #tpu.memory_space<vmem>>, vector<2x8x128xf32>
    tpu.vector_store %arg22[%c0_172, %c0_173, %c0_174], %404 {strides = array<i32>} : memref<2x8x128xf32, #tpu.memory_space<vmem>>, vector<2x8x128xf32>,
    %406 = vector.broadcast %7 : vector<1x8x1xf32> to vector<2x8x128xf32>
    %407 = arith.mulf %404, %406 : vector<2x8x128xf32>
    %cst_175 = arith.constant dense<0.000000e+00> : vector<2x128xf32>
    %408 = vector.multi_reduction <add>, %407, %cst_175 [1] : vector<2x8x128xf32> to vector<2x128xf32>
    %cst_176 = arith.constant 2.000000e-01 : f32
    %409 = vector.broadcast %cst_176 : f32 to vector<2x128xf32>
    %410 = arith.mulf %408, %409 : vector<2x128xf32>
    %c0_177 = arith.constant 0 : index
    %c0_178 = arith.constant 0 : index
    %411 = vector.load %arg18[%c0_177, %c0_178] : memref<128x128xbf16, #tpu.memory_space<vmem>>, vector<128x128xbf16>
    %c0_179 = arith.constant 0 : index
    %c0_180 = arith.constant 0 : index
    %412 = vector.load %arg19[%c0_179, %c0_180] : memref<1x128xf32, #tpu.memory_space<vmem>>, vector<1x128xf32>
    %413 = arith.truncf %410 : vector<2x128xf32> to vector<2x128xbf16>
    %cst_181 = arith.constant dense<0.000000e+00> : vector<2x128xf32>
    %414 = tpu.matmul %413, %411, %cst_181 {dimension_numbers = #tpu.dot_dimension_numbers<[1], [0], [0], [1], [0, 0, 1, 1], [], []>} : vector<2x128xbf16>, vector<128x128xbf16>, vector<2x128xf32> -> vector<2x128xf32>
    %415 = vector.broadcast %412 : vector<1x128xf32> to vector<2x128xf32>
    %416 = arith.addf %414, %415 : vector<2x128xf32>
    %cst_182 = arith.constant 0.000000e+00 : f32
    %417 = vector.broadcast %cst_182 : f32 to vector<2x128xf32>
    %418 = arith.maximumf %416, %417 : vector<2x128xf32>
    %c0_183 = arith.constant 0 : index
    %c0_184 = arith.constant 0 : index
    %419 = vector.load %arg20[%c0_183, %c0_184] : memref<128x128xbf16, #tpu.memory_space<vmem>>, vector<128x128xbf16>
    %c0_185 = arith.constant 0 : index
    %c0_186 = arith.constant 0 : index
    %420 = vector.load %arg21[%c0_185, %c0_186] : memref<1x128xf32, #tpu.memory_space<vmem>>, vector<1x128xf32>
    %421 = arith.truncf %418 : vector<2x128xf32> to vector<2x128xbf16>
    %cst_187 = arith.constant dense<0.000000e+00> : vector<2x128xf32>
    %422 = tpu.matmul %421, %419, %cst_187 {dimension_numbers = #tpu.dot_dimension_numbers<[1], [0], [0], [1], [0, 0, 1, 1], [], []>} : vector<2x128xbf16>, vector<128x128xbf16>, vector<2x128xf32> -> vector<2x128xf32>
    %423 = vector.broadcast %420 : vector<1x128xf32> to vector<2x128xf32>
    %424 = arith.addf %422, %423 : vector<2x128xf32>
    %425 = vector.shape_cast %424 : vector<2x128xf32> to vector<2x1x128xf32>
    %c0_188 = arith.constant 0 : index
    %c0_189 = arith.constant 0 : index
    %c0_190 = arith.constant 0 : index
    %426 = vector.load %arg23[%c0_188, %c0_189, %c0_190] : memref<2x1x128xf32, #tpu.memory_space<vmem>>, vector<2x1x128xf32>
    tpu.vector_store %arg23[%c0_188, %c0_189, %c0_190], %425 {strides = array<i32>} : memref<2x1x128xf32, #tpu.memory_space<vmem>>, vector<2x1x128xf32>,
    return
  }
  func.func @transform_0(%arg0: i32) -> (i32, i32, i32) {
    %c0_i32 = arith.constant 0 : i32
    %c0_i32_0 = arith.constant 0 : i32
    %c0_i32_1 = arith.constant 0 : i32
    return %arg0, %c0_i32, %c0_i32_0 : i32, i32, i32
  }
  func.func @transform_1(%arg0: i32) -> (i32, i32, i32) {
    %c0_i32 = arith.constant 0 : i32
    %c0_i32_0 = arith.constant 0 : i32
    %c0_i32_1 = arith.constant 0 : i32
    %c0_i32_2 = arith.constant 0 : i32
    return %c0_i32, %c0_i32_0, %c0_i32_1 : i32, i32, i32
  }
  func.func @transform_2(%arg0: i32) -> (i32, i32) {
    %c0_i32 = arith.constant 0 : i32
    %c0_i32_0 = arith.constant 0 : i32
    %c0_i32_1 = arith.constant 0 : i32
    return %c0_i32, %c0_i32_0 : i32, i32
  }
  func.func @transform_3(%arg0: i32) -> (i32, i32, i32) {
    %c0_i32 = arith.constant 0 : i32
    %c0_i32_0 = arith.constant 0 : i32
    %c0_i32_1 = arith.constant 0 : i32
    %c0_i32_2 = arith.constant 0 : i32
    return %c0_i32, %c0_i32_0, %c0_i32_1 : i32, i32, i32
  }
  func.func @transform_4(%arg0: i32) -> (i32, i32, i32) {
    %c0_i32 = arith.constant 0 : i32
    %c0_i32_0 = arith.constant 0 : i32
    %c0_i32_1 = arith.constant 0 : i32
    %c0_i32_2 = arith.constant 0 : i32
    return %c0_i32, %c0_i32_0, %c0_i32_1 : i32, i32, i32
  }
  func.func @transform_5(%arg0: i32) -> (i32, i32, i32) {
    %c0_i32 = arith.constant 0 : i32
    %c0_i32_0 = arith.constant 0 : i32
    %c0_i32_1 = arith.constant 0 : i32
    %c0_i32_2 = arith.constant 0 : i32
    return %c0_i32, %c0_i32_0, %c0_i32_1 : i32, i32, i32
  }
  func.func @transform_6(%arg0: i32) -> (i32, i32, i32) {
    %c0_i32 = arith.constant 0 : i32
    %c0_i32_0 = arith.constant 0 : i32
    %c0_i32_1 = arith.constant 0 : i32
    %c0_i32_2 = arith.constant 0 : i32
    return %c0_i32, %c0_i32_0, %c0_i32_1 : i32, i32, i32
  }
  func.func @transform_7(%arg0: i32) -> (i32, i32, i32) {
    %c0_i32 = arith.constant 0 : i32
    %c0_i32_0 = arith.constant 0 : i32
    %c0_i32_1 = arith.constant 0 : i32
    %c0_i32_2 = arith.constant 0 : i32
    return %c0_i32, %c0_i32_0, %c0_i32_1 : i32, i32, i32
  }
  func.func @transform_8(%arg0: i32) -> (i32, i32, i32) {
    %c0_i32 = arith.constant 0 : i32
    %c0_i32_0 = arith.constant 0 : i32
    %c0_i32_1 = arith.constant 0 : i32
    %c0_i32_2 = arith.constant 0 : i32
    return %c0_i32, %c0_i32_0, %c0_i32_1 : i32, i32, i32
  }
  func.func @transform_9(%arg0: i32) -> (i32, i32, i32) {
    %c0_i32 = arith.constant 0 : i32
    %c0_i32_0 = arith.constant 0 : i32
    %c0_i32_1 = arith.constant 0 : i32
    %c0_i32_2 = arith.constant 0 : i32
    return %c0_i32, %c0_i32_0, %c0_i32_1 : i32, i32, i32
  }
  func.func @transform_10(%arg0: i32) -> (i32, i32, i32) {
    %c0_i32 = arith.constant 0 : i32
    %c0_i32_0 = arith.constant 0 : i32
    %c0_i32_1 = arith.constant 0 : i32
    %c0_i32_2 = arith.constant 0 : i32
    return %c0_i32, %c0_i32_0, %c0_i32_1 : i32, i32, i32
  }
  func.func @transform_11(%arg0: i32) -> (i32, i32, i32) {
    %c0_i32 = arith.constant 0 : i32
    %c0_i32_0 = arith.constant 0 : i32
    %c0_i32_1 = arith.constant 0 : i32
    %c0_i32_2 = arith.constant 0 : i32
    return %c0_i32, %c0_i32_0, %c0_i32_1 : i32, i32, i32
  }
  func.func @transform_12(%arg0: i32) -> (i32, i32, i32) {
    %c0_i32 = arith.constant 0 : i32
    %c0_i32_0 = arith.constant 0 : i32
    %c0_i32_1 = arith.constant 0 : i32
    %c0_i32_2 = arith.constant 0 : i32
    return %c0_i32, %c0_i32_0, %c0_i32_1 : i32, i32, i32
  }
  func.func @transform_13(%arg0: i32) -> (i32, i32, i32) {
    %c0_i32 = arith.constant 0 : i32
    %c0_i32_0 = arith.constant 0 : i32
    %c0_i32_1 = arith.constant 0 : i32
    %c0_i32_2 = arith.constant 0 : i32
    return %c0_i32, %c0_i32_0, %c0_i32_1 : i32, i32, i32
  }
  func.func @transform_14(%arg0: i32) -> (i32, i32, i32) {
    %c0_i32 = arith.constant 0 : i32
    %c0_i32_0 = arith.constant 0 : i32
    %c0_i32_1 = arith.constant 0 : i32
    %c0_i32_2 = arith.constant 0 : i32
    return %c0_i32, %c0_i32_0, %c0_i32_1 : i32, i32, i32
  }
  func.func @transform_15(%arg0: i32) -> (i32, i32) {
    %c0_i32 = arith.constant 0 : i32
    %c0_i32_0 = arith.constant 0 : i32
    %c0_i32_1 = arith.constant 0 : i32
    return %c0_i32, %c0_i32_0 : i32, i32
  }
  func.func @transform_16(%arg0: i32) -> (i32, i32) {
    %c0_i32 = arith.constant 0 : i32
    %c0_i32_0 = arith.constant 0 : i32
    %c0_i32_1 = arith.constant 0 : i32
    return %c0_i32, %c0_i32_0 : i32, i32
  }
  func.func @transform_17(%arg0: i32) -> (i32, i32) {
    %c0_i32 = arith.constant 0 : i32
    %c0_i32_0 = arith.constant 0 : i32
    %c0_i32_1 = arith.constant 0 : i32
    return %c0_i32, %c0_i32_0 : i32, i32
  }
  func.func @transform_18(%arg0: i32) -> (i32, i32) {
    %c0_i32 = arith.constant 0 : i32
    %c0_i32_0 = arith.constant 0 : i32
    %c0_i32_1 = arith.constant 0 : i32
    return %c0_i32, %c0_i32_0 : i32, i32
  }
  func.func @transform_19(%arg0: i32) -> (i32, i32) {
    %c0_i32 = arith.constant 0 : i32
    %c0_i32_0 = arith.constant 0 : i32
    %c0_i32_1 = arith.constant 0 : i32
    return %c0_i32, %c0_i32_0 : i32, i32
  }
  func.func @transform_20(%arg0: i32) -> (i32, i32) {
    %c0_i32 = arith.constant 0 : i32
    %c0_i32_0 = arith.constant 0 : i32
    %c0_i32_1 = arith.constant 0 : i32
    return %c0_i32, %c0_i32_0 : i32, i32
  }
  func.func @transform_21(%arg0: i32) -> (i32, i32, i32) {
    %c0_i32 = arith.constant 0 : i32
    %c0_i32_0 = arith.constant 0 : i32
    %c0_i32_1 = arith.constant 0 : i32
    return %arg0, %c0_i32, %c0_i32_0 : i32, i32, i32
  }
  func.func @transform_22(%arg0: i32) -> (i32, i32, i32) {
    %c0_i32 = arith.constant 0 : i32
    %c0_i32_0 = arith.constant 0 : i32
    %c0_i32_1 = arith.constant 0 : i32
    return %arg0, %c0_i32, %c0_i32_0 : i32, i32, i32
  }
}

</mosaic_0001>

<llo_original>
// kernel: swin_model_forward.1
$region0: #{swin_model_forward.1}
  #allocation0 [shape = 'u32[]', space=smem, size = 0x4, offset = 0x4, fixed_abs, tag = 'smem constant byte address 0x4 - core index']
  #allocation1 [shape = 'u32[72,128]{1,0:T(1,128)}', space=vmem, size = 0x9000, scoped, tag = 'internal scratch']
  %s0 = inlined_call_operand.vmem [shape: f32[4,8,768], index: 0, kind: input, shape index: {}]
  %s1 = inlined_call_operand.vmem [shape: f32[1,8,128], index: 1, kind: input, shape index: {}]
  %s2 = inlined_call_operand.vmem [shape: bf16[768,128], index: 2, kind: input, shape index: {}]
  %s3 = inlined_call_operand.vmem [shape: f32[2,1,128], index: 3, kind: input, shape index: {}]
  %s4 = inlined_call_operand.vmem [shape: f32[2,1,128], index: 4, kind: input, shape index: {}]
  %s5 = inlined_call_operand.vmem [shape: bf16[2,128,384], index: 5, kind: input, shape index: {}]
  %s6 = inlined_call_operand.vmem [shape: f32[2,1,384], index: 6, kind: input, shape index: {}]
  %s7 = inlined_call_operand.vmem [shape: bf16[2,128,128], index: 7, kind: input, shape index: {}]
  %s8 = inlined_call_operand.vmem [shape: f32[2,1,128], index: 8, kind: input, shape index: {}]
  %s9 = inlined_call_operand.vmem [shape: f32[2,1,128], index: 9, kind: input, shape index: {}]
  %s10 = inlined_call_operand.vmem [shape: f32[2,1,128], index: 10, kind: input, shape index: {}]
  %s11 = inlined_call_operand.vmem [shape: bf16[2,128,512], index: 11, kind: input, shape index: {}]
  %s12 = inlined_call_operand.vmem [shape: f32[2,1,512], index: 12, kind: input, shape index: {}]
  %s13 = inlined_call_operand.vmem [shape: bf16[2,512,128], index: 13, kind: input, shape index: {}]
  %s14 = inlined_call_operand.vmem [shape: f32[2,1,128], index: 14, kind: input, shape index: {}]
  %s15 = inlined_call_operand.vmem [shape: f32[1,128], index: 15, kind: input, shape index: {}]
  %s16 = inlined_call_operand.vmem [shape: f32[1,128], index: 16, kind: input, shape index: {}]
  %s17 = inlined_call_operand.vmem [shape: bf16[128,128], index: 17, kind: input, shape index: {}]
  %s18 = inlined_call_operand.vmem [shape: f32[1,128], index: 18, kind: input, shape index: {}]
  %s19 = inlined_call_operand.vmem [shape: bf16[128,128], index: 19, kind: input, shape index: {}]
  %s20 = inlined_call_operand.vmem [shape: f32[1,128], index: 20, kind: input, shape index: {}]
  %s21 = inlined_call_operand.vmem [shape: f32[4,8,128], index: 21, kind: output, shape index: {0}]
  %s22 = inlined_call_operand.vmem [shape: f32[4,1,128], index: 22, kind: output, shape index: {1}]
  %23 = xla_tuple %s21, %s22
  %s24 = sld [smem:[#allocation0]]
  $region125: #{swin_model_forward.1} parent=0
    _
  %s26 = ssub.s32 1, %s24
  %s27 = scalar_select 0, %s26, %s24
  loop: start=0, step=1, limit=4
  $region2: #{swin_model_forward.1} parent=0 // loop_pre_header
    _
  $region3: #{swin_model_forward.1} parent=0 // loop_header
    %s29 = sphi 0, %s33
    %p30 = scmp.ge.s32.totalorder %s29, 4
    %s39 = sphi 0, %s41
    %s42 = sphi 0, %s39
    %s43 = sphi 0, %s42
    %s59 = sphi 0, %s43
    %s63 = sphi 0, %s63
    %s65 = sphi 0, %s63
    %s66 = sphi 0, %s65
    %s80 = sphi 0, %s66
    %s84 = sphi 0, %s84
    %s86 = sphi 0, %s84
    %s87 = sphi 0, %s86
    %s101 = sphi 0, %s87
    %s105 = sphi 0, %s105
    %s107 = sphi 0, %s105
    %s108 = sphi 0, %s107
    %s122 = sphi 0, %s108
    %s126 = sphi 0, %s126
    %s128 = sphi 0, %s126
    %s129 = sphi 0, %s128
    %s143 = sphi 0, %s129
    %s147 = sphi 0, %s147
    %s149 = sphi 0, %s147
    %s150 = sphi 0, %s149
    %s164 = sphi 0, %s150
    %s168 = sphi 0, %s168
    %s170 = sphi 0, %s168
    %s171 = sphi 0, %s170
    %s185 = sphi 0, %s171
    %s189 = sphi 0, %s189
    %s191 = sphi 0, %s189
    %s192 = sphi 0, %s191
    %s206 = sphi 0, %s192
    %s210 = sphi 0, %s210
    %s212 = sphi 0, %s210
    %s213 = sphi 0, %s212
    %s227 = sphi 0, %s213
    %s231 = sphi 0, %s231
    %s233 = sphi 0, %s231
    %s234 = sphi 0, %s233
    %s248 = sphi 0, %s234
    %s252 = sphi 0, %s252
    %s254 = sphi 0, %s252
    %s255 = sphi 0, %s254
    %s269 = sphi 0, %s255
    %s273 = sphi 0, %s273
    %s275 = sphi 0, %s273
    %s276 = sphi 0, %s275
    %s290 = sphi 0, %s276
    %s294 = sphi 0, %s294
    %s296 = sphi 0, %s294
    %s297 = sphi 0, %s296
    %s311 = sphi 0, %s297
    %s315 = sphi 0, %s315
    %s317 = sphi 0, %s315
    %s318 = sphi 0, %s317
    %s332 = sphi 0, %s318
    %s336 = sphi 0, %s336
    %s338 = sphi 0, %s336
    %s339 = sphi 0, %s338
    %s353 = sphi 0, %s339
    %s357 = sphi 0, %s357
    %s359 = sphi 0, %s357
    %s360 = sphi 0, %s359
    %s374 = sphi 0, %s360
    %s378 = sphi 0, %s378
    %s380 = sphi 0, %s378
    %s381 = sphi 0, %s380
    %s395 = sphi 0, %s381
    %s399 = sphi 0, %s399
    %s401 = sphi 0, %s399
    %s402 = sphi 0, %s401
    %s416 = sphi 0, %s402
    %s420 = sphi 0, %s420
    %s422 = sphi 0, %s420
    %s423 = sphi 0, %s422
    %s437 = sphi 0, %s423
    %s441 = sphi 0, %s441
    %s443 = sphi 0, %s441
    %s444 = sphi 0, %s443
    %s458 = sphi 0, %s444
    %s462 = sphi 0, %s462
    %s464 = sphi 0, %s462
    %s465 = sphi 0, %s464
    %s479 = sphi 0, %s465
    %s485 = sphi 0, %s487
    %s488 = sphi 0, %s485
    %s489 = sphi 0, %s488
    %s505 = sphi 0, %s489
    %s511 = sphi 0, %s513
    %s514 = sphi 0, %s511
    %s515 = sphi 0, %s514
    %s531 = sphi 0, %s515
  $region4: #{swin_model_forward.1} parent=0 // loop_header_branch
    %32 = sbr.rel (%p30) target = $region8
  $region5: #{swin_model_forward.1} parent=0 // loop_body
    %s34 = ssub.s32 %s29, 1
    %s35 = ssub.s32 %s29, 2
    %s36 = sadd.s32 %s29, 1
    %s37 = ssub.s32 %s29, %s36
    %p38 = scmp.eq.s32.totalorder %s37, 0
    %s40 = sadd.s32 %s39, 1
    %s41 = scalar_select %p38, %s39, %s40
    %p44 = pneg %p38
    %p45 = scmp.eq.s32.totalorder %s29, 1
    %p46 = por %p44, %p45
    %p47 = scmp.ne.s32.totalorder %s39, %s42
    %p48 = scmp.eq.s32.totalorder %s29, 0
    %p49 = por %p47, %p48
    %p50 = scmp.ne.s32.totalorder %s39, %s42
    %p51 = scmp.eq.s32.totalorder %s34, 1
    %p52 = por %p50, %p51
    %p53 = scmp.ne.s32.totalorder %s42, %s43
    %p54 = scmp.eq.s32.totalorder %s34, 0
    %p55 = por %p53, %p54
    %p56 = scmp.ne.s32.totalorder %s42, %s43
    %p57 = scmp.eq.s32.totalorder %s35, 1
    %p58 = por %p56, %p57
    %p60 = scmp.ne.s32.totalorder %s43, %s59
    %p61 = scmp.eq.s32.totalorder %s35, 0
    %p62 = por %p60, %p61
    %s64 = sadd.s32 %s63, 1
    %p67 = scmp.eq.s32.totalorder %s29, 1
    %p68 = scmp.ne.s32.totalorder %s63, %s65
    %p69 = scmp.eq.s32.totalorder %s29, 0
    %p70 = por %p68, %p69
    %p71 = scmp.ne.s32.totalorder %s63, %s65
    %p72 = scmp.eq.s32.totalorder %s34, 1
    %p73 = por %p71, %p72
    %p74 = scmp.ne.s32.totalorder %s65, %s66
    %p75 = scmp.eq.s32.totalorder %s34, 0
    %p76 = por %p74, %p75
    %p77 = scmp.ne.s32.totalorder %s65, %s66
    %p78 = scmp.eq.s32.totalorder %s35, 1
    %p79 = por %p77, %p78
    %p81 = scmp.ne.s32.totalorder %s66, %s80
    %p82 = scmp.eq.s32.totalorder %s35, 0
    %p83 = por %p81, %p82
    %s85 = sadd.s32 %s84, 1
    %p88 = scmp.eq.s32.totalorder %s29, 1
    %p89 = scmp.ne.s32.totalorder %s84, %s86
    %p90 = scmp.eq.s32.totalorder %s29, 0
    %p91 = por %p89, %p90
    %p92 = scmp.ne.s32.totalorder %s84, %s86
    %p93 = scmp.eq.s32.totalorder %s34, 1
    %p94 = por %p92, %p93
    %p95 = scmp.ne.s32.totalorder %s86, %s87
    %p96 = scmp.eq.s32.totalorder %s34, 0
    %p97 = por %p95, %p96
    %p98 = scmp.ne.s32.totalorder %s86, %s87
    %p99 = scmp.eq.s32.totalorder %s35, 1
    %p100 = por %p98, %p99
    %p102 = scmp.ne.s32.totalorder %s87, %s101
    %p103 = scmp.eq.s32.totalorder %s35, 0
    %p104 = por %p102, %p103
    %s106 = sadd.s32 %s105, 1
    %p109 = scmp.eq.s32.totalorder %s29, 1
    %p110 = scmp.ne.s32.totalorder %s105, %s107
    %p111 = scmp.eq.s32.totalorder %s29, 0
    %p112 = por %p110, %p111
    %p113 = scmp.ne.s32.totalorder %s105, %s107
    %p114 = scmp.eq.s32.totalorder %s34, 1
    %p115 = por %p113, %p114
    %p116 = scmp.ne.s32.totalorder %s107, %s108
    %p117 = scmp.eq.s32.totalorder %s34, 0
    %p118 = por %p116, %p117
    %p119 = scmp.ne.s32.totalorder %s107, %s108
    %p120 = scmp.eq.s32.totalorder %s35, 1
    %p121 = por %p119, %p120
    %p123 = scmp.ne.s32.totalorder %s108, %s122
    %p124 = scmp.eq.s32.totalorder %s35, 0
    %p125 = por %p123, %p124
    %s127 = sadd.s32 %s126, 1
    %p130 = scmp.eq.s32.totalorder %s29, 1
    %p131 = scmp.ne.s32.totalorder %s126, %s128
    %p132 = scmp.eq.s32.totalorder %s29, 0
    %p133 = por %p131, %p132
    %p134 = scmp.ne.s32.totalorder %s126, %s128
    %p135 = scmp.eq.s32.totalorder %s34, 1
    %p136 = por %p134, %p135
    %p137 = scmp.ne.s32.totalorder %s128, %s129
    %p138 = scmp.eq.s32.totalorder %s34, 0
    %p139 = por %p137, %p138
    %p140 = scmp.ne.s32.totalorder %s128, %s129
    %p141 = scmp.eq.s32.totalorder %s35, 1
    %p142 = por %p140, %p141
    %p144 = scmp.ne.s32.totalorder %s129, %s143
    %p145 = scmp.eq.s32.totalorder %s35, 0
    %p146 = por %p144, %p145
    %s148 = sadd.s32 %s147, 1
    %p151 = scmp.eq.s32.totalorder %s29, 1
    %p152 = scmp.ne.s32.totalorder %s147, %s149
    %p153 = scmp.eq.s32.totalorder %s29, 0
    %p154 = por %p152, %p153
    %p155 = scmp.ne.s32.totalorder %s147, %s149
    %p156 = scmp.eq.s32.totalorder %s34, 1
    %p157 = por %p155, %p156
    %p158 = scmp.ne.s32.totalorder %s149, %s150
    %p159 = scmp.eq.s32.totalorder %s34, 0
    %p160 = por %p158, %p159
    %p161 = scmp.ne.s32.totalorder %s149, %s150
    %p162 = scmp.eq.s32.totalorder %s35, 1
    %p163 = por %p161, %p162
    %p165 = scmp.ne.s32.totalorder %s150, %s164
    %p166 = scmp.eq.s32.totalorder %s35, 0
    %p167 = por %p165, %p166
    %s169 = sadd.s32 %s168, 1
    %p172 = scmp.eq.s32.totalorder %s29, 1
    %p173 = scmp.ne.s32.totalorder %s168, %s170
    %p174 = scmp.eq.s32.totalorder %s29, 0
    %p175 = por %p173, %p174
    %p176 = scmp.ne.s32.totalorder %s168, %s170
    %p177 = scmp.eq.s32.totalorder %s34, 1
    %p178 = por %p176, %p177
    %p179 = scmp.ne.s32.totalorder %s170, %s171
    %p180 = scmp.eq.s32.totalorder %s34, 0
    %p181 = por %p179, %p180
    %p182 = scmp.ne.s32.totalorder %s170, %s171
    %p183 = scmp.eq.s32.totalorder %s35, 1
    %p184 = por %p182, %p183
    %p186 = scmp.ne.s32.totalorder %s171, %s185
    %p187 = scmp.eq.s32.totalorder %s35, 0
    %p188 = por %p186, %p187
    %s190 = sadd.s32 %s189, 1
    %p193 = scmp.eq.s32.totalorder %s29, 1
    %p194 = scmp.ne.s32.totalorder %s189, %s191
    %p195 = scmp.eq.s32.totalorder %s29, 0
    %p196 = por %p194, %p195
    %p197 = scmp.ne.s32.totalorder %s189, %s191
    %p198 = scmp.eq.s32.totalorder %s34, 1
    %p199 = por %p197, %p198
    %p200 = scmp.ne.s32.totalorder %s191, %s192
    %p201 = scmp.eq.s32.totalorder %s34, 0
    %p202 = por %p200, %p201
    %p203 = scmp.ne.s32.totalorder %s191, %s192
    %p204 = scmp.eq.s32.totalorder %s35, 1
    %p205 = por %p203, %p204
    %p207 = scmp.ne.s32.totalorder %s192, %s206
    %p208 = scmp.eq.s32.totalorder %s35, 0
    %p209 = por %p207, %p208
    %s211 = sadd.s32 %s210, 1
    %p214 = scmp.eq.s32.totalorder %s29, 1
    %p215 = scmp.ne.s32.totalorder %s210, %s212
    %p216 = scmp.eq.s32.totalorder %s29, 0
    %p217 = por %p215, %p216
    %p218 = scmp.ne.s32.totalorder %s210, %s212
    %p219 = scmp.eq.s32.totalorder %s34, 1
    %p220 = por %p218, %p219
    %p221 = scmp.ne.s32.totalorder %s212, %s213
    %p222 = scmp.eq.s32.totalorder %s34, 0
    %p223 = por %p221, %p222
    %p224 = scmp.ne.s32.totalorder %s212, %s213
    %p225 = scmp.eq.s32.totalorder %s35, 1
    %p226 = por %p224, %p225
    %p228 = scmp.ne.s32.totalorder %s213, %s227
    %p229 = scmp.eq.s32.totalorder %s35, 0
    %p230 = por %p228, %p229
    %s232 = sadd.s32 %s231, 1
    %p235 = scmp.eq.s32.totalorder %s29, 1
    %p236 = scmp.ne.s32.totalorder %s231, %s233
    %p237 = scmp.eq.s32.totalorder %s29, 0
    %p238 = por %p236, %p237
    %p239 = scmp.ne.s32.totalorder %s231, %s233
    %p240 = scmp.eq.s32.totalorder %s34, 1
    %p241 = por %p239, %p240
    %p242 = scmp.ne.s32.totalorder %s233, %s234
    %p243 = scmp.eq.s32.totalorder %s34, 0
    %p244 = por %p242, %p243
    %p245 = scmp.ne.s32.totalorder %s233, %s234
    %p246 = scmp.eq.s32.totalorder %s35, 1
    %p247 = por %p245, %p246
    %p249 = scmp.ne.s32.totalorder %s234, %s248
    %p250 = scmp.eq.s32.totalorder %s35, 0
    %p251 = por %p249, %p250
    %s253 = sadd.s32 %s252, 1
    %p256 = scmp.eq.s32.totalorder %s29, 1
    %p257 = scmp.ne.s32.totalorder %s252, %s254
    %p258 = scmp.eq.s32.totalorder %s29, 0
    %p259 = por %p257, %p258
    %p260 = scmp.ne.s32.totalorder %s252, %s254
    %p261 = scmp.eq.s32.totalorder %s34, 1
    %p262 = por %p260, %p261
    %p263 = scmp.ne.s32.totalorder %s254, %s255
    %p264 = scmp.eq.s32.totalorder %s34, 0
    %p265 = por %p263, %p264
    %p266 = scmp.ne.s32.totalorder %s254, %s255
    %p267 = scmp.eq.s32.totalorder %s35, 1
    %p268 = por %p266, %p267
    %p270 = scmp.ne.s32.totalorder %s255, %s269
    %p271 = scmp.eq.s32.totalorder %s35, 0
    %p272 = por %p270, %p271
    %s274 = sadd.s32 %s273, 1
    %p277 = scmp.eq.s32.totalorder %s29, 1
    %p278 = scmp.ne.s32.totalorder %s273, %s275
    %p279 = scmp.eq.s32.totalorder %s29, 0
    %p280 = por %p278, %p279
    %p281 = scmp.ne.s32.totalorder %s273, %s275
    %p282 = scmp.eq.s32.totalorder %s34, 1
    %p283 = por %p281, %p282
    %p284 = scmp.ne.s32.totalorder %s275, %s276
    %p285 = scmp.eq.s32.totalorder %s34, 0
    %p286 = por %p284, %p285
    %p287 = scmp.ne.s32.totalorder %s275, %s276
    %p288 = scmp.eq.s32.totalorder %s35, 1
    %p289 = por %p287, %p288
    %p291 = scmp.ne.s32.totalorder %s276, %s290
    %p292 = scmp.eq.s32.totalorder %s35, 0
    %p293 = por %p291, %p292
    %s295 = sadd.s32 %s294, 1
    %p298 = scmp.eq.s32.totalorder %s29, 1
    %p299 = scmp.ne.s32.totalorder %s294, %s296
    %p300 = scmp.eq.s32.totalorder %s29, 0
    %p301 = por %p299, %p300
    %p302 = scmp.ne.s32.totalorder %s294, %s296
    %p303 = scmp.eq.s32.totalorder %s34, 1
    %p304 = por %p302, %p303
    %p305 = scmp.ne.s32.totalorder %s296, %s297
    %p306 = scmp.eq.s32.totalorder %s34, 0
    %p307 = por %p305, %p306
    %p308 = scmp.ne.s32.totalorder %s296, %s297
    %p309 = scmp.eq.s32.totalorder %s35, 1
    %p310 = por %p308, %p309
    %p312 = scmp.ne.s32.totalorder %s297, %s311
    %p313 = scmp.eq.s32.totalorder %s35, 0
    %p314 = por %p312, %p313
    %s316 = sadd.s32 %s315, 1
    %p319 = scmp.eq.s32.totalorder %s29, 1
    %p320 = scmp.ne.s32.totalorder %s315, %s317
    %p321 = scmp.eq.s32.totalorder %s29, 0
    %p322 = por %p320, %p321
    %p323 = scmp.ne.s32.totalorder %s315, %s317
    %p324 = scmp.eq.s32.totalorder %s34, 1
    %p325 = por %p323, %p324
    %p326 = scmp.ne.s32.totalorder %s317, %s318
    %p327 = scmp.eq.s32.totalorder %s34, 0
    %p328 = por %p326, %p327
    %p329 = scmp.ne.s32.totalorder %s317, %s318
    %p330 = scmp.eq.s32.totalorder %s35, 1
    %p331 = por %p329, %p330
    %p333 = scmp.ne.s32.totalorder %s318, %s332
    %p334 = scmp.eq.s32.totalorder %s35, 0
    %p335 = por %p333, %p334
    %s337 = sadd.s32 %s336, 1
    %p340 = scmp.eq.s32.totalorder %s29, 1
    %p341 = scmp.ne.s32.totalorder %s336, %s338
    %p342 = scmp.eq.s32.totalorder %s29, 0
    %p343 = por %p341, %p342
    %p344 = scmp.ne.s32.totalorder %s336, %s338
    %p345 = scmp.eq.s32.totalorder %s34, 1
    %p346 = por %p344, %p345
    %p347 = scmp.ne.s32.totalorder %s338, %s339
    %p348 = scmp.eq.s32.totalorder %s34, 0
    %p349 = por %p347, %p348
    %p350 = scmp.ne.s32.totalorder %s338, %s339
    %p351 = scmp.eq.s32.totalorder %s35, 1
    %p352 = por %p350, %p351
    %p354 = scmp.ne.s32.totalorder %s339, %s353
    %p355 = scmp.eq.s32.totalorder %s35, 0
    %p356 = por %p354, %p355
    %s358 = sadd.s32 %s357, 1
    %p361 = scmp.eq.s32.totalorder %s29, 1
    %p362 = scmp.ne.s32.totalorder %s357, %s359
    %p363 = scmp.eq.s32.totalorder %s29, 0
    %p364 = por %p362, %p363
    %p365 = scmp.ne.s32.totalorder %s357, %s359
    %p366 = scmp.eq.s32.totalorder %s34, 1
    %p367 = por %p365, %p366
    %p368 = scmp.ne.s32.totalorder %s359, %s360
    %p369 = scmp.eq.s32.totalorder %s34, 0
    %p370 = por %p368, %p369
    %p371 = scmp.ne.s32.totalorder %s359, %s360
    %p372 = scmp.eq.s32.totalorder %s35, 1
    %p373 = por %p371, %p372
    %p375 = scmp.ne.s32.totalorder %s360, %s374
    %p376 = scmp.eq.s32.totalorder %s35, 0
    %p377 = por %p375, %p376
    %s379 = sadd.s32 %s378, 1
    %p382 = scmp.eq.s32.totalorder %s29, 1
    %p383 = scmp.ne.s32.totalorder %s378, %s380
    %p384 = scmp.eq.s32.totalorder %s29, 0
    %p385 = por %p383, %p384
    %p386 = scmp.ne.s32.totalorder %s378, %s380
    %p387 = scmp.eq.s32.totalorder %s34, 1
    %p388 = por %p386, %p387
    %p389 = scmp.ne.s32.totalorder %s380, %s381
    %p390 = scmp.eq.s32.totalorder %s34, 0
    %p391 = por %p389, %p390
    %p392 = scmp.ne.s32.totalorder %s380, %s381
    %p393 = scmp.eq.s32.totalorder %s35, 1
    %p394 = por %p392, %p393
    %p396 = scmp.ne.s32.totalorder %s381, %s395
    %p397 = scmp.eq.s32.totalorder %s35, 0
    %p398 = por %p396, %p397
    %s400 = sadd.s32 %s399, 1
    %p403 = scmp.eq.s32.totalorder %s29, 1
    %p404 = scmp.ne.s32.totalorder %s399, %s401
    %p405 = scmp.eq.s32.totalorder %s29, 0
    %p406 = por %p404, %p405
    %p407 = scmp.ne.s32.totalorder %s399, %s401
    %p408 = scmp.eq.s32.totalorder %s34, 1
    %p409 = por %p407, %p408
    %p410 = scmp.ne.s32.totalorder %s401, %s402
    %p411 = scmp.eq.s32.totalorder %s34, 0
    %p412 = por %p410, %p411
    %p413 = scmp.ne.s32.totalorder %s401, %s402
    %p414 = scmp.eq.s32.totalorder %s35, 1
    %p415 = por %p413, %p414
    %p417 = scmp.ne.s32.totalorder %s402, %s416
    %p418 = scmp.eq.s32.totalorder %s35, 0
    %p419 = por %p417, %p418
    %s421 = sadd.s32 %s420, 1
    %p424 = scmp.eq.s32.totalorder %s29, 1
    %p425 = scmp.ne.s32.totalorder %s420, %s422
    %p426 = scmp.eq.s32.totalorder %s29, 0
    %p427 = por %p425, %p426
    %p428 = scmp.ne.s32.totalorder %s420, %s422
    %p429 = scmp.eq.s32.totalorder %s34, 1
    %p430 = por %p428, %p429
    %p431 = scmp.ne.s32.totalorder %s422, %s423
    %p432 = scmp.eq.s32.totalorder %s34, 0
    %p433 = por %p431, %p432
    %p434 = scmp.ne.s32.totalorder %s422, %s423
    %p435 = scmp.eq.s32.totalorder %s35, 1
    %p436 = por %p434, %p435
    %p438 = scmp.ne.s32.totalorder %s423, %s437
    %p439 = scmp.eq.s32.totalorder %s35, 0
    %p440 = por %p438, %p439
    %s442 = sadd.s32 %s441, 1
    %p445 = scmp.eq.s32.totalorder %s29, 1
    %p446 = scmp.ne.s32.totalorder %s441, %s443
    %p447 = scmp.eq.s32.totalorder %s29, 0
    %p448 = por %p446, %p447
    %p449 = scmp.ne.s32.totalorder %s441, %s443
    %p450 = scmp.eq.s32.totalorder %s34, 1
    %p451 = por %p449, %p450
    %p452 = scmp.ne.s32.totalorder %s443, %s444
    %p453 = scmp.eq.s32.totalorder %s34, 0
    %p454 = por %p452, %p453
    %p455 = scmp.ne.s32.totalorder %s443, %s444
    %p456 = scmp.eq.s32.totalorder %s35, 1
    %p457 = por %p455, %p456
    %p459 = scmp.ne.s32.totalorder %s444, %s458
    %p460 = scmp.eq.s32.totalorder %s35, 0
    %p461 = por %p459, %p460
    %s463 = sadd.s32 %s462, 1
    %p466 = scmp.eq.s32.totalorder %s29, 1
    %p467 = scmp.ne.s32.totalorder %s462, %s464
    %p468 = scmp.eq.s32.totalorder %s29, 0
    %p469 = por %p467, %p468
    %p470 = scmp.ne.s32.totalorder %s462, %s464
    %p471 = scmp.eq.s32.totalorder %s34, 1
    %p472 = por %p470, %p471
    %p473 = scmp.ne.s32.totalorder %s464, %s465
    %p474 = scmp.eq.s32.totalorder %s34, 0
    %p475 = por %p473, %p474
    %p476 = scmp.ne.s32.totalorder %s464, %s465
    %p477 = scmp.eq.s32.totalorder %s35, 1
    %p478 = por %p476, %p477
    %p480 = scmp.ne.s32.totalorder %s465, %s479
    %p481 = scmp.eq.s32.totalorder %s35, 0
    %p482 = por %p480, %p481
    %s483 = ssub.s32 %s29, %s36
    %p484 = scmp.eq.s32.totalorder %s483, 0
    %s486 = sadd.s32 %s485, 1
    %s487 = scalar_select %p484, %s485, %s486
    %p490 = pneg %p484
    %p491 = scmp.eq.s32.totalorder %s29, 1
    %p492 = por %p490, %p491
    %p493 = scmp.ne.s32.totalorder %s485, %s488
    %p494 = scmp.eq.s32.totalorder %s29, 0
    %p495 = por %p493, %p494
    %p496 = scmp.ne.s32.totalorder %s485, %s488
    %p497 = scmp.eq.s32.totalorder %s34, 1
    %p498 = por %p496, %p497
    %p499 = scmp.ne.s32.totalorder %s488, %s489
    %p500 = scmp.eq.s32.totalorder %s34, 0
    %p501 = por %p499, %p500
    %p502 = scmp.ne.s32.totalorder %s488, %s489
    %p503 = scmp.eq.s32.totalorder %s35, 1
    %p504 = por %p502, %p503
    %p506 = scmp.ne.s32.totalorder %s489, %s505
    %p507 = scmp.eq.s32.totalorder %s35, 0
    %p508 = por %p506, %p507
    %s509 = ssub.s32 %s29, %s36
    %p510 = scmp.eq.s32.totalorder %s509, 0
    %s512 = sadd.s32 %s511, 1
    %s513 = scalar_select %p510, %s511, %s512
    %p516 = pneg %p510
    %p517 = scmp.eq.s32.totalorder %s29, 1
    %p518 = por %p516, %p517
    %p519 = scmp.ne.s32.totalorder %s511, %s514
    %p520 = scmp.eq.s32.totalorder %s29, 0
    %p521 = por %p519, %p520
    %p522 = scmp.ne.s32.totalorder %s511, %s514
    %p523 = scmp.eq.s32.totalorder %s34, 1
    %p524 = por %p522, %p523
    %p525 = scmp.ne.s32.totalorder %s514, %s515
    %p526 = scmp.eq.s32.totalorder %s34, 0
    %p527 = por %p525, %p526
    %p528 = scmp.ne.s32.totalorder %s514, %s515
    %p529 = scmp.eq.s32.totalorder %s35, 1
    %p530 = por %p528, %p529
    %p532 = scmp.ne.s32.totalorder %s515, %s531
    %p533 = scmp.eq.s32.totalorder %s35, 0
    %p534 = por %p532, %p533
    %p535 = scmp.le.s32.totalorder 1, %s29
    %p536 = scmp.lt.s32.totalorder %s29, 3
    %p537 = pnand %p535, %p536
    %p538 = pneg %p537
    // Predicated region
    $region9: #{swin_model_forward.1} parent=5 // pred_check
      _
    $region10: #{swin_model_forward.1} parent=5 // pred_check_branch
      %540 = sbr.rel (%p537) target = $region12
    $region11: #{swin_model_forward.1} parent=5 // pred_region
      %s541 = ssub.s32 %s29, 1
      // Predicated region
      $region13: #{swin_model_forward.1} parent=11 // pred_check
        %p542 = pneg %p76
      $region14: #{swin_model_forward.1} parent=11 // pred_check_branch
        %544 = sbr.rel (%p542) target = $region16
      $region15: #{swin_model_forward.1} parent=11 // pred_region
        _
      $region16: #{swin_model_forward.1} parent=11 // pred_fallthru
        _
      // Predicated region
      $region17: #{swin_model_forward.1} parent=11 // pred_check
        %p545 = pneg %p97
      $region18: #{swin_model_forward.1} parent=11 // pred_check_branch
        %547 = sbr.rel (%p545) target = $region20
      $region19: #{swin_model_forward.1} parent=11 // pred_region
        _
      $region20: #{swin_model_forward.1} parent=11 // pred_fallthru
        _
      // Predicated region
      $region21: #{swin_model_forward.1} parent=11 // pred_check
        %p548 = pneg %p118
      $region22: #{swin_model_forward.1} parent=11 // pred_check_branch
        %550 = sbr.rel (%p548) target = $region24
      $region23: #{swin_model_forward.1} parent=11 // pred_region
        _
      $region24: #{swin_model_forward.1} parent=11 // pred_fallthru
        _
      // Predicated region
      $region25: #{swin_model_forward.1} parent=11 // pred_check
        %p551 = pneg %p139
      $region26: #{swin_model_forward.1} parent=11 // pred_check_branch
        %553 = sbr.rel (%p551) target = $region28
      $region27: #{swin_model_forward.1} parent=11 // pred_region
        _
      $region28: #{swin_model_forward.1} parent=11 // pred_fallthru
        _
      // Predicated region
      $region29: #{swin_model_forward.1} parent=11 // pred_check
        %p554 = pneg %p160
      $region30: #{swin_model_forward.1} parent=11 // pred_check_branch
        %556 = sbr.rel (%p554) target = $region32
      $region31: #{swin_model_forward.1} parent=11 // pred_region
        _
      $region32: #{swin_model_forward.1} parent=11 // pred_fallthru
        _
      // Predicated region
      $region33: #{swin_model_forward.1} parent=11 // pred_check
        %p557 = pneg %p181
      $region34: #{swin_model_forward.1} parent=11 // pred_check_branch
        %559 = sbr.rel (%p557) target = $region36
      $region35: #{swin_model_forward.1} parent=11 // pred_region
        _
      $region36: #{swin_model_forward.1} parent=11 // pred_fallthru
        _
      // Predicated region
      $region37: #{swin_model_forward.1} parent=11 // pred_check
        %p560 = pneg %p202
      $region38: #{swin_model_forward.1} parent=11 // pred_check_branch
        %562 = sbr.rel (%p560) target = $region40
      $region39: #{swin_model_forward.1} parent=11 // pred_region
        _
      $region40: #{swin_model_forward.1} parent=11 // pred_fallthru
        _
      // Predicated region
      $region41: #{swin_model_forward.1} parent=11 // pred_check
        %p563 = pneg %p223
      $region42: #{swin_model_forward.1} parent=11 // pred_check_branch
        %565 = sbr.rel (%p563) target = $region44
      $region43: #{swin_model_forward.1} parent=11 // pred_region
        _
      $region44: #{swin_model_forward.1} parent=11 // pred_fallthru
        _
      // Predicated region
      $region45: #{swin_model_forward.1} parent=11 // pred_check
        %p566 = pneg %p244
      $region46: #{swin_model_forward.1} parent=11 // pred_check_branch
        %568 = sbr.rel (%p566) target = $region48
      $region47: #{swin_model_forward.1} parent=11 // pred_region
        _
      $region48: #{swin_model_forward.1} parent=11 // pred_fallthru
        _
      // Predicated region
      $region49: #{swin_model_forward.1} parent=11 // pred_check
        %p569 = pneg %p265
      $region50: #{swin_model_forward.1} parent=11 // pred_check_branch
        %571 = sbr.rel (%p569) target = $region52
      $region51: #{swin_model_forward.1} parent=11 // pred_region
        _
      $region52: #{swin_model_forward.1} parent=11 // pred_fallthru
        _
      // Predicated region
      $region53: #{swin_model_forward.1} parent=11 // pred_check
        %p572 = pneg %p286
      $region54: #{swin_model_forward.1} parent=11 // pred_check_branch
        %574 = sbr.rel (%p572) target = $region56
      $region55: #{swin_model_forward.1} parent=11 // pred_region
        _
      $region56: #{swin_model_forward.1} parent=11 // pred_fallthru
        _
      // Predicated region
      $region57: #{swin_model_forward.1} parent=11 // pred_check
        %p575 = pneg %p307
      $region58: #{swin_model_forward.1} parent=11 // pred_check_branch
        %577 = sbr.rel (%p575) target = $region60
      $region59: #{swin_model_forward.1} parent=11 // pred_region
        _
      $region60: #{swin_model_forward.1} parent=11 // pred_fallthru
        _
      // Predicated region
      $region61: #{swin_model_forward.1} parent=11 // pred_check
        %p578 = pneg %p328
      $region62: #{swin_model_forward.1} parent=11 // pred_check_branch
        %580 = sbr.rel (%p578) target = $region64
      $region63: #{swin_model_forward.1} parent=11 // pred_region
        _
      $region64: #{swin_model_forward.1} parent=11 // pred_fallthru
        _
      // Predicated region
      $region65: #{swin_model_forward.1} parent=11 // pred_check
        %p581 = pneg %p349
      $region66: #{swin_model_forward.1} parent=11 // pred_check_branch
        %583 = sbr.rel (%p581) target = $region68
      $region67: #{swin_model_forward.1} parent=11 // pred_region
        _
      $region68: #{swin_model_forward.1} parent=11 // pred_fallthru
        _
      // Predicated region
      $region69: #{swin_model_forward.1} parent=11 // pred_check
        %p584 = pneg %p370
      $region70: #{swin_model_forward.1} parent=11 // pred_check_branch
        %586 = sbr.rel (%p584) target = $region72
      $region71: #{swin_model_forward.1} parent=11 // pred_region
        _
      $region72: #{swin_model_forward.1} parent=11 // pred_fallthru
        _
      // Predicated region
      $region73: #{swin_model_forward.1} parent=11 // pred_check
        %p587 = pneg %p391
      $region74: #{swin_model_forward.1} parent=11 // pred_check_branch
        %589 = sbr.rel (%p587) target = $region76
      $region75: #{swin_model_forward.1} parent=11 // pred_region
        _
      $region76: #{swin_model_forward.1} parent=11 // pred_fallthru
        _
      // Predicated region
      $region77: #{swin_model_forward.1} parent=11 // pred_check
        %p590 = pneg %p412
      $region78: #{swin_model_forward.1} parent=11 // pred_check_branch
        %592 = sbr.rel (%p590) target = $region80
      $region79: #{swin_model_forward.1} parent=11 // pred_region
        _
      $region80: #{swin_model_forward.1} parent=11 // pred_fallthru
        _
      // Predicated region
      $region81: #{swin_model_forward.1} parent=11 // pred_check
        %p593 = pneg %p433
      $region82: #{swin_model_forward.1} parent=11 // pred_check_branch
        %595 = sbr.rel (%p593) target = $region84
      $region83: #{swin_model_forward.1} parent=11 // pred_region
        _
      $region84: #{swin_model_forward.1} parent=11 // pred_fallthru
        _
      // Predicated region
      $region85: #{swin_model_forward.1} parent=11 // pred_check
        %p596 = pneg %p454
      $region86: #{swin_model_forward.1} parent=11 // pred_check_branch
        %598 = sbr.rel (%p596) target = $region88
      $region87: #{swin_model_forward.1} parent=11 // pred_region
        _
      $region88: #{swin_model_forward.1} parent=11 // pred_fallthru
        _
      // Predicated region
      $region89: #{swin_model_forward.1} parent=11 // pred_check
        %p599 = pneg %p475
      $region90: #{swin_model_forward.1} parent=11 // pred_check_branch
        %601 = sbr.rel (%p599) target = $region92
      $region91: #{swin_model_forward.1} parent=11 // pred_region
        _
      $region92: #{swin_model_forward.1} parent=11 // pred_fallthru
        _
    $region12: #{swin_model_forward.1} parent=5 // pred_fallthru
      _
    %p602 = scmp.lt.s32.totalorder %s29, 2
    // Predicated region
    $region93: #{swin_model_forward.1} parent=5 // pred_check
      %p603 = pneg %p602
    $region94: #{swin_model_forward.1} parent=5 // pred_check_branch
      %605 = sbr.rel (%p603) target = $region96
    $region95: #{swin_model_forward.1} parent=5 // pred_region
      // Predicated region
      $region97: #{swin_model_forward.1} parent=95 // pred_check
        %p606 = pneg %p49
      $region98: #{swin_model_forward.1} parent=95 // pred_check_branch
        %608 = sbr.rel (%p606) target = $region100
      $region99: #{swin_model_forward.1} parent=95 // pred_region
        %s609 = smul.u32 2, %s29
        %p610 = scmp.lt.s32.totalorder %s609, 3
        %s611 = scalar_select %p610, %s609, 3
        %s612 = smul.addr %s611, 6
        %s613 = smul.addr %s612, 8
        %s614 = scalar_lea.vmem %s0, %s613
        %s615 = smul.u32 2, %s29
      $region100: #{swin_model_forward.1} parent=95 // pred_fallthru
        _
    $region96: #{swin_model_forward.1} parent=5 // pred_fallthru
      _
    %p616 = scmp.le.s32.totalorder 1, %s29
    %p617 = scmp.lt.s32.totalorder %s29, 3
    %p618 = pnand %p616, %p617
    %p619 = pneg %p618
    // Predicated region
    $region101: #{swin_model_forward.1} parent=5 // pred_check
      _
    $region102: #{swin_model_forward.1} parent=5 // pred_check_branch
      %621 = sbr.rel (%p618) target = $region104
    $region103: #{swin_model_forward.1} parent=5 // pred_region
      %s622 = ssub.s32 %s29, 1
      %s623 = smul.u32 2, %s34
      %p624 = scmp.lt.s32.totalorder %s623, 3
      %s625 = scalar_select %p624, %s623, 3
      %s626 = smul.addr %s625, 6
      %s627 = smul.addr %s626, 8
      %s628 = scalar_lea.vmem %s0, %s627
      %p629 = pneg %p55
      %p630 = pneg %p52
      %p631 = pneg %p76
      %p632 = pneg %p73
      %p633 = pneg %p97
      %p634 = pneg %p94
      %p635 = pneg %p118
      %p636 = pneg %p115
      %p637 = pneg %p139
      %p638 = pneg %p136
      %p639 = pneg %p160
      %p640 = pneg %p157
      %p641 = pneg %p181
      %p642 = pneg %p178
      %p643 = pneg %p202
      %p644 = pneg %p199
      %p645 = pneg %p223
      %p646 = pneg %p220
      %p647 = pneg %p244
      %p648 = pneg %p241
      %p649 = pneg %p265
      %p650 = pneg %p262
      %p651 = pneg %p286
      %p652 = pneg %p283
      %p653 = pneg %p307
      %p654 = pneg %p304
      %p655 = pneg %p328
      %p656 = pneg %p325
      %p657 = pneg %p349
      %p658 = pneg %p346
      %p659 = pneg %p370
      %p660 = pneg %p367
      %p661 = pneg %p391
      %p662 = pneg %p388
      %p663 = pneg %p412
      %p664 = pneg %p409
      %p665 = pneg %p433
      %p666 = pneg %p430
      %p667 = pneg %p454
      %p668 = pneg %p451
      %p669 = pneg %p475
      %p670 = pneg %p472
      %p671 = pneg %p501
      %p672 = pneg %p498
      %s673 = smul.u32 2, %s34
      %p674 = scmp.lt.s32.totalorder %s673, 3
      %s675 = scalar_select %p674, %s673, 3
      %s676 = smul.addr %s675, 8
      %s677 = scalar_lea.vmem %s21, %s676
      %p678 = pneg %p527
      %p679 = pneg %p524
      %s680 = smul.u32 2, %s34
      %p681 = scmp.lt.s32.totalorder %s680, 3
      %s682 = scalar_select %p681, %s680, 3
      %s683 = scalar_lea.vmem %s22, %s682
      %s684 = smul.u32 2, %s34
      %p685 = scmp.lt.s32.totalorder %s684, 3
      %s686 = scalar_select %p685, %s684, 3
      %s687 = smul.addr %s686, 6
      %s688 = smul.addr %s687, 8
      %s689 = scalar_lea.vmem %s0, %s688
      %s690 = smul.u32 2, %s34
      %s691 = smul.u32 2, %s34
      %p692 = scmp.lt.s32.totalorder %s691, 3
      %s693 = scalar_select %p692, %s691, 3
      %s694 = smul.addr %s693, 8
      %s695 = scalar_lea.vmem %s21, %s694
      %s696 = smul.u32 2, %s34
      %s697 = smul.u32 2, %s34
      %p698 = scmp.lt.s32.totalorder %s697, 3
      %s699 = scalar_select %p698, %s697, 3
      %s700 = scalar_lea.vmem %s22, %s699
      %s701 = smul.u32 2, %s34
      %v702 = vlaneseq
      %v703 = vand.u32 %v702, 127
      %vm704 = vcmp.lt.s32.totalorder %v703, 5
      %v705 = vlaneseq
      %v706 = vshrl.u32 %v705, 7
      %vm707 = vcmp.lt.s32.totalorder %v706, 5
      %v708 = vsel %vm707, 1, 0
      %v709 = vcvt.s32.f32 %v708
      %v710 = vld [vmem:[%s689] sm:$0xff]
      %v711 = vld [vmem:[%s689 + $0x8] sm:$0xff]
      %v712 = vld [vmem:[%s689 + $0x10] sm:$0xff]
      %v713 = vld [vmem:[%s689 + $0x18] sm:$0xff]
      %v714 = vld [vmem:[%s689 + $0x20] sm:$0xff]
      %v715 = vld [vmem:[%s689 + $0x28] sm:$0xff]
      %v716 = vld [vmem:[%s689 + $0x30] sm:$0xff]
      %v717 = vld [vmem:[%s689 + $0x38] sm:$0xff]
      %v718 = vld [vmem:[%s689 + $0x40] sm:$0xff]
      %v719 = vld [vmem:[%s689 + $0x48] sm:$0xff]
      %v720 = vld [vmem:[%s689 + $0x50] sm:$0xff]
      %v721 = vld [vmem:[%s689 + $0x58] sm:$0xff]
      %v722 = vpack.c.bf16 %v716, %v710
      %v723 = vpack.c.bf16 %v717, %v711
      %v724 = vpack.c.bf16 %v718, %v712
      %v725 = vpack.c.bf16 %v719, %v713
      %v726 = vpack.c.bf16 %v720, %v714
      %v727 = vpack.c.bf16 %v721, %v715
      %v728 = vld [vmem:[%s2] sm:$0xf]
      %v729 = vld [vmem:[%s2 + $0x4] sm:$0xf]
      %v730 = vld [vmem:[%s2 + $0x8] sm:$0xf]
      %v731 = vld [vmem:[%s2 + $0xc] sm:$0xf]
      %v732 = vld [vmem:[%s2 + $0x10] sm:$0xf]
      %v733 = vld [vmem:[%s2 + $0x14] sm:$0xf]
      %v734 = vld [vmem:[%s2 + $0x18] sm:$0xf]
      %v735 = vld [vmem:[%s2 + $0x1c] sm:$0xf]
      %v736 = vld [vmem:[%s2 + $0x20] sm:$0xf]
      %v737 = vld [vmem:[%s2 + $0x24] sm:$0xf]
      %v738 = vld [vmem:[%s2 + $0x28] sm:$0xf]
      %v739 = vld [vmem:[%s2 + $0x2c] sm:$0xf]
      %v740 = vld [vmem:[%s2 + $0x30] sm:$0xf]
      %v741 = vld [vmem:[%s2 + $0x34] sm:$0xf]
      %v742 = vld [vmem:[%s2 + $0x38] sm:$0xf]
      %v743 = vld [vmem:[%s2 + $0x3c] sm:$0xf]
      %v744 = vld [vmem:[%s2 + $0x40] sm:$0xf]
      %v745 = vld [vmem:[%s2 + $0x44] sm:$0xf]
      %v746 = vld [vmem:[%s2 + $0x48] sm:$0xf]
      %v747 = vld [vmem:[%s2 + $0x4c] sm:$0xf]
      %v748 = vld [vmem:[%s2 + $0x50] sm:$0xf]
      %v749 = vld [vmem:[%s2 + $0x54] sm:$0xf]
      %v750 = vld [vmem:[%s2 + $0x58] sm:$0xf]
      %v751 = vld [vmem:[%s2 + $0x5c] sm:$0xf]
      %v752 = vld [vmem:[%s2 + $0x60] sm:$0xf]
      %v753 = vld [vmem:[%s2 + $0x64] sm:$0xf]
      %v754 = vld [vmem:[%s2 + $0x68] sm:$0xf]
      %v755 = vld [vmem:[%s2 + $0x6c] sm:$0xf]
      %v756 = vld [vmem:[%s2 + $0x70] sm:$0xf]
      %v757 = vld [vmem:[%s2 + $0x74] sm:$0xf]
      %v758 = vld [vmem:[%s2 + $0x78] sm:$0xf]
      %v759 = vld [vmem:[%s2 + $0x7c] sm:$0xf]
      %v760 = vld [vmem:[%s2 + $0x80] sm:$0xf]
      %v761 = vld [vmem:[%s2 + $0x84] sm:$0xf]
      %v762 = vld [vmem:[%s2 + $0x88] sm:$0xf]
      %v763 = vld [vmem:[%s2 + $0x8c] sm:$0xf]
      %v764 = vld [vmem:[%s2 + $0x90] sm:$0xf]
      %v765 = vld [vmem:[%s2 + $0x94] sm:$0xf]
      %v766 = vld [vmem:[%s2 + $0x98] sm:$0xf]
      %v767 = vld [vmem:[%s2 + $0x9c] sm:$0xf]
      %v768 = vld [vmem:[%s2 + $0xa0] sm:$0xf]
      %v769 = vld [vmem:[%s2 + $0xa4] sm:$0xf]
      %v770 = vld [vmem:[%s2 + $0xa8] sm:$0xf]
      %v771 = vld [vmem:[%s2 + $0xac] sm:$0xf]
      %v772 = vld [vmem:[%s2 + $0xb0] sm:$0xf]
      %v773 = vld [vmem:[%s2 + $0xb4] sm:$0xf]
      %v774 = vld [vmem:[%s2 + $0xb8] sm:$0xf]
      %v775 = vld [vmem:[%s2 + $0xbc] sm:$0xf]
      %v776 = vld [vmem:[%s2 + $0xc0] sm:$0xf]
      %v777 = vld [vmem:[%s2 + $0xc4] sm:$0xf]
      %v778 = vld [vmem:[%s2 + $0xc8] sm:$0xf]
      %v779 = vld [vmem:[%s2 + $0xcc] sm:$0xf]
      %v780 = vld [vmem:[%s2 + $0xd0] sm:$0xf]
      %v781 = vld [vmem:[%s2 + $0xd4] sm:$0xf]
      %v782 = vld [vmem:[%s2 + $0xd8] sm:$0xf]
      %v783 = vld [vmem:[%s2 + $0xdc] sm:$0xf]
      %v784 = vld [vmem:[%s2 + $0xe0] sm:$0xf]
      %v785 = vld [vmem:[%s2 + $0xe4] sm:$0xf]
      %v786 = vld [vmem:[%s2 + $0xe8] sm:$0xf]
      %v787 = vld [vmem:[%s2 + $0xec] sm:$0xf]
      %v788 = vld [vmem:[%s2 + $0xf0] sm:$0xf]
      %v789 = vld [vmem:[%s2 + $0xf4] sm:$0xf]
      %v790 = vld [vmem:[%s2 + $0xf8] sm:$0xf]
      %v791 = vld [vmem:[%s2 + $0xfc] sm:$0xf]
      %v792 = vld [vmem:[%s2 + $0x100] sm:$0xf]
      %v793 = vld [vmem:[%s2 + $0x104] sm:$0xf]
      %v794 = vld [vmem:[%s2 + $0x108] sm:$0xf]
      %v795 = vld [vmem:[%s2 + $0x10c] sm:$0xf]
      %v796 = vld [vmem:[%s2 + $0x110] sm:$0xf]
      %v797 = vld [vmem:[%s2 + $0x114] sm:$0xf]
      %v798 = vld [vmem:[%s2 + $0x118] sm:$0xf]
      %v799 = vld [vmem:[%s2 + $0x11c] sm:$0xf]
      %v800 = vld [vmem:[%s2 + $0x120] sm:$0xf]
      %v801 = vld [vmem:[%s2 + $0x124] sm:$0xf]
      %v802 = vld [vmem:[%s2 + $0x128] sm:$0xf]
      %v803 = vld [vmem:[%s2 + $0x12c] sm:$0xf]
      %v804 = vld [vmem:[%s2 + $0x130] sm:$0xf]
      %v805 = vld [vmem:[%s2 + $0x134] sm:$0xf]
      %v806 = vld [vmem:[%s2 + $0x138] sm:$0xf]
      %v807 = vld [vmem:[%s2 + $0x13c] sm:$0xf]
      %v808 = vld [vmem:[%s2 + $0x140] sm:$0xf]
      %v809 = vld [vmem:[%s2 + $0x144] sm:$0xf]
      %v810 = vld [vmem:[%s2 + $0x148] sm:$0xf]
      %v811 = vld [vmem:[%s2 + $0x14c] sm:$0xf]
      %v812 = vld [vmem:[%s2 + $0x150] sm:$0xf]
      %v813 = vld [vmem:[%s2 + $0x154] sm:$0xf]
      %v814 = vld [vmem:[%s2 + $0x158] sm:$0xf]
      %v815 = vld [vmem:[%s2 + $0x15c] sm:$0xf]
      %v816 = vld [vmem:[%s2 + $0x160] sm:$0xf]
      %v817 = vld [vmem:[%s2 + $0x164] sm:$0xf]
      %v818 = vld [vmem:[%s2 + $0x168] sm:$0xf]
      %v819 = vld [vmem:[%s2 + $0x16c] sm:$0xf]
      %v820 = vld [vmem:[%s2 + $0x170] sm:$0xf]
      %v821 = vld [vmem:[%s2 + $0x174] sm:$0xf]
      %v822 = vld [vmem:[%s2 + $0x178] sm:$0xf]
      %v823 = vld [vmem:[%s2 + $0x17c] sm:$0xf]
      %v920 = vunpack.c.l.b16 %v728
      %v921 = vunpack.c.l.b16 %v729
      %v922 = vunpack.c.l.b16 %v730
      %v923 = vunpack.c.l.b16 %v731
      %v924 = vunpack.c.l.b16 %v732
      %v925 = vunpack.c.l.b16 %v733
      %v926 = vunpack.c.l.b16 %v734
      %v927 = vunpack.c.l.b16 %v735
      %v928 = vunpack.c.l.b16 %v736
      %v929 = vunpack.c.l.b16 %v737
      %v930 = vunpack.c.l.b16 %v738
      %v931 = vunpack.c.l.b16 %v739
      %v932 = vunpack.c.l.b16 %v740
      %v933 = vunpack.c.l.b16 %v741
      %v934 = vunpack.c.l.b16 %v742
      %v935 = vunpack.c.l.b16 %v743
      %v936 = vunpack.c.l.b16 %v744
      %v937 = vunpack.c.l.b16 %v745
      %v938 = vunpack.c.l.b16 %v746
      %v939 = vunpack.c.l.b16 %v747
      %v940 = vunpack.c.l.b16 %v748
      %v941 = vunpack.c.l.b16 %v749
      %v942 = vunpack.c.l.b16 %v750
      %v943 = vunpack.c.l.b16 %v751
      %v944 = vunpack.c.l.b16 %v752
      %v945 = vunpack.c.l.b16 %v753
      %v946 = vunpack.c.l.b16 %v754
      %v947 = vunpack.c.l.b16 %v755
      %v948 = vunpack.c.l.b16 %v756
      %v949 = vunpack.c.l.b16 %v757
      %v950 = vunpack.c.l.b16 %v758
      %v951 = vunpack.c.l.b16 %v759
      %v952 = vunpack.c.l.b16 %v760
      %v953 = vunpack.c.l.b16 %v761
      %v954 = vunpack.c.l.b16 %v762
      %v955 = vunpack.c.l.b16 %v763
      %v956 = vunpack.c.l.b16 %v764
      %v957 = vunpack.c.l.b16 %v765
      %v958 = vunpack.c.l.b16 %v766
      %v959 = vunpack.c.l.b16 %v767
      %v960 = vunpack.c.l.b16 %v768
      %v961 = vunpack.c.l.b16 %v769
      %v962 = vunpack.c.l.b16 %v770
      %v963 = vunpack.c.l.b16 %v771
      %v964 = vunpack.c.l.b16 %v772
      %v965 = vunpack.c.l.b16 %v773
      %v966 = vunpack.c.l.b16 %v774
      %v967 = vunpack.c.l.b16 %v775
      %v968 = vunpack.c.l.b16 %v776
      %v969 = vunpack.c.l.b16 %v777
      %v970 = vunpack.c.l.b16 %v778
      %v971 = vunpack.c.l.b16 %v779
      %v972 = vunpack.c.l.b16 %v780
      %v973 = vunpack.c.l.b16 %v781
      %v974 = vunpack.c.l.b16 %v782
      %v975 = vunpack.c.l.b16 %v783
      %v976 = vunpack.c.l.b16 %v784
      %v977 = vunpack.c.l.b16 %v785
      %v978 = vunpack.c.l.b16 %v786
      %v979 = vunpack.c.l.b16 %v787
      %v980 = vunpack.c.l.b16 %v788
      %v981 = vunpack.c.l.b16 %v789
      %v982 = vunpack.c.l.b16 %v790
      %v983 = vunpack.c.l.b16 %v791
      %v984 = vunpack.c.l.b16 %v792
      %v985 = vunpack.c.l.b16 %v793
      %v986 = vunpack.c.l.b16 %v794
      %v987 = vunpack.c.l.b16 %v795
      %v988 = vunpack.c.l.b16 %v796
      %v989 = vunpack.c.l.b16 %v797
      %v990 = vunpack.c.l.b16 %v798
      %v991 = vunpack.c.l.b16 %v799
      %v992 = vunpack.c.l.b16 %v800
      %v993 = vunpack.c.l.b16 %v801
      %v994 = vunpack.c.l.b16 %v802
      %v995 = vunpack.c.l.b16 %v803
      %v996 = vunpack.c.l.b16 %v804
      %v997 = vunpack.c.l.b16 %v805
      %v998 = vunpack.c.l.b16 %v806
      %v999 = vunpack.c.l.b16 %v807
      %v1000 = vunpack.c.l.b16 %v808
      %v1001 = vunpack.c.l.b16 %v809
      %v1002 = vunpack.c.l.b16 %v810
      %v1003 = vunpack.c.l.b16 %v811
      %v1004 = vunpack.c.l.b16 %v812
      %v1005 = vunpack.c.l.b16 %v813
      %v1006 = vunpack.c.l.b16 %v814
      %v1007 = vunpack.c.l.b16 %v815
      %v1008 = vunpack.c.l.b16 %v816
      %v1009 = vunpack.c.l.b16 %v817
      %v1010 = vunpack.c.l.b16 %v818
      %v1011 = vunpack.c.l.b16 %v819
      %v1012 = vunpack.c.l.b16 %v820
      %v1013 = vunpack.c.l.b16 %v821
      %v1014 = vunpack.c.l.b16 %v822
      %v1015 = vunpack.c.l.b16 %v823
      %v1016 = vpack.c.b16 %v921, %v920
      %v1017 = vpack.c.b16 %v923, %v922
      %v1018 = vpack.c.b16 %v925, %v924
      %v1019 = vpack.c.b16 %v927, %v926
      %v1020 = vpack.c.b16 %v929, %v928
      %v1021 = vpack.c.b16 %v931, %v930
      %v1022 = vpack.c.b16 %v933, %v932
      %v1023 = vpack.c.b16 %v935, %v934
      %v1024 = vpack.c.b16 %v937, %v936
      %v1025 = vpack.c.b16 %v939, %v938
      %v1026 = vpack.c.b16 %v941, %v940
      %v1027 = vpack.c.b16 %v943, %v942
      %v1028 = vpack.c.b16 %v945, %v944
      %v1029 = vpack.c.b16 %v947, %v946
      %v1030 = vpack.c.b16 %v949, %v948
      %v1031 = vpack.c.b16 %v951, %v950
      %v1032 = vpack.c.b16 %v953, %v952
      %v1033 = vpack.c.b16 %v955, %v954
      %v1034 = vpack.c.b16 %v957, %v956
      %v1035 = vpack.c.b16 %v959, %v958
      %v1036 = vpack.c.b16 %v961, %v960
      %v1037 = vpack.c.b16 %v963, %v962
      %v1038 = vpack.c.b16 %v965, %v964
      %v1039 = vpack.c.b16 %v967, %v966
      %v1040 = vpack.c.b16 %v969, %v968
      %v1041 = vpack.c.b16 %v971, %v970
      %v1042 = vpack.c.b16 %v973, %v972
      %v1043 = vpack.c.b16 %v975, %v974
      %v1044 = vpack.c.b16 %v977, %v976
      %v1045 = vpack.c.b16 %v979, %v978
      %v1046 = vpack.c.b16 %v981, %v980
      %v1047 = vpack.c.b16 %v983, %v982
      %v1048 = vpack.c.b16 %v985, %v984
      %v1049 = vpack.c.b16 %v987, %v986
      %v1050 = vpack.c.b16 %v989, %v988
      %v1051 = vpack.c.b16 %v991, %v990
      %v1052 = vpack.c.b16 %v993, %v992
      %v1053 = vpack.c.b16 %v995, %v994
      %v1054 = vpack.c.b16 %v997, %v996
      %v1055 = vpack.c.b16 %v999, %v998
      %v1056 = vpack.c.b16 %v1001, %v1000
      %v1057 = vpack.c.b16 %v1003, %v1002
      %v1058 = vpack.c.b16 %v1005, %v1004
      %v1059 = vpack.c.b16 %v1007, %v1006
      %v1060 = vpack.c.b16 %v1009, %v1008
      %v1061 = vpack.c.b16 %v1011, %v1010
      %v1062 = vpack.c.b16 %v1013, %v1012
      %v1063 = vpack.c.b16 %v1015, %v1014
      %1112 = vmatpush.bf16.msra.mxu0 %v1023
      %1113 = vmatpush.bf16.msra.mxu0 %v1022
      %1114 = vmatpush.bf16.msra.mxu0 %v1021
      %1115 = vmatpush.bf16.msra.mxu0 %v1020
      %1116 = vmatpush.bf16.msra.mxu0 %v1019
      %1117 = vmatpush.bf16.msra.mxu0 %v1018
      %1118 = vmatpush.bf16.msra.mxu0 %v1017
      %1119 = vmatpush.bf16.msra.mxu0 %v1016
      %1120 = vmatmul.bf16.gmra.mxu0 %v722
      %v1121 = vpop.f32.mrf.mxu0
      %v1122 = vadd.f32 0.0, %v1121
      %v1123 = vpop.f32.mrf.mxu0
      %v1124 = vadd.f32 0.0, %v1123
      %1125 = vdwg.mxu0
      %1126 = vmatpush.bf16.msra.mxu0 %v1031
      %1127 = vmatpush.bf16.msra.mxu0 %v1030
      %1128 = vmatpush.bf16.msra.mxu0 %v1029
      %1129 = vmatpush.bf16.msra.mxu0 %v1028
      %1130 = vmatpush.bf16.msra.mxu0 %v1027
      %1131 = vmatpush.bf16.msra.mxu0 %v1026
      %1132 = vmatpush.bf16.msra.mxu0 %v1025
      %1133 = vmatpush.bf16.msra.mxu0 %v1024
      %1134 = vmatmul.bf16.gmra.mxu0 %v723
      %v1135 = vpop.f32.mrf.mxu0
      %v1136 = vadd.f32 %v1122, %v1135
      %v1137 = vpop.f32.mrf.mxu0
      %v1138 = vadd.f32 %v1124, %v1137
      %1139 = vdwg.mxu0
      %1140 = vmatpush.bf16.msra.mxu0 %v1039
      %1141 = vmatpush.bf16.msra.mxu0 %v1038
      %1142 = vmatpush.bf16.msra.mxu0 %v1037
      %1143 = vmatpush.bf16.msra.mxu0 %v1036
      %1144 = vmatpush.bf16.msra.mxu0 %v1035
      %1145 = vmatpush.bf16.msra.mxu0 %v1034
      %1146 = vmatpush.bf16.msra.mxu0 %v1033
      %1147 = vmatpush.bf16.msra.mxu0 %v1032
      %1148 = vmatmul.bf16.gmra.mxu0 %v724
      %v1149 = vpop.f32.mrf.mxu0
      %v1150 = vadd.f32 %v1136, %v1149
      %v1151 = vpop.f32.mrf.mxu0
      %v1152 = vadd.f32 %v1138, %v1151
      %1153 = vdwg.mxu0
      %1154 = vmatpush.bf16.msra.mxu0 %v1047
      %1155 = vmatpush.bf16.msra.mxu0 %v1046
      %1156 = vmatpush.bf16.msra.mxu0 %v1045
      %1157 = vmatpush.bf16.msra.mxu0 %v1044
      %1158 = vmatpush.bf16.msra.mxu0 %v1043
      %1159 = vmatpush.bf16.msra.mxu0 %v1042
      %1160 = vmatpush.bf16.msra.mxu0 %v1041
      %1161 = vmatpush.bf16.msra.mxu0 %v1040
      %1162 = vmatmul.bf16.gmra.mxu0 %v725
      %v1163 = vpop.f32.mrf.mxu0
      %v1164 = vadd.f32 %v1150, %v1163
      %v1165 = vpop.f32.mrf.mxu0
      %v1166 = vadd.f32 %v1152, %v1165
      %1167 = vdwg.mxu0
      %1168 = vmatpush.bf16.msra.mxu0 %v1055
      %1169 = vmatpush.bf16.msra.mxu0 %v1054
      %1170 = vmatpush.bf16.msra.mxu0 %v1053
      %1171 = vmatpush.bf16.msra.mxu0 %v1052
      %1172 = vmatpush.bf16.msra.mxu0 %v1051
      %1173 = vmatpush.bf16.msra.mxu0 %v1050
      %1174 = vmatpush.bf16.msra.mxu0 %v1049
      %1175 = vmatpush.bf16.msra.mxu0 %v1048
      %1176 = vmatmul.bf16.gmra.mxu0 %v726
      %v1177 = vpop.f32.mrf.mxu0
      %v1178 = vadd.f32 %v1164, %v1177
      %v1179 = vpop.f32.mrf.mxu0
      %v1180 = vadd.f32 %v1166, %v1179
      %1181 = vdwg.mxu0
      %1182 = vmatpush.bf16.msra.mxu0 %v1063
      %1183 = vmatpush.bf16.msra.mxu0 %v1062
      %1184 = vmatpush.bf16.msra.mxu0 %v1061
      %1185 = vmatpush.bf16.msra.mxu0 %v1060
      %1186 = vmatpush.bf16.msra.mxu0 %v1059
      %1187 = vmatpush.bf16.msra.mxu0 %v1058
      %1188 = vmatpush.bf16.msra.mxu0 %v1057
      %1189 = vmatpush.bf16.msra.mxu0 %v1056
      %1190 = vmatmul.bf16.gmra.mxu0 %v727
      %v1191 = vpop.f32.mrf.mxu0
      %v1192 = vadd.f32 %v1178, %v1191
      %v1193 = vpop.f32.mrf.mxu0
      %v1194 = vadd.f32 %v1180, %v1193
      %1195 = vdwg.mxu0
      %v1196 = vld [vmem:[%s1] sm:$0xff]
      %v1197 = vadd.f32 %v1192, %v1196
      %v1198 = vadd.f32 %v1194, %v1196
      %v1199 = vld [vmem:[%s3] sm:$0x1]
      %v1200 = vld [vmem:[%s4] sm:$0x1]
      %1201 = vadd.xlane.f32.xlu0 %v1197
      %v1202 = vpop.xlane.xlu0 %1201
      %1203 = vadd.xlane.f32.xlu0 %v1198
      %v1204 = vpop.xlane.xlu0 %1203
      %v1205 = vrcp.pop 128.0
      %v1206 = vmul.f32 128.0, %v1205
      %v1207 = vsub.f32 1.0, %v1206
      %v1208 = vmul.f32 %v1205, %v1207
      %v1209 = vadd.f32 %v1205, %v1208
      %vm1210 = vweird.f32 %v1205
      %v1211 = vsel %vm1210, %v1205, %v1209
      %v1212 = vmul.f32 %v1202, %v1211
      %v1213 = vmul.f32 %v1204, %v1211
      %v1214 = vsub.f32 %v1197, %v1212
      %v1215 = vsub.f32 %v1198, %v1213
      %v1216 = vmul.f32 %v1214, %v1214
      %v1217 = vmul.f32 %v1215, %v1215
      %1218 = vadd.xlane.f32.xlu0 %v1216
      %v1219 = vpop.xlane.xlu0 %1218
      %1220 = vadd.xlane.f32.xlu0 %v1217
      %v1221 = vpop.xlane.xlu0 %1220
      %v1222 = vmul.f32 %v1219, %v1211
      %v1223 = vmul.f32 %v1221, %v1211
      %v1224 = vadd.f32 %v1222, 1e-06
      %v1225 = vadd.f32 %v1223, 1e-06
      %v1226 = vrsqrt.pop %v1224
      %v1227 = vmul.f32 %v1226, %v1224
      %v1228 = vmul.f32 %v1227, %v1226
      %v1229 = vmul.f32 0.5, %v1228
      %v1230 = vsub.f32 1.5, %v1229
      %v1231 = vmul.f32 %v1226, %v1230
      %vm1232 = vweird.f32 %v1224
      %vm1233 = vweird.f32 %v1226
      %vm1234 = vmor %vm1232, %vm1233
      %v1235 = vsel %vm1234, %v1226, %v1231
      %v1236 = vrsqrt.pop %v1225
      %v1237 = vmul.f32 %v1236, %v1225
      %v1238 = vmul.f32 %v1237, %v1236
      %v1239 = vmul.f32 0.5, %v1238
      %v1240 = vsub.f32 1.5, %v1239
      %v1241 = vmul.f32 %v1236, %v1240
      %vm1242 = vweird.f32 %v1225
      %vm1243 = vweird.f32 %v1236
      %vm1244 = vmor %vm1242, %vm1243
      %v1245 = vsel %vm1244, %v1236, %v1241
      %v1246 = vmul.f32 %v1214, %v1235
      %v1247 = vmul.f32 %v1215, %v1245
      %v1249 = vperm.slane %v1199, 0
      %v1251 = vmul.f32 %v1246, %v1249
      %v1252 = vmul.f32 %v1247, %v1249
      %v1254 = vperm.slane %v1200, 0
      %v1256 = vadd.f32 %v1251, %v1254
      %v1257 = vadd.f32 %v1252, %v1254
      %v1258 = vld [vmem:[%s5] sm:$0xff]
      %v1259 = vld [vmem:[%s5 + $0x8] sm:$0xf]
      %v1260 = vld [vmem:[%s5 + $0xc] sm:$0xff]
      %v1261 = vld [vmem:[%s5 + $0x14] sm:$0xf]
      %v1262 = vld [vmem:[%s5 + $0x18] sm:$0xff]
      %v1263 = vld [vmem:[%s5 + $0x20] sm:$0xf]
      %v1264 = vld [vmem:[%s5 + $0x24] sm:$0xff]
      %v1265 = vld [vmem:[%s5 + $0x2c] sm:$0xf]
      %v1266 = vld [vmem:[%s5 + $0x30] sm:$0xff]
      %v1267 = vld [vmem:[%s5 + $0x38] sm:$0xf]
      %v1268 = vld [vmem:[%s5 + $0x3c] sm:$0xff]
      %v1269 = vld [vmem:[%s5 + $0x44] sm:$0xf]
      %v1270 = vld [vmem:[%s5 + $0x48] sm:$0xff]
      %v1271 = vld [vmem:[%s5 + $0x50] sm:$0xf]
      %v1272 = vld [vmem:[%s5 + $0x54] sm:$0xff]
      %v1273 = vld [vmem:[%s5 + $0x5c] sm:$0xf]
      %v1274 = vld [vmem:[%s5 + $0x60] sm:$0xff]
      %v1275 = vld [vmem:[%s5 + $0x68] sm:$0xf]
      %v1276 = vld [vmem:[%s5 + $0x6c] sm:$0xff]
      %v1277 = vld [vmem:[%s5 + $0x74] sm:$0xf]
      %v1278 = vld [vmem:[%s5 + $0x78] sm:$0xff]
      %v1279 = vld [vmem:[%s5 + $0x80] sm:$0xf]
      %v1280 = vld [vmem:[%s5 + $0x84] sm:$0xff]
      %v1281 = vld [vmem:[%s5 + $0x8c] sm:$0xf]
      %v1282 = vld [vmem:[%s5 + $0x90] sm:$0xff]
      %v1283 = vld [vmem:[%s5 + $0x98] sm:$0xf]
      %v1284 = vld [vmem:[%s5 + $0x9c] sm:$0xff]
      %v1285 = vld [vmem:[%s5 + $0xa4] sm:$0xf]
      %v1286 = vld [vmem:[%s5 + $0xa8] sm:$0xff]
      %v1287 = vld [vmem:[%s5 + $0xb0] sm:$0xf]
      %v1288 = vld [vmem:[%s5 + $0xb4] sm:$0xff]
      %v1289 = vld [vmem:[%s5 + $0xbc] sm:$0xf]
      %v1290 = vld [vmem:[%s6] sm:$0x7]
      %v1291 = vpack.c.bf16 %v1257, %v1256
      %v1293 = vperm.slane %v1290, 0
      %v1294 = vperm.slane %v1290, 1
      %v1295 = vperm.slane %v1290, 2
      %v1331 = vunpack.c.l.b16 %v1258
      %v1332 = vunpack.c.h.b16 %v1258
      %v1333 = vunpack.c.l.b16 %v1259
      %v1334 = vunpack.c.l.b16 %v1260
      %v1335 = vunpack.c.h.b16 %v1260
      %v1336 = vunpack.c.l.b16 %v1261
      %v1337 = vunpack.c.l.b16 %v1262
      %v1338 = vunpack.c.h.b16 %v1262
      %v1339 = vunpack.c.l.b16 %v1263
      %v1340 = vunpack.c.l.b16 %v1264
      %v1341 = vunpack.c.h.b16 %v1264
      %v1342 = vunpack.c.l.b16 %v1265
      %v1343 = vunpack.c.l.b16 %v1266
      %v1344 = vunpack.c.h.b16 %v1266
      %v1345 = vunpack.c.l.b16 %v1267
      %v1346 = vunpack.c.l.b16 %v1268
      %v1347 = vunpack.c.h.b16 %v1268
      %v1348 = vunpack.c.l.b16 %v1269
      %v1349 = vunpack.c.l.b16 %v1270
      %v1350 = vunpack.c.h.b16 %v1270
      %v1351 = vunpack.c.l.b16 %v1271
      %v1352 = vunpack.c.l.b16 %v1272
      %v1353 = vunpack.c.h.b16 %v1272
      %v1354 = vunpack.c.l.b16 %v1273
      %v1355 = vunpack.c.l.b16 %v1274
      %v1356 = vunpack.c.h.b16 %v1274
      %v1357 = vunpack.c.l.b16 %v1275
      %v1358 = vunpack.c.l.b16 %v1276
      %v1359 = vunpack.c.h.b16 %v1276
      %v1360 = vunpack.c.l.b16 %v1277
      %v1361 = vunpack.c.l.b16 %v1278
      %v1362 = vunpack.c.h.b16 %v1278
      %v1363 = vunpack.c.l.b16 %v1279
      %v1364 = vunpack.c.l.b16 %v1280
      %v1365 = vunpack.c.h.b16 %v1280
      %v1366 = vunpack.c.l.b16 %v1281
      %v1367 = vunpack.c.l.b16 %v1282
      %v1368 = vunpack.c.h.b16 %v1282
      %v1369 = vunpack.c.l.b16 %v1283
      %v1370 = vunpack.c.l.b16 %v1284
      %v1371 = vunpack.c.h.b16 %v1284
      %v1372 = vunpack.c.l.b16 %v1285
      %v1373 = vunpack.c.l.b16 %v1286
      %v1374 = vunpack.c.h.b16 %v1286
      %v1375 = vunpack.c.l.b16 %v1287
      %v1376 = vunpack.c.l.b16 %v1288
      %v1377 = vunpack.c.h.b16 %v1288
      %v1378 = vunpack.c.l.b16 %v1289
      %v1379 = vpack.c.b16 %v1334, %v1331
      %v1380 = vpack.c.b16 %v1335, %v1332
      %v1381 = vpack.c.b16 %v1336, %v1333
      %v1382 = vpack.c.b16 %v1340, %v1337
      %v1383 = vpack.c.b16 %v1341, %v1338
      %v1384 = vpack.c.b16 %v1342, %v1339
      %v1385 = vpack.c.b16 %v1346, %v1343
      %v1386 = vpack.c.b16 %v1347, %v1344
      %v1387 = vpack.c.b16 %v1348, %v1345
      %v1388 = vpack.c.b16 %v1352, %v1349
      %v1389 = vpack.c.b16 %v1353, %v1350
      %v1390 = vpack.c.b16 %v1354, %v1351
      %v1391 = vpack.c.b16 %v1358, %v1355
      %v1392 = vpack.c.b16 %v1359, %v1356
      %v1393 = vpack.c.b16 %v1360, %v1357
      %v1394 = vpack.c.b16 %v1364, %v1361
      %v1395 = vpack.c.b16 %v1365, %v1362
      %v1396 = vpack.c.b16 %v1366, %v1363
      %v1397 = vpack.c.b16 %v1370, %v1367
      %v1398 = vpack.c.b16 %v1371, %v1368
      %v1399 = vpack.c.b16 %v1372, %v1369
      %v1400 = vpack.c.b16 %v1376, %v1373
      %v1401 = vpack.c.b16 %v1377, %v1374
      %v1402 = vpack.c.b16 %v1378, %v1375
      %1427 = vmatpush.bf16.msra.mxu0 %v1400
      %1428 = vmatpush.bf16.msra.mxu0 %v1397
      %1429 = vmatpush.bf16.msra.mxu0 %v1394
      %1430 = vmatpush.bf16.msra.mxu0 %v1391
      %1431 = vmatpush.bf16.msra.mxu0 %v1388
      %1432 = vmatpush.bf16.msra.mxu0 %v1385
      %1433 = vmatpush.bf16.msra.mxu0 %v1382
      %1434 = vmatpush.bf16.msra.mxu0 %v1379
      %1435 = vmatmul.bf16.gmra.mxu0 %v1291
      %v1436 = vpop.f32.mrf.mxu0
      %v1437 = vadd.f32 %v1293, %v1436
      %v1438 = vpop.f32.mrf.mxu0
      %v1439 = vadd.f32 %v1293, %v1438
      %1440 = vdwg.mxu0
      %1441 = vmatpush.bf16.msra.mxu0 %v1401
      %1442 = vmatpush.bf16.msra.mxu0 %v1398
      %1443 = vmatpush.bf16.msra.mxu0 %v1395
      %1444 = vmatpush.bf16.msra.mxu0 %v1392
      %1445 = vmatpush.bf16.msra.mxu0 %v1389
      %1446 = vmatpush.bf16.msra.mxu0 %v1386
      %1447 = vmatpush.bf16.msra.mxu0 %v1383
      %1448 = vmatpush.bf16.msra.mxu0 %v1380
      %1449 = vmatmul.bf16.gmra.mxu0 %v1291
      %v1450 = vpop.f32.mrf.mxu0
      %v1451 = vadd.f32 %v1294, %v1450
      %v1452 = vpop.f32.mrf.mxu0
      %v1453 = vadd.f32 %v1294, %v1452
      %1454 = vdwg.mxu0
      %1455 = vmatpush.bf16.msra.mxu0 %v1402
      %1456 = vmatpush.bf16.msra.mxu0 %v1399
      %1457 = vmatpush.bf16.msra.mxu0 %v1396
      %1458 = vmatpush.bf16.msra.mxu0 %v1393
      %1459 = vmatpush.bf16.msra.mxu0 %v1390
      %1460 = vmatpush.bf16.msra.mxu0 %v1387
      %1461 = vmatpush.bf16.msra.mxu0 %v1384
      %1462 = vmatpush.bf16.msra.mxu0 %v1381
      %1463 = vmatmul.bf16.gmra.mxu0 %v1291
      %v1464 = vpop.f32.mrf.mxu0
      %v1465 = vadd.f32 %v1295, %v1464
      %v1466 = vpop.f32.mrf.mxu0
      %v1467 = vadd.f32 %v1295, %v1466
      %1468 = vdwg.mxu0
      %vm1469 = vcmask 261120
      %v1471 = vsel %vm1469, %v1437, 0
      %v1474 = vsel %vm1469, %v1451, 0
      %1476 = vmatpush.xpose.msra.mxu0 0.0
      %1477 = vmatpush.xpose.msra.mxu0 0.0
      %1478 = vmatpush.xpose.msra.mxu0 0.0
      %1479 = vmatpush.xpose.msra.mxu0 0.0
      %1480 = vmatpush.xpose.msra.mxu0 0.0
      %1481 = vmatpush.xpose.msra.mxu0 0.0
      %1482 = vmatpush.xpose.msra.mxu0 0.0
      %1483 = vmatpush.xpose.msra.mxu0 0.0
      %1484 = vmatpush.xpose.msra.mxu0 0.0
      %1485 = vmatpush.xpose.msra.mxu0 0.0
      %1486 = vmatpush.xpose.msra.mxu0 0.0
      %1487 = vmatpush.xpose.msra.mxu0 0.0
      %1488 = vmatpush.xpose.msra.mxu0 0.0
      %1489 = vmatpush.xpose.msra.mxu0 0.0
      %1490 = vmatpush.xpose.msra.mxu0 0.0
      %1491 = vmatpush.xpose.msra.mxu0 %v1474
      %1492 = vmatmul.f32.gmra.mxu0 %v1471
      %v1493 = vpop.f32.mrf.mxu0
      %v1494 = vadd.f32 0.0, %v1493
      %1495 = vdwg.mxu0
      %v1497 = vsel %vm1469, %v1439, 0
      %v1500 = vsel %vm1469, %v1453, 0
      %1502 = vmatpush.xpose.msra.mxu0 0.0
      %1503 = vmatpush.xpose.msra.mxu0 0.0
      %1504 = vmatpush.xpose.msra.mxu0 0.0
      %1505 = vmatpush.xpose.msra.mxu0 0.0
      %1506 = vmatpush.xpose.msra.mxu0 0.0
      %1507 = vmatpush.xpose.msra.mxu0 0.0
      %1508 = vmatpush.xpose.msra.mxu0 0.0
      %1509 = vmatpush.xpose.msra.mxu0 0.0
      %1510 = vmatpush.xpose.msra.mxu0 0.0
      %1511 = vmatpush.xpose.msra.mxu0 0.0
      %1512 = vmatpush.xpose.msra.mxu0 0.0
      %1513 = vmatpush.xpose.msra.mxu0 0.0
      %1514 = vmatpush.xpose.msra.mxu0 0.0
      %1515 = vmatpush.xpose.msra.mxu0 0.0
      %1516 = vmatpush.xpose.msra.mxu0 0.0
      %1517 = vmatpush.xpose.msra.mxu0 %v1500
      %1518 = vmatmul.f32.gmra.mxu0 %v1497
      %v1519 = vpop.f32.mrf.mxu0
      %v1520 = vadd.f32 0.0, %v1519
      %1521 = vdwg.mxu0
      %v1522 = vmul.f32 %v1494, 0.17677669
      %v1523 = vmul.f32 %v1520, 0.17677669
      %v1524 = vsel %vm704, 1, 0
      %vm1525 = vcmp.eq.s32.totalorder %v1524, 1
      %v1526 = vsel %vm1525, %v1522, -1e+30
      %v1527 = vsel %vm1525, %v1523, -1e+30
      %vm1528 = vcmask 64512
      %v1529 = vsel %vm1528, %v1526, -inf
      %1530 = vmax.xlane.f32.xlu0 %v1529
      %v1531 = vpop.xlane.xlu0 %1530
      %v1532 = vsel %vm1528, %v1527, -inf
      %1533 = vmax.xlane.f32.xlu0 %v1532
      %v1534 = vpop.xlane.xlu0 %1533
      %v1535 = vsub.f32 %v1526, %v1531
      %v1536 = vsub.f32 %v1527, %v1534
      %v1537 = vmul.f32 %v1535, 1.442695
      %v1538 = vpow.pop %v1537
      %v1539 = vmul.f32 %v1536, 1.442695
      %v1540 = vpow.pop %v1539
      %v1541 = vsel %vm1528, %v1538, 0.0
      %1542 = vadd.xlane.f32.xlu0 %v1541
      %v1543 = vpop.xlane.xlu0 %1542
      %v1544 = vsel %vm1528, %v1540, 0.0
      %1545 = vadd.xlane.f32.xlu0 %v1544
      %v1546 = vpop.xlane.xlu0 %1545
      %v1547 = vrcp.pop %v1543
      %v1548 = vrcp.pop %v1546
      %v1549 = vmul.f32 %v1538, %v1547
      %v1550 = vmul.f32 %v1540, %v1548
      %v1552 = vsel %vm1528, %v1549, 0
      %1554 = vmatpush.msra.mxu0 0.0
      %1555 = vmatpush.msra.mxu0 0.0
      %1556 = vmatpush.msra.mxu0 0.0
      %1557 = vmatpush.msra.mxu0 0.0
      %1558 = vmatpush.msra.mxu0 0.0
      %1559 = vmatpush.msra.mxu0 0.0
      %1560 = vmatpush.msra.mxu0 0.0
      %1561 = vmatpush.msra.mxu0 0.0
      %1562 = vmatpush.msra.mxu0 0.0
      %1563 = vmatpush.msra.mxu0 0.0
      %1564 = vmatpush.msra.mxu0 0.0
      %1565 = vmatpush.msra.mxu0 0.0
      %1566 = vmatpush.msra.mxu0 0.0
      %1567 = vmatpush.msra.mxu0 0.0
      %1568 = vmatpush.msra.mxu0 0.0
      %1569 = vmatpush.msra.mxu0 %v1465
      %1570 = vmatmul.f32.gmra.mxu0 %v1552
      %v1571 = vpop.f32.mrf.mxu0
      %v1572 = vadd.f32 0.0, %v1571
      %1573 = vdwg.mxu0
      %v1575 = vsel %vm1528, %v1550, 0
      %1577 = vmatpush.msra.mxu0 0.0
      %1578 = vmatpush.msra.mxu0 0.0
      %1579 = vmatpush.msra.mxu0 0.0
      %1580 = vmatpush.msra.mxu0 0.0
      %1581 = vmatpush.msra.mxu0 0.0
      %1582 = vmatpush.msra.mxu0 0.0
      %1583 = vmatpush.msra.mxu0 0.0
      %1584 = vmatpush.msra.mxu0 0.0
      %1585 = vmatpush.msra.mxu0 0.0
      %1586 = vmatpush.msra.mxu0 0.0
      %1587 = vmatpush.msra.mxu0 0.0
      %1588 = vmatpush.msra.mxu0 0.0
      %1589 = vmatpush.msra.mxu0 0.0
      %1590 = vmatpush.msra.mxu0 0.0
      %1591 = vmatpush.msra.mxu0 0.0
      %1592 = vmatpush.msra.mxu0 %v1467
      %1593 = vmatmul.f32.gmra.mxu0 %v1575
      %v1594 = vpop.f32.mrf.mxu0
      %v1595 = vadd.f32 0.0, %v1594
      %1596 = vdwg.mxu0
      %1597 = vrot.lane.b32.xlu0 %v1437, 96
      %v1598 = vpop.permute.xlu0 %1597
      %1599 = vrot.lane.b32.xlu0 %v1451, 96
      %v1600 = vpop.permute.xlu0 %1599
      %v1601 = vsel %vm1469, %v1598, 0
      %v1603 = vsel %vm1469, %v1600, 0
      %1605 = vmatpush.xpose.msra.mxu0 0.0
      %1606 = vmatpush.xpose.msra.mxu0 0.0
      %1607 = vmatpush.xpose.msra.mxu0 0.0
      %1608 = vmatpush.xpose.msra.mxu0 0.0
      %1609 = vmatpush.xpose.msra.mxu0 0.0
      %1610 = vmatpush.xpose.msra.mxu0 0.0
      %1611 = vmatpush.xpose.msra.mxu0 0.0
      %1612 = vmatpush.xpose.msra.mxu0 0.0
      %1613 = vmatpush.xpose.msra.mxu0 0.0
      %1614 = vmatpush.xpose.msra.mxu0 0.0
      %1615 = vmatpush.xpose.msra.mxu0 0.0
      %1616 = vmatpush.xpose.msra.mxu0 0.0
      %1617 = vmatpush.xpose.msra.mxu0 0.0
      %1618 = vmatpush.xpose.msra.mxu0 0.0
      %1619 = vmatpush.xpose.msra.mxu0 0.0
      %1620 = vmatpush.xpose.msra.mxu0 %v1603
      %1621 = vmatmul.f32.gmra.mxu0 %v1601
      %v1622 = vpop.f32.mrf.mxu0
      %v1623 = vadd.f32 0.0, %v1622
      %1624 = vdwg.mxu0
      %1625 = vrot.lane.b32.xlu0 %v1439, 96
      %v1626 = vpop.permute.xlu0 %1625
      %1627 = vrot.lane.b32.xlu0 %v1453, 96
      %v1628 = vpop.permute.xlu0 %1627
      %v1629 = vsel %vm1469, %v1626, 0
      %v1631 = vsel %vm1469, %v1628, 0
      %1633 = vmatpush.xpose.msra.mxu0 0.0
      %1634 = vmatpush.xpose.msra.mxu0 0.0
      %1635 = vmatpush.xpose.msra.mxu0 0.0
      %1636 = vmatpush.xpose.msra.mxu0 0.0
      %1637 = vmatpush.xpose.msra.mxu0 0.0
      %1638 = vmatpush.xpose.msra.mxu0 0.0
      %1639 = vmatpush.xpose.msra.mxu0 0.0
      %1640 = vmatpush.xpose.msra.mxu0 0.0
      %1641 = vmatpush.xpose.msra.mxu0 0.0
      %1642 = vmatpush.xpose.msra.mxu0 0.0
      %1643 = vmatpush.xpose.msra.mxu0 0.0
      %1644 = vmatpush.xpose.msra.mxu0 0.0
      %1645 = vmatpush.xpose.msra.mxu0 0.0
      %1646 = vmatpush.xpose.msra.mxu0 0.0
      %1647 = vmatpush.xpose.msra.mxu0 0.0
      %1648 = vmatpush.xpose.msra.mxu0 %v1631
      %1649 = vmatmul.f32.gmra.mxu0 %v1629
      %v1650 = vpop.f32.mrf.mxu0
      %v1651 = vadd.f32 0.0, %v1650
      %1652 = vdwg.mxu0
      %v1653 = vmul.f32 %v1623, 0.17677669
      %v1654 = vmul.f32 %v1651, 0.17677669
      %v1655 = vsel %vm1525, %v1653, -1e+30
      %v1656 = vsel %vm1525, %v1654, -1e+30
      %v1657 = vsel %vm1528, %v1655, -inf
      %1658 = vmax.xlane.f32.xlu0 %v1657
      %v1659 = vpop.xlane.xlu0 %1658
      %v1660 = vsel %vm1528, %v1656, -inf
      %1661 = vmax.xlane.f32.xlu0 %v1660
      %v1662 = vpop.xlane.xlu0 %1661
      %v1663 = vsub.f32 %v1655, %v1659
      %v1664 = vsub.f32 %v1656, %v1662
      %v1665 = vmul.f32 %v1663, 1.442695
      %v1666 = vpow.pop %v1665
      %v1667 = vmul.f32 %v1664, 1.442695
      %v1668 = vpow.pop %v1667
      %v1669 = vsel %vm1528, %v1666, 0.0
      %1670 = vadd.xlane.f32.xlu0 %v1669
      %v1671 = vpop.xlane.xlu0 %1670
      %v1672 = vsel %vm1528, %v1668, 0.0
      %1673 = vadd.xlane.f32.xlu0 %v1672
      %v1674 = vpop.xlane.xlu0 %1673
      %v1675 = vrcp.pop %v1671
      %v1676 = vrcp.pop %v1674
      %v1677 = vmul.f32 %v1666, %v1675
      %v1678 = vmul.f32 %v1668, %v1676
      %1680 = vrot.lane.b32.xlu0 %v1465, 96
      %v1681 = vpop.permute.xlu0 %1680
      %v1684 = vsel %vm1528, %v1677, 0
      %1686 = vmatpush.msra.mxu0 0.0
      %1687 = vmatpush.msra.mxu0 0.0
      %1688 = vmatpush.msra.mxu0 0.0
      %1689 = vmatpush.msra.mxu0 0.0
      %1690 = vmatpush.msra.mxu0 0.0
      %1691 = vmatpush.msra.mxu0 0.0
      %1692 = vmatpush.msra.mxu0 0.0
      %1693 = vmatpush.msra.mxu0 0.0
      %1694 = vmatpush.msra.mxu0 0.0
      %1695 = vmatpush.msra.mxu0 0.0
      %1696 = vmatpush.msra.mxu0 0.0
      %1697 = vmatpush.msra.mxu0 0.0
      %1698 = vmatpush.msra.mxu0 0.0
      %1699 = vmatpush.msra.mxu0 0.0
      %1700 = vmatpush.msra.mxu0 0.0
      %1701 = vmatpush.msra.mxu0 %v1681
      %1702 = vmatmul.f32.gmra.mxu0 %v1684
      %v1703 = vpop.f32.mrf.mxu0
      %v1704 = vadd.f32 0.0, %v1703
      %1705 = vdwg.mxu0
      %1707 = vrot.lane.b32.xlu0 %v1467, 96
      %v1708 = vpop.permute.xlu0 %1707
      %v1711 = vsel %vm1528, %v1678, 0
      %1713 = vmatpush.msra.mxu0 0.0
      %1714 = vmatpush.msra.mxu0 0.0
      %1715 = vmatpush.msra.mxu0 0.0
      %1716 = vmatpush.msra.mxu0 0.0
      %1717 = vmatpush.msra.mxu0 0.0
      %1718 = vmatpush.msra.mxu0 0.0
      %1719 = vmatpush.msra.mxu0 0.0
      %1720 = vmatpush.msra.mxu0 0.0
      %1721 = vmatpush.msra.mxu0 0.0
      %1722 = vmatpush.msra.mxu0 0.0
      %1723 = vmatpush.msra.mxu0 0.0
      %1724 = vmatpush.msra.mxu0 0.0
      %1725 = vmatpush.msra.mxu0 0.0
      %1726 = vmatpush.msra.mxu0 0.0
      %1727 = vmatpush.msra.mxu0 0.0
      %1728 = vmatpush.msra.mxu0 %v1708
      %1729 = vmatmul.f32.gmra.mxu0 %v1711
      %v1730 = vpop.f32.mrf.mxu0
      %v1731 = vadd.f32 0.0, %v1730
      %1732 = vdwg.mxu0
      %1733 = vrot.lane.b32.xlu0 %v1437, 64
      %v1734 = vpop.permute.xlu0 %1733
      %1735 = vrot.lane.b32.xlu0 %v1451, 64
      %v1736 = vpop.permute.xlu0 %1735
      %v1737 = vsel %vm1469, %v1734, 0
      %v1739 = vsel %vm1469, %v1736, 0
      %1741 = vmatpush.xpose.msra.mxu0 0.0
      %1742 = vmatpush.xpose.msra.mxu0 0.0
      %1743 = vmatpush.xpose.msra.mxu0 0.0
      %1744 = vmatpush.xpose.msra.mxu0 0.0
      %1745 = vmatpush.xpose.msra.mxu0 0.0
      %1746 = vmatpush.xpose.msra.mxu0 0.0
      %1747 = vmatpush.xpose.msra.mxu0 0.0
      %1748 = vmatpush.xpose.msra.mxu0 0.0
      %1749 = vmatpush.xpose.msra.mxu0 0.0
      %1750 = vmatpush.xpose.msra.mxu0 0.0
      %1751 = vmatpush.xpose.msra.mxu0 0.0
      %1752 = vmatpush.xpose.msra.mxu0 0.0
      %1753 = vmatpush.xpose.msra.mxu0 0.0
      %1754 = vmatpush.xpose.msra.mxu0 0.0
      %1755 = vmatpush.xpose.msra.mxu0 0.0
      %1756 = vmatpush.xpose.msra.mxu0 %v1739
      %1757 = vmatmul.f32.gmra.mxu0 %v1737
      %v1758 = vpop.f32.mrf.mxu0
      %v1759 = vadd.f32 0.0, %v1758
      %1760 = vdwg.mxu0
      %1761 = vrot.lane.b32.xlu0 %v1439, 64
      %v1762 = vpop.permute.xlu0 %1761
      %1763 = vrot.lane.b32.xlu0 %v1453, 64
      %v1764 = vpop.permute.xlu0 %1763
      %v1765 = vsel %vm1469, %v1762, 0
      %v1767 = vsel %vm1469, %v1764, 0
      %1769 = vmatpush.xpose.msra.mxu0 0.0
      %1770 = vmatpush.xpose.msra.mxu0 0.0
      %1771 = vmatpush.xpose.msra.mxu0 0.0
      %1772 = vmatpush.xpose.msra.mxu0 0.0
      %1773 = vmatpush.xpose.msra.mxu0 0.0
      %1774 = vmatpush.xpose.msra.mxu0 0.0
      %1775 = vmatpush.xpose.msra.mxu0 0.0
      %1776 = vmatpush.xpose.msra.mxu0 0.0
      %1777 = vmatpush.xpose.msra.mxu0 0.0
      %1778 = vmatpush.xpose.msra.mxu0 0.0
      %1779 = vmatpush.xpose.msra.mxu0 0.0
      %1780 = vmatpush.xpose.msra.mxu0 0.0
      %1781 = vmatpush.xpose.msra.mxu0 0.0
      %1782 = vmatpush.xpose.msra.mxu0 0.0
      %1783 = vmatpush.xpose.msra.mxu0 0.0
      %1784 = vmatpush.xpose.msra.mxu0 %v1767
      %1785 = vmatmul.f32.gmra.mxu0 %v1765
      %v1786 = vpop.f32.mrf.mxu0
      %v1787 = vadd.f32 0.0, %v1786
      %1788 = vdwg.mxu0
      %v1789 = vmul.f32 %v1759, 0.17677669
      %v1790 = vmul.f32 %v1787, 0.17677669
      %v1791 = vsel %vm1525, %v1789, -1e+30
      %v1792 = vsel %vm1525, %v1790, -1e+30
      %v1793 = vsel %vm1528, %v1791, -inf
      %1794 = vmax.xlane.f32.xlu0 %v1793
      %v1795 = vpop.xlane.xlu0 %1794
      %v1796 = vsel %vm1528, %v1792, -inf
      %1797 = vmax.xlane.f32.xlu0 %v1796
      %v1798 = vpop.xlane.xlu0 %1797
      %v1799 = vsub.f32 %v1791, %v1795
      %v1800 = vsub.f32 %v1792, %v1798
      %v1801 = vmul.f32 %v1799, 1.442695
      %v1802 = vpow.pop %v1801
      %v1803 = vmul.f32 %v1800, 1.442695
      %v1804 = vpow.pop %v1803
      %v1805 = vsel %vm1528, %v1802, 0.0
      %1806 = vadd.xlane.f32.xlu0 %v1805
      %v1807 = vpop.xlane.xlu0 %1806
      %v1808 = vsel %vm1528, %v1804, 0.0
      %1809 = vadd.xlane.f32.xlu0 %v1808
      %v1810 = vpop.xlane.xlu0 %1809
      %v1811 = vrcp.pop %v1807
      %v1812 = vrcp.pop %v1810
      %v1813 = vmul.f32 %v1802, %v1811
      %v1814 = vmul.f32 %v1804, %v1812
      %1815 = vrot.lane.b32.xlu0 %v1465, 64
      %v1816 = vpop.permute.xlu0 %1815
      %v1819 = vsel %vm1528, %v1813, 0
      %1821 = vmatpush.msra.mxu0 0.0
      %1822 = vmatpush.msra.mxu0 0.0
      %1823 = vmatpush.msra.mxu0 0.0
      %1824 = vmatpush.msra.mxu0 0.0
      %1825 = vmatpush.msra.mxu0 0.0
      %1826 = vmatpush.msra.mxu0 0.0
      %1827 = vmatpush.msra.mxu0 0.0
      %1828 = vmatpush.msra.mxu0 0.0
      %1829 = vmatpush.msra.mxu0 0.0
      %1830 = vmatpush.msra.mxu0 0.0
      %1831 = vmatpush.msra.mxu0 0.0
      %1832 = vmatpush.msra.mxu0 0.0
      %1833 = vmatpush.msra.mxu0 0.0
      %1834 = vmatpush.msra.mxu0 0.0
      %1835 = vmatpush.msra.mxu0 0.0
      %1836 = vmatpush.msra.mxu0 %v1816
      %1837 = vmatmul.f32.gmra.mxu0 %v1819
      %v1838 = vpop.f32.mrf.mxu0
      %v1839 = vadd.f32 0.0, %v1838
      %1840 = vdwg.mxu0
      %1841 = vrot.lane.b32.xlu0 %v1467, 64
      %v1842 = vpop.permute.xlu0 %1841
      %v1845 = vsel %vm1528, %v1814, 0
      %1847 = vmatpush.msra.mxu0 0.0
      %1848 = vmatpush.msra.mxu0 0.0
      %1849 = vmatpush.msra.mxu0 0.0
      %1850 = vmatpush.msra.mxu0 0.0
      %1851 = vmatpush.msra.mxu0 0.0
      %1852 = vmatpush.msra.mxu0 0.0
      %1853 = vmatpush.msra.mxu0 0.0
      %1854 = vmatpush.msra.mxu0 0.0
      %1855 = vmatpush.msra.mxu0 0.0
      %1856 = vmatpush.msra.mxu0 0.0
      %1857 = vmatpush.msra.mxu0 0.0
      %1858 = vmatpush.msra.mxu0 0.0
      %1859 = vmatpush.msra.mxu0 0.0
      %1860 = vmatpush.msra.mxu0 0.0
      %1861 = vmatpush.msra.mxu0 0.0
      %1862 = vmatpush.msra.mxu0 %v1842
      %1863 = vmatmul.f32.gmra.mxu0 %v1845
      %v1864 = vpop.f32.mrf.mxu0
      %v1865 = vadd.f32 0.0, %v1864
      %1866 = vdwg.mxu0
      %1867 = vrot.lane.b32.xlu0 %v1437, 32
      %v1868 = vpop.permute.xlu0 %1867
      %1869 = vrot.lane.b32.xlu0 %v1451, 32
      %v1870 = vpop.permute.xlu0 %1869
      %v1871 = vsel %vm1469, %v1868, 0
      %v1873 = vsel %vm1469, %v1870, 0
      %1875 = vmatpush.xpose.msra.mxu0 0.0
      %1876 = vmatpush.xpose.msra.mxu0 0.0
      %1877 = vmatpush.xpose.msra.mxu0 0.0
      %1878 = vmatpush.xpose.msra.mxu0 0.0
      %1879 = vmatpush.xpose.msra.mxu0 0.0
      %1880 = vmatpush.xpose.msra.mxu0 0.0
      %1881 = vmatpush.xpose.msra.mxu0 0.0
      %1882 = vmatpush.xpose.msra.mxu0 0.0
      %1883 = vmatpush.xpose.msra.mxu0 0.0
      %1884 = vmatpush.xpose.msra.mxu0 0.0
      %1885 = vmatpush.xpose.msra.mxu0 0.0
      %1886 = vmatpush.xpose.msra.mxu0 0.0
      %1887 = vmatpush.xpose.msra.mxu0 0.0
      %1888 = vmatpush.xpose.msra.mxu0 0.0
      %1889 = vmatpush.xpose.msra.mxu0 0.0
      %1890 = vmatpush.xpose.msra.mxu0 %v1873
      %1891 = vmatmul.f32.gmra.mxu0 %v1871
      %v1892 = vpop.f32.mrf.mxu0
      %v1893 = vadd.f32 0.0, %v1892
      %1894 = vdwg.mxu0
      %1895 = vrot.lane.b32.xlu0 %v1439, 32
      %v1896 = vpop.permute.xlu0 %1895
      %1897 = vrot.lane.b32.xlu0 %v1453, 32
      %v1898 = vpop.permute.xlu0 %1897
      %v1899 = vsel %vm1469, %v1896, 0
      %v1901 = vsel %vm1469, %v1898, 0
      %1903 = vmatpush.xpose.msra.mxu0 0.0
      %1904 = vmatpush.xpose.msra.mxu0 0.0
      %1905 = vmatpush.xpose.msra.mxu0 0.0
      %1906 = vmatpush.xpose.msra.mxu0 0.0
      %1907 = vmatpush.xpose.msra.mxu0 0.0
      %1908 = vmatpush.xpose.msra.mxu0 0.0
      %1909 = vmatpush.xpose.msra.mxu0 0.0
      %1910 = vmatpush.xpose.msra.mxu0 0.0
      %1911 = vmatpush.xpose.msra.mxu0 0.0
      %1912 = vmatpush.xpose.msra.mxu0 0.0
      %1913 = vmatpush.xpose.msra.mxu0 0.0
      %1914 = vmatpush.xpose.msra.mxu0 0.0
      %1915 = vmatpush.xpose.msra.mxu0 0.0
      %1916 = vmatpush.xpose.msra.mxu0 0.0
      %1917 = vmatpush.xpose.msra.mxu0 0.0
      %1918 = vmatpush.xpose.msra.mxu0 %v1901
      %1919 = vmatmul.f32.gmra.mxu0 %v1899
      %v1920 = vpop.f32.mrf.mxu0
      %v1921 = vadd.f32 0.0, %v1920
      %1922 = vdwg.mxu0
      %v1923 = vmul.f32 %v1893, 0.17677669
      %v1924 = vmul.f32 %v1921, 0.17677669
      %v1925 = vsel %vm1525, %v1923, -1e+30
      %v1926 = vsel %vm1525, %v1924, -1e+30
      %v1927 = vsel %vm1528, %v1925, -inf
      %1928 = vmax.xlane.f32.xlu0 %v1927
      %v1929 = vpop.xlane.xlu0 %1928
      %v1930 = vsel %vm1528, %v1926, -inf
      %1931 = vmax.xlane.f32.xlu0 %v1930
      %v1932 = vpop.xlane.xlu0 %1931
      %v1933 = vsub.f32 %v1925, %v1929
      %v1934 = vsub.f32 %v1926, %v1932
      %v1935 = vmul.f32 %v1933, 1.442695
      %v1936 = vpow.pop %v1935
      %v1937 = vmul.f32 %v1934, 1.442695
      %v1938 = vpow.pop %v1937
      %v1939 = vsel %vm1528, %v1936, 0.0
      %1940 = vadd.xlane.f32.xlu0 %v1939
      %v1941 = vpop.xlane.xlu0 %1940
      %v1942 = vsel %vm1528, %v1938, 0.0
      %1943 = vadd.xlane.f32.xlu0 %v1942
      %v1944 = vpop.xlane.xlu0 %1943
      %v1945 = vrcp.pop %v1941
      %v1946 = vrcp.pop %v1944
      %v1947 = vmul.f32 %v1936, %v1945
      %v1948 = vmul.f32 %v1938, %v1946
      %1949 = vrot.lane.b32.xlu0 %v1465, 32
      %v1950 = vpop.permute.xlu0 %1949
      %v1953 = vsel %vm1528, %v1947, 0
      %1955 = vmatpush.msra.mxu0 0.0
      %1956 = vmatpush.msra.mxu0 0.0
      %1957 = vmatpush.msra.mxu0 0.0
      %1958 = vmatpush.msra.mxu0 0.0
      %1959 = vmatpush.msra.mxu0 0.0
      %1960 = vmatpush.msra.mxu0 0.0
      %1961 = vmatpush.msra.mxu0 0.0
      %1962 = vmatpush.msra.mxu0 0.0
      %1963 = vmatpush.msra.mxu0 0.0
      %1964 = vmatpush.msra.mxu0 0.0
      %1965 = vmatpush.msra.mxu0 0.0
      %1966 = vmatpush.msra.mxu0 0.0
      %1967 = vmatpush.msra.mxu0 0.0
      %1968 = vmatpush.msra.mxu0 0.0
      %1969 = vmatpush.msra.mxu0 0.0
      %1970 = vmatpush.msra.mxu0 %v1950
      %1971 = vmatmul.f32.gmra.mxu0 %v1953
      %v1972 = vpop.f32.mrf.mxu0
      %v1973 = vadd.f32 0.0, %v1972
      %1974 = vdwg.mxu0
      %1975 = vrot.lane.b32.xlu0 %v1467, 32
      %v1976 = vpop.permute.xlu0 %1975
      %v1979 = vsel %vm1528, %v1948, 0
      %1981 = vmatpush.msra.mxu0 0.0
      %1982 = vmatpush.msra.mxu0 0.0
      %1983 = vmatpush.msra.mxu0 0.0
      %1984 = vmatpush.msra.mxu0 0.0
      %1985 = vmatpush.msra.mxu0 0.0
      %1986 = vmatpush.msra.mxu0 0.0
      %1987 = vmatpush.msra.mxu0 0.0
      %1988 = vmatpush.msra.mxu0 0.0
      %1989 = vmatpush.msra.mxu0 0.0
      %1990 = vmatpush.msra.mxu0 0.0
      %1991 = vmatpush.msra.mxu0 0.0
      %1992 = vmatpush.msra.mxu0 0.0
      %1993 = vmatpush.msra.mxu0 0.0
      %1994 = vmatpush.msra.mxu0 0.0
      %1995 = vmatpush.msra.mxu0 0.0
      %1996 = vmatpush.msra.mxu0 %v1976
      %1997 = vmatmul.f32.gmra.mxu0 %v1979
      %v1998 = vpop.f32.mrf.mxu0
      %v1999 = vadd.f32 0.0, %v1998
      %2000 = vdwg.mxu0
      %2003 = vrot.lane.b32.xlu0 %v1704, 32
      %v2004 = vpop.permute.xlu0 %2003
      %2005 = vrot.lane.b32.xlu0 %v1731, 32
      %v2006 = vpop.permute.xlu0 %2005
      %2011 = vrot.lane.b32.xlu0 %v1839, 64
      %v2012 = vpop.permute.xlu0 %2011
      %2013 = vrot.lane.b32.xlu0 %v1865, 64
      %v2014 = vpop.permute.xlu0 %2013
      %2019 = vrot.lane.b32.xlu0 %v1973, 96
      %v2020 = vpop.permute.xlu0 %2019
      %2021 = vrot.lane.b32.xlu0 %v1999, 96
      %v2022 = vpop.permute.xlu0 %2021
      %v2025 = vsel %vm1469, %v1572, %v2004
      %v2026 = vsel %vm1469, %v1595, %v2006
      %vm2027 = vcmask 523264
      %v2028 = vsel %vm2027, %v2025, %v2012
      %v2029 = vsel %vm2027, %v2026, %v2014
      %vm2030 = vcmask 785408
      %v2031 = vsel %vm2030, %v2028, %v2020
      %v2032 = vsel %vm2030, %v2029, %v2022
      %v2033 = vld [vmem:[%s7] sm:$0xf]
      %v2034 = vld [vmem:[%s7 + $0x4] sm:$0xf]
      %v2035 = vld [vmem:[%s7 + $0x8] sm:$0xf]
      %v2036 = vld [vmem:[%s7 + $0xc] sm:$0xf]
      %v2037 = vld [vmem:[%s7 + $0x10] sm:$0xf]
      %v2038 = vld [vmem:[%s7 + $0x14] sm:$0xf]
      %v2039 = vld [vmem:[%s7 + $0x18] sm:$0xf]
      %v2040 = vld [vmem:[%s7 + $0x1c] sm:$0xf]
      %v2041 = vld [vmem:[%s7 + $0x20] sm:$0xf]
      %v2042 = vld [vmem:[%s7 + $0x24] sm:$0xf]
      %v2043 = vld [vmem:[%s7 + $0x28] sm:$0xf]
      %v2044 = vld [vmem:[%s7 + $0x2c] sm:$0xf]
      %v2045 = vld [vmem:[%s7 + $0x30] sm:$0xf]
      %v2046 = vld [vmem:[%s7 + $0x34] sm:$0xf]
      %v2047 = vld [vmem:[%s7 + $0x38] sm:$0xf]
      %v2048 = vld [vmem:[%s7 + $0x3c] sm:$0xf]
      %v2049 = vld [vmem:[%s8] sm:$0x1]
      %v2050 = vpack.c.bf16 %v2032, %v2031
      %v2052 = vperm.slane %v2049, 0
      %v2070 = vunpack.c.l.b16 %v2033
      %v2071 = vunpack.c.l.b16 %v2034
      %v2072 = vunpack.c.l.b16 %v2035
      %v2073 = vunpack.c.l.b16 %v2036
      %v2074 = vunpack.c.l.b16 %v2037
      %v2075 = vunpack.c.l.b16 %v2038
      %v2076 = vunpack.c.l.b16 %v2039
      %v2077 = vunpack.c.l.b16 %v2040
      %v2078 = vunpack.c.l.b16 %v2041
      %v2079 = vunpack.c.l.b16 %v2042
      %v2080 = vunpack.c.l.b16 %v2043
      %v2081 = vunpack.c.l.b16 %v2044
      %v2082 = vunpack.c.l.b16 %v2045
      %v2083 = vunpack.c.l.b16 %v2046
      %v2084 = vunpack.c.l.b16 %v2047
      %v2085 = vunpack.c.l.b16 %v2048
      %v2086 = vpack.c.b16 %v2071, %v2070
      %v2087 = vpack.c.b16 %v2073, %v2072
      %v2088 = vpack.c.b16 %v2075, %v2074
      %v2089 = vpack.c.b16 %v2077, %v2076
      %v2090 = vpack.c.b16 %v2079, %v2078
      %v2091 = vpack.c.b16 %v2081, %v2080
      %v2092 = vpack.c.b16 %v2083, %v2082
      %v2093 = vpack.c.b16 %v2085, %v2084
      %2102 = vmatpush.bf16.msra.mxu0 %v2093
      %2103 = vmatpush.bf16.msra.mxu0 %v2092
      %2104 = vmatpush.bf16.msra.mxu0 %v2091
      %2105 = vmatpush.bf16.msra.mxu0 %v2090
      %2106 = vmatpush.bf16.msra.mxu0 %v2089
      %2107 = vmatpush.bf16.msra.mxu0 %v2088
      %2108 = vmatpush.bf16.msra.mxu0 %v2087
      %2109 = vmatpush.bf16.msra.mxu0 %v2086
      %2110 = vmatmul.bf16.gmra.mxu0 %v2050
      %v2111 = vpop.f32.mrf.mxu0
      %v2112 = vadd.f32 %v2052, %v2111
      %v2113 = vpop.f32.mrf.mxu0
      %v2114 = vadd.f32 %v2052, %v2113
      %2115 = vdwg.mxu0
      %v2116 = vadd.f32 %v1197, %v2112
      %v2117 = vadd.f32 %v1198, %v2114
      %v2118 = vld [vmem:[%s9] sm:$0x1]
      %v2119 = vld [vmem:[%s10] sm:$0x1]
      %2120 = vadd.xlane.f32.xlu0 %v2116
      %v2121 = vpop.xlane.xlu0 %2120
      %2122 = vadd.xlane.f32.xlu0 %v2117
      %v2123 = vpop.xlane.xlu0 %2122
      %v2124 = vmul.f32 %v2121, %v1211
      %v2125 = vmul.f32 %v2123, %v1211
      %v2126 = vsub.f32 %v2116, %v2124
      %v2127 = vsub.f32 %v2117, %v2125
      %v2128 = vmul.f32 %v2126, %v2126
      %v2129 = vmul.f32 %v2127, %v2127
      %2130 = vadd.xlane.f32.xlu0 %v2128
      %v2131 = vpop.xlane.xlu0 %2130
      %2132 = vadd.xlane.f32.xlu0 %v2129
      %v2133 = vpop.xlane.xlu0 %2132
      %v2134 = vmul.f32 %v2131, %v1211
      %v2135 = vmul.f32 %v2133, %v1211
      %v2136 = vadd.f32 %v2134, 1e-06
      %v2137 = vadd.f32 %v2135, 1e-06
      %v2138 = vrsqrt.pop %v2136
      %v2139 = vmul.f32 %v2138, %v2136
      %v2140 = vmul.f32 %v2139, %v2138
      %v2141 = vmul.f32 0.5, %v2140
      %v2142 = vsub.f32 1.5, %v2141
      %v2143 = vmul.f32 %v2138, %v2142
      %vm2144 = vweird.f32 %v2136
      %vm2145 = vweird.f32 %v2138
      %vm2146 = vmor %vm2144, %vm2145
      %v2147 = vsel %vm2146, %v2138, %v2143
      %v2148 = vrsqrt.pop %v2137
      %v2149 = vmul.f32 %v2148, %v2137
      %v2150 = vmul.f32 %v2149, %v2148
      %v2151 = vmul.f32 0.5, %v2150
      %v2152 = vsub.f32 1.5, %v2151
      %v2153 = vmul.f32 %v2148, %v2152
      %vm2154 = vweird.f32 %v2137
      %vm2155 = vweird.f32 %v2148
      %vm2156 = vmor %vm2154, %vm2155
      %v2157 = vsel %vm2156, %v2148, %v2153
      %v2158 = vmul.f32 %v2126, %v2147
      %v2159 = vmul.f32 %v2127, %v2157
      %v2161 = vperm.slane %v2118, 0
      %v2163 = vmul.f32 %v2158, %v2161
      %v2164 = vmul.f32 %v2159, %v2161
      %v2166 = vperm.slane %v2119, 0
      %v2168 = vadd.f32 %v2163, %v2166
      %v2169 = vadd.f32 %v2164, %v2166
      %v2170 = vld [vmem:[%s11] sm:$0xff]
      %v2171 = vld [vmem:[%s11 + $0x8] sm:$0xff]
      %v2172 = vld [vmem:[%s11 + $0x10] sm:$0xff]
      %v2173 = vld [vmem:[%s11 + $0x18] sm:$0xff]
      %v2174 = vld [vmem:[%s11 + $0x20] sm:$0xff]
      %v2175 = vld [vmem:[%s11 + $0x28] sm:$0xff]
      %v2176 = vld [vmem:[%s11 + $0x30] sm:$0xff]
      %v2177 = vld [vmem:[%s11 + $0x38] sm:$0xff]
      %v2178 = vld [vmem:[%s11 + $0x40] sm:$0xff]
      %v2179 = vld [vmem:[%s11 + $0x48] sm:$0xff]
      %v2180 = vld [vmem:[%s11 + $0x50] sm:$0xff]
      %v2181 = vld [vmem:[%s11 + $0x58] sm:$0xff]
      %v2182 = vld [vmem:[%s11 + $0x60] sm:$0xff]
      %v2183 = vld [vmem:[%s11 + $0x68] sm:$0xff]
      %v2184 = vld [vmem:[%s11 + $0x70] sm:$0xff]
      %v2185 = vld [vmem:[%s11 + $0x78] sm:$0xff]
      %v2186 = vld [vmem:[%s11 + $0x80] sm:$0xff]
      %v2187 = vld [vmem:[%s11 + $0x88] sm:$0xff]
      %v2188 = vld [vmem:[%s11 + $0x90] sm:$0xff]
      %v2189 = vld [vmem:[%s11 + $0x98] sm:$0xff]
      %v2190 = vld [vmem:[%s11 + $0xa0] sm:$0xff]
      %v2191 = vld [vmem:[%s11 + $0xa8] sm:$0xff]
      %v2192 = vld [vmem:[%s11 + $0xb0] sm:$0xff]
      %v2193 = vld [vmem:[%s11 + $0xb8] sm:$0xff]
      %v2194 = vld [vmem:[%s11 + $0xc0] sm:$0xff]
      %v2195 = vld [vmem:[%s11 + $0xc8] sm:$0xff]
      %v2196 = vld [vmem:[%s11 + $0xd0] sm:$0xff]
      %v2197 = vld [vmem:[%s11 + $0xd8] sm:$0xff]
      %v2198 = vld [vmem:[%s11 + $0xe0] sm:$0xff]
      %v2199 = vld [vmem:[%s11 + $0xe8] sm:$0xff]
      %v2200 = vld [vmem:[%s11 + $0xf0] sm:$0xff]
      %v2201 = vld [vmem:[%s11 + $0xf8] sm:$0xff]
      %v2202 = vld [vmem:[%s12] sm:$0xf]
      %v2203 = vpack.c.bf16 %v2169, %v2168
      %v2205 = vperm.slane %v2202, 0
      %v2206 = vperm.slane %v2202, 1
      %v2207 = vperm.slane %v2202, 2
      %v2208 = vperm.slane %v2202, 3
      %v2245 = vunpack.c.l.b16 %v2170
      %v2246 = vunpack.c.h.b16 %v2170
      %v2247 = vunpack.c.l.b16 %v2171
      %v2248 = vunpack.c.h.b16 %v2171
      %v2249 = vunpack.c.l.b16 %v2172
      %v2250 = vunpack.c.h.b16 %v2172
      %v2251 = vunpack.c.l.b16 %v2173
      %v2252 = vunpack.c.h.b16 %v2173
      %v2253 = vunpack.c.l.b16 %v2174
      %v2254 = vunpack.c.h.b16 %v2174
      %v2255 = vunpack.c.l.b16 %v2175
      %v2256 = vunpack.c.h.b16 %v2175
      %v2257 = vunpack.c.l.b16 %v2176
      %v2258 = vunpack.c.h.b16 %v2176
      %v2259 = vunpack.c.l.b16 %v2177
      %v2260 = vunpack.c.h.b16 %v2177
      %v2261 = vunpack.c.l.b16 %v2178
      %v2262 = vunpack.c.h.b16 %v2178
      %v2263 = vunpack.c.l.b16 %v2179
      %v2264 = vunpack.c.h.b16 %v2179
      %v2265 = vunpack.c.l.b16 %v2180
      %v2266 = vunpack.c.h.b16 %v2180
      %v2267 = vunpack.c.l.b16 %v2181
      %v2268 = vunpack.c.h.b16 %v2181
      %v2269 = vunpack.c.l.b16 %v2182
      %v2270 = vunpack.c.h.b16 %v2182
      %v2271 = vunpack.c.l.b16 %v2183
      %v2272 = vunpack.c.h.b16 %v2183
      %v2273 = vunpack.c.l.b16 %v2184
      %v2274 = vunpack.c.h.b16 %v2184
      %v2275 = vunpack.c.l.b16 %v2185
      %v2276 = vunpack.c.h.b16 %v2185
      %v2277 = vunpack.c.l.b16 %v2186
      %v2278 = vunpack.c.h.b16 %v2186
      %v2279 = vunpack.c.l.b16 %v2187
      %v2280 = vunpack.c.h.b16 %v2187
      %v2281 = vunpack.c.l.b16 %v2188
      %v2282 = vunpack.c.h.b16 %v2188
      %v2283 = vunpack.c.l.b16 %v2189
      %v2284 = vunpack.c.h.b16 %v2189
      %v2285 = vunpack.c.l.b16 %v2190
      %v2286 = vunpack.c.h.b16 %v2190
      %v2287 = vunpack.c.l.b16 %v2191
      %v2288 = vunpack.c.h.b16 %v2191
      %v2289 = vunpack.c.l.b16 %v2192
      %v2290 = vunpack.c.h.b16 %v2192
      %v2291 = vunpack.c.l.b16 %v2193
      %v2292 = vunpack.c.h.b16 %v2193
      %v2293 = vunpack.c.l.b16 %v2194
      %v2294 = vunpack.c.h.b16 %v2194
      %v2295 = vunpack.c.l.b16 %v2195
      %v2296 = vunpack.c.h.b16 %v2195
      %v2297 = vunpack.c.l.b16 %v2196
      %v2298 = vunpack.c.h.b16 %v2196
      %v2299 = vunpack.c.l.b16 %v2197
      %v2300 = vunpack.c.h.b16 %v2197
      %v2301 = vunpack.c.l.b16 %v2198
      %v2302 = vunpack.c.h.b16 %v2198
      %v2303 = vunpack.c.l.b16 %v2199
      %v2304 = vunpack.c.h.b16 %v2199
      %v2305 = vunpack.c.l.b16 %v2200
      %v2306 = vunpack.c.h.b16 %v2200
      %v2307 = vunpack.c.l.b16 %v2201
      %v2308 = vunpack.c.h.b16 %v2201
      %v2309 = vpack.c.b16 %v2249, %v2245
      %v2310 = vpack.c.b16 %v2250, %v2246
      %v2311 = vpack.c.b16 %v2251, %v2247
      %v2312 = vpack.c.b16 %v2252, %v2248
      %v2313 = vpack.c.b16 %v2257, %v2253
      %v2314 = vpack.c.b16 %v2258, %v2254
      %v2315 = vpack.c.b16 %v2259, %v2255
      %v2316 = vpack.c.b16 %v2260, %v2256
      %v2317 = vpack.c.b16 %v2265, %v2261
      %v2318 = vpack.c.b16 %v2266, %v2262
      %v2319 = vpack.c.b16 %v2267, %v2263
      %v2320 = vpack.c.b16 %v2268, %v2264
      %v2321 = vpack.c.b16 %v2273, %v2269
      %v2322 = vpack.c.b16 %v2274, %v2270
      %v2323 = vpack.c.b16 %v2275, %v2271
      %v2324 = vpack.c.b16 %v2276, %v2272
      %v2325 = vpack.c.b16 %v2281, %v2277
      %v2326 = vpack.c.b16 %v2282, %v2278
      %v2327 = vpack.c.b16 %v2283, %v2279
      %v2328 = vpack.c.b16 %v2284, %v2280
      %v2329 = vpack.c.b16 %v2289, %v2285
      %v2330 = vpack.c.b16 %v2290, %v2286
      %v2331 = vpack.c.b16 %v2291, %v2287
      %v2332 = vpack.c.b16 %v2292, %v2288
      %v2333 = vpack.c.b16 %v2297, %v2293
      %v2334 = vpack.c.b16 %v2298, %v2294
      %v2335 = vpack.c.b16 %v2299, %v2295
      %v2336 = vpack.c.b16 %v2300, %v2296
      %v2337 = vpack.c.b16 %v2305, %v2301
      %v2338 = vpack.c.b16 %v2306, %v2302
      %v2339 = vpack.c.b16 %v2307, %v2303
      %v2340 = vpack.c.b16 %v2308, %v2304
      %2373 = vmatpush.bf16.msra.mxu0 %v2337
      %2374 = vmatpush.bf16.msra.mxu0 %v2333
      %2375 = vmatpush.bf16.msra.mxu0 %v2329
      %2376 = vmatpush.bf16.msra.mxu0 %v2325
      %2377 = vmatpush.bf16.msra.mxu0 %v2321
      %2378 = vmatpush.bf16.msra.mxu0 %v2317
      %2379 = vmatpush.bf16.msra.mxu0 %v2313
      %2380 = vmatpush.bf16.msra.mxu0 %v2309
      %2381 = vmatmul.bf16.gmra.mxu0 %v2203
      %v2382 = vpop.f32.mrf.mxu0
      %v2383 = vadd.f32 %v2205, %v2382
      %v2384 = vpop.f32.mrf.mxu0
      %v2385 = vadd.f32 %v2205, %v2384
      %2386 = vdwg.mxu0
      %2387 = vmatpush.bf16.msra.mxu0 %v2338
      %2388 = vmatpush.bf16.msra.mxu0 %v2334
      %2389 = vmatpush.bf16.msra.mxu0 %v2330
      %2390 = vmatpush.bf16.msra.mxu0 %v2326
      %2391 = vmatpush.bf16.msra.mxu0 %v2322
      %2392 = vmatpush.bf16.msra.mxu0 %v2318
      %2393 = vmatpush.bf16.msra.mxu0 %v2314
      %2394 = vmatpush.bf16.msra.mxu0 %v2310
      %2395 = vmatmul.bf16.gmra.mxu0 %v2203
      %v2396 = vpop.f32.mrf.mxu0
      %v2397 = vadd.f32 %v2206, %v2396
      %v2398 = vpop.f32.mrf.mxu0
      %v2399 = vadd.f32 %v2206, %v2398
      %2400 = vdwg.mxu0
      %2401 = vmatpush.bf16.msra.mxu0 %v2339
      %2402 = vmatpush.bf16.msra.mxu0 %v2335
      %2403 = vmatpush.bf16.msra.mxu0 %v2331
      %2404 = vmatpush.bf16.msra.mxu0 %v2327
      %2405 = vmatpush.bf16.msra.mxu0 %v2323
      %2406 = vmatpush.bf16.msra.mxu0 %v2319
      %2407 = vmatpush.bf16.msra.mxu0 %v2315
      %2408 = vmatpush.bf16.msra.mxu0 %v2311
      %2409 = vmatmul.bf16.gmra.mxu0 %v2203
      %v2410 = vpop.f32.mrf.mxu0
      %v2411 = vadd.f32 %v2207, %v2410
      %v2412 = vpop.f32.mrf.mxu0
      %v2413 = vadd.f32 %v2207, %v2412
      %2414 = vdwg.mxu0
      %2415 = vmatpush.bf16.msra.mxu0 %v2340
      %2416 = vmatpush.bf16.msra.mxu0 %v2336
      %2417 = vmatpush.bf16.msra.mxu0 %v2332
      %2418 = vmatpush.bf16.msra.mxu0 %v2328
      %2419 = vmatpush.bf16.msra.mxu0 %v2324
      %2420 = vmatpush.bf16.msra.mxu0 %v2320
      %2421 = vmatpush.bf16.msra.mxu0 %v2316
      %2422 = vmatpush.bf16.msra.mxu0 %v2312
      %2423 = vmatmul.bf16.gmra.mxu0 %v2203
      %v2424 = vpop.f32.mrf.mxu0
      %v2425 = vadd.f32 %v2208, %v2424
      %v2426 = vpop.f32.mrf.mxu0
      %v2427 = vadd.f32 %v2208, %v2426
      %2428 = vdwg.mxu0
      %v2429 = vmul.f32 %v2383, %v2383
      %v2430 = vmul.f32 %v2397, %v2397
      %v2431 = vmul.f32 %v2411, %v2411
      %v2432 = vmul.f32 %v2425, %v2425
      %v2433 = vmul.f32 %v2385, %v2385
      %v2434 = vmul.f32 %v2399, %v2399
      %v2435 = vmul.f32 %v2413, %v2413
      %v2436 = vmul.f32 %v2427, %v2427
      %v2437 = vmul.f32 %v2383, %v2429
      %v2438 = vmul.f32 %v2397, %v2430
      %v2439 = vmul.f32 %v2411, %v2431
      %v2440 = vmul.f32 %v2425, %v2432
      %v2441 = vmul.f32 %v2385, %v2433
      %v2442 = vmul.f32 %v2399, %v2434
      %v2443 = vmul.f32 %v2413, %v2435
      %v2444 = vmul.f32 %v2427, %v2436
      %v2445 = vmul.f32 %v2437, 0.044715
      %v2446 = vmul.f32 %v2438, 0.044715
      %v2447 = vmul.f32 %v2439, 0.044715
      %v2448 = vmul.f32 %v2440, 0.044715
      %v2449 = vmul.f32 %v2441, 0.044715
      %v2450 = vmul.f32 %v2442, 0.044715
      %v2451 = vmul.f32 %v2443, 0.044715
      %v2452 = vmul.f32 %v2444, 0.044715
      %v2453 = vadd.f32 %v2383, %v2445
      %v2454 = vadd.f32 %v2397, %v2446
      %v2455 = vadd.f32 %v2411, %v2447
      %v2456 = vadd.f32 %v2425, %v2448
      %v2457 = vadd.f32 %v2385, %v2449
      %v2458 = vadd.f32 %v2399, %v2450
      %v2459 = vadd.f32 %v2413, %v2451
      %v2460 = vadd.f32 %v2427, %v2452
      %v2461 = vmul.f32 %v2453, 0.7978846
      %v2462 = vmul.f32 %v2454, 0.7978846
      %v2463 = vmul.f32 %v2455, 0.7978846
      %v2464 = vmul.f32 %v2456, 0.7978846
      %v2465 = vmul.f32 %v2457, 0.7978846
      %v2466 = vmul.f32 %v2458, 0.7978846
      %v2467 = vmul.f32 %v2459, 0.7978846
      %v2468 = vmul.f32 %v2460, 0.7978846
      %v2469 = vtanh.pop %v2461
      %v2470 = vtanh.pop %v2462
      %v2471 = vtanh.pop %v2463
      %v2472 = vtanh.pop %v2464
      %v2473 = vtanh.pop %v2465
      %v2474 = vtanh.pop %v2466
      %v2475 = vtanh.pop %v2467
      %v2476 = vtanh.pop %v2468
      %v2477 = vadd.f32 %v2469, 1.0
      %v2478 = vadd.f32 %v2470, 1.0
      %v2479 = vadd.f32 %v2471, 1.0
      %v2480 = vadd.f32 %v2472, 1.0
      %v2481 = vadd.f32 %v2473, 1.0
      %v2482 = vadd.f32 %v2474, 1.0
      %v2483 = vadd.f32 %v2475, 1.0
      %v2484 = vadd.f32 %v2476, 1.0
      %v2485 = vmul.f32 %v2477, 0.5
      %v2486 = vmul.f32 %v2478, 0.5
      %v2487 = vmul.f32 %v2479, 0.5
      %v2488 = vmul.f32 %v2480, 0.5
      %v2489 = vmul.f32 %v2481, 0.5
      %v2490 = vmul.f32 %v2482, 0.5
      %v2491 = vmul.f32 %v2483, 0.5
      %v2492 = vmul.f32 %v2484, 0.5
      %v2493 = vmul.f32 %v2383, %v2485
      %v2494 = vmul.f32 %v2397, %v2486
      %v2495 = vmul.f32 %v2411, %v2487
      %v2496 = vmul.f32 %v2425, %v2488
      %v2497 = vmul.f32 %v2385, %v2489
      %v2498 = vmul.f32 %v2399, %v2490
      %v2499 = vmul.f32 %v2413, %v2491
      %v2500 = vmul.f32 %v2427, %v2492
      %v2501 = vld [vmem:[%s13] sm:$0xf]
      %v2502 = vld [vmem:[%s13 + $0x4] sm:$0xf]
      %v2503 = vld [vmem:[%s13 + $0x8] sm:$0xf]
      %v2504 = vld [vmem:[%s13 + $0xc] sm:$0xf]
      %v2505 = vld [vmem:[%s13 + $0x10] sm:$0xf]
      %v2506 = vld [vmem:[%s13 + $0x14] sm:$0xf]
      %v2507 = vld [vmem:[%s13 + $0x18] sm:$0xf]
      %v2508 = vld [vmem:[%s13 + $0x1c] sm:$0xf]
      %v2509 = vld [vmem:[%s13 + $0x20] sm:$0xf]
      %v2510 = vld [vmem:[%s13 + $0x24] sm:$0xf]
      %v2511 = vld [vmem:[%s13 + $0x28] sm:$0xf]
      %v2512 = vld [vmem:[%s13 + $0x2c] sm:$0xf]
      %v2513 = vld [vmem:[%s13 + $0x30] sm:$0xf]
      %v2514 = vld [vmem:[%s13 + $0x34] sm:$0xf]
      %v2515 = vld [vmem:[%s13 + $0x38] sm:$0xf]
      %v2516 = vld [vmem:[%s13 + $0x3c] sm:$0xf]
      %v2517 = vld [vmem:[%s13 + $0x40] sm:$0xf]
      %v2518 = vld [vmem:[%s13 + $0x44] sm:$0xf]
      %v2519 = vld [vmem:[%s13 + $0x48] sm:$0xf]
      %v2520 = vld [vmem:[%s13 + $0x4c] sm:$0xf]
      %v2521 = vld [vmem:[%s13 + $0x50] sm:$0xf]
      %v2522 = vld [vmem:[%s13 + $0x54] sm:$0xf]
      %v2523 = vld [vmem:[%s13 + $0x58] sm:$0xf]
      %v2524 = vld [vmem:[%s13 + $0x5c] sm:$0xf]
      %v2525 = vld [vmem:[%s13 + $0x60] sm:$0xf]
      %v2526 = vld [vmem:[%s13 + $0x64] sm:$0xf]
      %v2527 = vld [vmem:[%s13 + $0x68] sm:$0xf]
      %v2528 = vld [vmem:[%s13 + $0x6c] sm:$0xf]
      %v2529 = vld [vmem:[%s13 + $0x70] sm:$0xf]
      %v2530 = vld [vmem:[%s13 + $0x74] sm:$0xf]
      %v2531 = vld [vmem:[%s13 + $0x78] sm:$0xf]
      %v2532 = vld [vmem:[%s13 + $0x7c] sm:$0xf]
      %v2533 = vld [vmem:[%s13 + $0x80] sm:$0xf]
      %v2534 = vld [vmem:[%s13 + $0x84] sm:$0xf]
      %v2535 = vld [vmem:[%s13 + $0x88] sm:$0xf]
      %v2536 = vld [vmem:[%s13 + $0x8c] sm:$0xf]
      %v2537 = vld [vmem:[%s13 + $0x90] sm:$0xf]
      %v2538 = vld [vmem:[%s13 + $0x94] sm:$0xf]
      %v2539 = vld [vmem:[%s13 + $0x98] sm:$0xf]
      %v2540 = vld [vmem:[%s13 + $0x9c] sm:$0xf]
      %v2541 = vld [vmem:[%s13 + $0xa0] sm:$0xf]
      %v2542 = vld [vmem:[%s13 + $0xa4] sm:$0xf]
      %v2543 = vld [vmem:[%s13 + $0xa8] sm:$0xf]
      %v2544 = vld [vmem:[%s13 + $0xac] sm:$0xf]
      %v2545 = vld [vmem:[%s13 + $0xb0] sm:$0xf]
      %v2546 = vld [vmem:[%s13 + $0xb4] sm:$0xf]
      %v2547 = vld [vmem:[%s13 + $0xb8] sm:$0xf]
      %v2548 = vld [vmem:[%s13 + $0xbc] sm:$0xf]
      %v2549 = vld [vmem:[%s13 + $0xc0] sm:$0xf]
      %v2550 = vld [vmem:[%s13 + $0xc4] sm:$0xf]
      %v2551 = vld [vmem:[%s13 + $0xc8] sm:$0xf]
      %v2552 = vld [vmem:[%s13 + $0xcc] sm:$0xf]
      %v2553 = vld [vmem:[%s13 + $0xd0] sm:$0xf]
      %v2554 = vld [vmem:[%s13 + $0xd4] sm:$0xf]
      %v2555 = vld [vmem:[%s13 + $0xd8] sm:$0xf]
      %v2556 = vld [vmem:[%s13 + $0xdc] sm:$0xf]
      %v2557 = vld [vmem:[%s13 + $0xe0] sm:$0xf]
      %v2558 = vld [vmem:[%s13 + $0xe4] sm:$0xf]
      %v2559 = vld [vmem:[%s13 + $0xe8] sm:$0xf]
      %v2560 = vld [vmem:[%s13 + $0xec] sm:$0xf]
      %v2561 = vld [vmem:[%s13 + $0xf0] sm:$0xf]
      %v2562 = vld [vmem:[%s13 + $0xf4] sm:$0xf]
      %v2563 = vld [vmem:[%s13 + $0xf8] sm:$0xf]
      %v2564 = vld [vmem:[%s13 + $0xfc] sm:$0xf]
      %v2565 = vld [vmem:[%s14] sm:$0x1]
      %v2566 = vpack.c.bf16 %v2497, %v2493
      %v2567 = vpack.c.bf16 %v2498, %v2494
      %v2568 = vpack.c.bf16 %v2499, %v2495
      %v2569 = vpack.c.bf16 %v2500, %v2496
      %v2571 = vperm.slane %v2565, 0
      %v2637 = vunpack.c.l.b16 %v2501
      %v2638 = vunpack.c.l.b16 %v2502
      %v2639 = vunpack.c.l.b16 %v2503
      %v2640 = vunpack.c.l.b16 %v2504
      %v2641 = vunpack.c.l.b16 %v2505
      %v2642 = vunpack.c.l.b16 %v2506
      %v2643 = vunpack.c.l.b16 %v2507
      %v2644 = vunpack.c.l.b16 %v2508
      %v2645 = vunpack.c.l.b16 %v2509
      %v2646 = vunpack.c.l.b16 %v2510
      %v2647 = vunpack.c.l.b16 %v2511
      %v2648 = vunpack.c.l.b16 %v2512
      %v2649 = vunpack.c.l.b16 %v2513
      %v2650 = vunpack.c.l.b16 %v2514
      %v2651 = vunpack.c.l.b16 %v2515
      %v2652 = vunpack.c.l.b16 %v2516
      %v2653 = vunpack.c.l.b16 %v2517
      %v2654 = vunpack.c.l.b16 %v2518
      %v2655 = vunpack.c.l.b16 %v2519
      %v2656 = vunpack.c.l.b16 %v2520
      %v2657 = vunpack.c.l.b16 %v2521
      %v2658 = vunpack.c.l.b16 %v2522
      %v2659 = vunpack.c.l.b16 %v2523
      %v2660 = vunpack.c.l.b16 %v2524
      %v2661 = vunpack.c.l.b16 %v2525
      %v2662 = vunpack.c.l.b16 %v2526
      %v2663 = vunpack.c.l.b16 %v2527
      %v2664 = vunpack.c.l.b16 %v2528
      %v2665 = vunpack.c.l.b16 %v2529
      %v2666 = vunpack.c.l.b16 %v2530
      %v2667 = vunpack.c.l.b16 %v2531
      %v2668 = vunpack.c.l.b16 %v2532
      %v2669 = vunpack.c.l.b16 %v2533
      %v2670 = vunpack.c.l.b16 %v2534
      %v2671 = vunpack.c.l.b16 %v2535
      %v2672 = vunpack.c.l.b16 %v2536
      %v2673 = vunpack.c.l.b16 %v2537
      %v2674 = vunpack.c.l.b16 %v2538
      %v2675 = vunpack.c.l.b16 %v2539
      %v2676 = vunpack.c.l.b16 %v2540
      %v2677 = vunpack.c.l.b16 %v2541
      %v2678 = vunpack.c.l.b16 %v2542
      %v2679 = vunpack.c.l.b16 %v2543
      %v2680 = vunpack.c.l.b16 %v2544
      %v2681 = vunpack.c.l.b16 %v2545
      %v2682 = vunpack.c.l.b16 %v2546
      %v2683 = vunpack.c.l.b16 %v2547
      %v2684 = vunpack.c.l.b16 %v2548
      %v2685 = vunpack.c.l.b16 %v2549
      %v2686 = vunpack.c.l.b16 %v2550
      %v2687 = vunpack.c.l.b16 %v2551
      %v2688 = vunpack.c.l.b16 %v2552
      %v2689 = vunpack.c.l.b16 %v2553
      %v2690 = vunpack.c.l.b16 %v2554
      %v2691 = vunpack.c.l.b16 %v2555
      %v2692 = vunpack.c.l.b16 %v2556
      %v2693 = vunpack.c.l.b16 %v2557
      %v2694 = vunpack.c.l.b16 %v2558
      %v2695 = vunpack.c.l.b16 %v2559
      %v2696 = vunpack.c.l.b16 %v2560
      %v2697 = vunpack.c.l.b16 %v2561
      %v2698 = vunpack.c.l.b16 %v2562
      %v2699 = vunpack.c.l.b16 %v2563
      %v2700 = vunpack.c.l.b16 %v2564
      %v2701 = vpack.c.b16 %v2638, %v2637
      %v2702 = vpack.c.b16 %v2640, %v2639
      %v2703 = vpack.c.b16 %v2642, %v2641
      %v2704 = vpack.c.b16 %v2644, %v2643
      %v2705 = vpack.c.b16 %v2646, %v2645
      %v2706 = vpack.c.b16 %v2648, %v2647
      %v2707 = vpack.c.b16 %v2650, %v2649
      %v2708 = vpack.c.b16 %v2652, %v2651
      %v2709 = vpack.c.b16 %v2654, %v2653
      %v2710 = vpack.c.b16 %v2656, %v2655
      %v2711 = vpack.c.b16 %v2658, %v2657
      %v2712 = vpack.c.b16 %v2660, %v2659
      %v2713 = vpack.c.b16 %v2662, %v2661
      %v2714 = vpack.c.b16 %v2664, %v2663
      %v2715 = vpack.c.b16 %v2666, %v2665
      %v2716 = vpack.c.b16 %v2668, %v2667
      %v2717 = vpack.c.b16 %v2670, %v2669
      %v2718 = vpack.c.b16 %v2672, %v2671
      %v2719 = vpack.c.b16 %v2674, %v2673
      %v2720 = vpack.c.b16 %v2676, %v2675
      %v2721 = vpack.c.b16 %v2678, %v2677
      %v2722 = vpack.c.b16 %v2680, %v2679
      %v2723 = vpack.c.b16 %v2682, %v2681
      %v2724 = vpack.c.b16 %v2684, %v2683
      %v2725 = vpack.c.b16 %v2686, %v2685
      %v2726 = vpack.c.b16 %v2688, %v2687
      %v2727 = vpack.c.b16 %v2690, %v2689
      %v2728 = vpack.c.b16 %v2692, %v2691
      %v2729 = vpack.c.b16 %v2694, %v2693
      %v2730 = vpack.c.b16 %v2696, %v2695
      %v2731 = vpack.c.b16 %v2698, %v2697
      %v2732 = vpack.c.b16 %v2700, %v2699
      %2765 = vmatpush.bf16.msra.mxu0 %v2708
      %2766 = vmatpush.bf16.msra.mxu0 %v2707
      %2767 = vmatpush.bf16.msra.mxu0 %v2706
      %2768 = vmatpush.bf16.msra.mxu0 %v2705
      %2769 = vmatpush.bf16.msra.mxu0 %v2704
      %2770 = vmatpush.bf16.msra.mxu0 %v2703
      %2771 = vmatpush.bf16.msra.mxu0 %v2702
      %2772 = vmatpush.bf16.msra.mxu0 %v2701
      %2773 = vmatmul.bf16.gmra.mxu0 %v2566
      %v2774 = vpop.f32.mrf.mxu0
      %v2775 = vadd.f32 %v2571, %v2774
      %v2776 = vpop.f32.mrf.mxu0
      %v2777 = vadd.f32 %v2571, %v2776
      %2778 = vdwg.mxu0
      %2779 = vmatpush.bf16.msra.mxu0 %v2716
      %2780 = vmatpush.bf16.msra.mxu0 %v2715
      %2781 = vmatpush.bf16.msra.mxu0 %v2714
      %2782 = vmatpush.bf16.msra.mxu0 %v2713
      %2783 = vmatpush.bf16.msra.mxu0 %v2712
      %2784 = vmatpush.bf16.msra.mxu0 %v2711
      %2785 = vmatpush.bf16.msra.mxu0 %v2710
      %2786 = vmatpush.bf16.msra.mxu0 %v2709
      %2787 = vmatmul.bf16.gmra.mxu0 %v2567
      %v2788 = vpop.f32.mrf.mxu0
      %v2789 = vadd.f32 %v2775, %v2788
      %v2790 = vpop.f32.mrf.mxu0
      %v2791 = vadd.f32 %v2777, %v2790
      %2792 = vdwg.mxu0
      %2793 = vmatpush.bf16.msra.mxu0 %v2724
      %2794 = vmatpush.bf16.msra.mxu0 %v2723
      %2795 = vmatpush.bf16.msra.mxu0 %v2722
      %2796 = vmatpush.bf16.msra.mxu0 %v2721
      %2797 = vmatpush.bf16.msra.mxu0 %v2720
      %2798 = vmatpush.bf16.msra.mxu0 %v2719
      %2799 = vmatpush.bf16.msra.mxu0 %v2718
      %2800 = vmatpush.bf16.msra.mxu0 %v2717
      %2801 = vmatmul.bf16.gmra.mxu0 %v2568
      %v2802 = vpop.f32.mrf.mxu0
      %v2803 = vadd.f32 %v2789, %v2802
      %v2804 = vpop.f32.mrf.mxu0
      %v2805 = vadd.f32 %v2791, %v2804
      %2806 = vdwg.mxu0
      %2807 = vmatpush.bf16.msra.mxu0 %v2732
      %2808 = vmatpush.bf16.msra.mxu0 %v2731
      %2809 = vmatpush.bf16.msra.mxu0 %v2730
      %2810 = vmatpush.bf16.msra.mxu0 %v2729
      %2811 = vmatpush.bf16.msra.mxu0 %v2728
      %2812 = vmatpush.bf16.msra.mxu0 %v2727
      %2813 = vmatpush.bf16.msra.mxu0 %v2726
      %2814 = vmatpush.bf16.msra.mxu0 %v2725
      %2815 = vmatmul.bf16.gmra.mxu0 %v2569
      %v2816 = vpop.f32.mrf.mxu0
      %v2817 = vadd.f32 %v2803, %v2816
      %v2818 = vpop.f32.mrf.mxu0
      %v2819 = vadd.f32 %v2805, %v2818
      %2820 = vdwg.mxu0
      %v2821 = vadd.f32 %v2116, %v2817
      %v2822 = vadd.f32 %v2117, %v2819
      %s2823 = scalar_lea.vmem %s3, 1
      %v2824 = vld [vmem:[%s2823] sm:$0x1]
      %s2825 = scalar_lea.vmem %s4, 1
      %v2826 = vld [vmem:[%s2825] sm:$0x1]
      %2827 = vadd.xlane.f32.xlu0 %v2821
      %v2828 = vpop.xlane.xlu0 %2827
      %2829 = vadd.xlane.f32.xlu0 %v2822
      %v2830 = vpop.xlane.xlu0 %2829
      %v2831 = vmul.f32 %v2828, %v1211
      %v2832 = vmul.f32 %v2830, %v1211
      %v2833 = vsub.f32 %v2821, %v2831
      %v2834 = vsub.f32 %v2822, %v2832
      %v2835 = vmul.f32 %v2833, %v2833
      %v2836 = vmul.f32 %v2834, %v2834
      %2837 = vadd.xlane.f32.xlu0 %v2835
      %v2838 = vpop.xlane.xlu0 %2837
      %2839 = vadd.xlane.f32.xlu0 %v2836
      %v2840 = vpop.xlane.xlu0 %2839
      %v2841 = vmul.f32 %v2838, %v1211
      %v2842 = vmul.f32 %v2840, %v1211
      %v2843 = vadd.f32 %v2841, 1e-06
      %v2844 = vadd.f32 %v2842, 1e-06
      %v2845 = vrsqrt.pop %v2843
      %v2846 = vmul.f32 %v2845, %v2843
      %v2847 = vmul.f32 %v2846, %v2845
      %v2848 = vmul.f32 0.5, %v2847
      %v2849 = vsub.f32 1.5, %v2848
      %v2850 = vmul.f32 %v2845, %v2849
      %vm2851 = vweird.f32 %v2843
      %vm2852 = vweird.f32 %v2845
      %vm2853 = vmor %vm2851, %vm2852
      %v2854 = vsel %vm2853, %v2845, %v2850
      %v2855 = vrsqrt.pop %v2844
      %v2856 = vmul.f32 %v2855, %v2844
      %v2857 = vmul.f32 %v2856, %v2855
      %v2858 = vmul.f32 0.5, %v2857
      %v2859 = vsub.f32 1.5, %v2858
      %v2860 = vmul.f32 %v2855, %v2859
      %vm2861 = vweird.f32 %v2844
      %vm2862 = vweird.f32 %v2855
      %vm2863 = vmor %vm2861, %vm2862
      %v2864 = vsel %vm2863, %v2855, %v2860
      %v2865 = vmul.f32 %v2833, %v2854
      %v2866 = vmul.f32 %v2834, %v2864
      %v2868 = vperm.slane %v2824, 0
      %v2870 = vmul.f32 %v2865, %v2868
      %v2871 = vmul.f32 %v2866, %v2868
      %v2873 = vperm.slane %v2826, 0
      %v2875 = vadd.f32 %v2870, %v2873
      %v2876 = vadd.f32 %v2871, %v2873
      %s2877 = scalar_lea.vmem %s5, 192
      %v2878 = vld [vmem:[%s2877] sm:$0xff]
      %v2879 = vld [vmem:[%s2877 + $0x8] sm:$0xf]
      %v2880 = vld [vmem:[%s2877 + $0xc] sm:$0xff]
      %v2881 = vld [vmem:[%s2877 + $0x14] sm:$0xf]
      %v2882 = vld [vmem:[%s2877 + $0x18] sm:$0xff]
      %v2883 = vld [vmem:[%s2877 + $0x20] sm:$0xf]
      %v2884 = vld [vmem:[%s2877 + $0x24] sm:$0xff]
      %v2885 = vld [vmem:[%s2877 + $0x2c] sm:$0xf]
      %v2886 = vld [vmem:[%s2877 + $0x30] sm:$0xff]
      %v2887 = vld [vmem:[%s2877 + $0x38] sm:$0xf]
      %v2888 = vld [vmem:[%s2877 + $0x3c] sm:$0xff]
      %v2889 = vld [vmem:[%s2877 + $0x44] sm:$0xf]
      %v2890 = vld [vmem:[%s2877 + $0x48] sm:$0xff]
      %v2891 = vld [vmem:[%s2877 + $0x50] sm:$0xf]
      %v2892 = vld [vmem:[%s2877 + $0x54] sm:$0xff]
      %v2893 = vld [vmem:[%s2877 + $0x5c] sm:$0xf]
      %v2894 = vld [vmem:[%s2877 + $0x60] sm:$0xff]
      %v2895 = vld [vmem:[%s2877 + $0x68] sm:$0xf]
      %v2896 = vld [vmem:[%s2877 + $0x6c] sm:$0xff]
      %v2897 = vld [vmem:[%s2877 + $0x74] sm:$0xf]
      %v2898 = vld [vmem:[%s2877 + $0x78] sm:$0xff]
      %v2899 = vld [vmem:[%s2877 + $0x80] sm:$0xf]
      %v2900 = vld [vmem:[%s2877 + $0x84] sm:$0xff]
      %v2901 = vld [vmem:[%s2877 + $0x8c] sm:$0xf]
      %v2902 = vld [vmem:[%s2877 + $0x90] sm:$0xff]
      %v2903 = vld [vmem:[%s2877 + $0x98] sm:$0xf]
      %v2904 = vld [vmem:[%s2877 + $0x9c] sm:$0xff]
      %v2905 = vld [vmem:[%s2877 + $0xa4] sm:$0xf]
      %v2906 = vld [vmem:[%s2877 + $0xa8] sm:$0xff]
      %v2907 = vld [vmem:[%s2877 + $0xb0] sm:$0xf]
      %v2908 = vld [vmem:[%s2877 + $0xb4] sm:$0xff]
      %v2909 = vld [vmem:[%s2877 + $0xbc] sm:$0xf]
      %s2910 = scalar_lea.vmem %s6, 3
      %v2911 = vld [vmem:[%s2910] sm:$0x7]
      %v2912 = vpack.c.bf16 %v2876, %v2875
      %v2914 = vperm.slane %v2911, 0
      %v2915 = vperm.slane %v2911, 1
      %v2916 = vperm.slane %v2911, 2
      %v2952 = vunpack.c.l.b16 %v2878
      %v2953 = vunpack.c.h.b16 %v2878
      %v2954 = vunpack.c.l.b16 %v2879
      %v2955 = vunpack.c.l.b16 %v2880
      %v2956 = vunpack.c.h.b16 %v2880
      %v2957 = vunpack.c.l.b16 %v2881
      %v2958 = vunpack.c.l.b16 %v2882
      %v2959 = vunpack.c.h.b16 %v2882
      %v2960 = vunpack.c.l.b16 %v2883
      %v2961 = vunpack.c.l.b16 %v2884
      %v2962 = vunpack.c.h.b16 %v2884
      %v2963 = vunpack.c.l.b16 %v2885
      %v2964 = vunpack.c.l.b16 %v2886
      %v2965 = vunpack.c.h.b16 %v2886
      %v2966 = vunpack.c.l.b16 %v2887
      %v2967 = vunpack.c.l.b16 %v2888
      %v2968 = vunpack.c.h.b16 %v2888
      %v2969 = vunpack.c.l.b16 %v2889
      %v2970 = vunpack.c.l.b16 %v2890
      %v2971 = vunpack.c.h.b16 %v2890
      %v2972 = vunpack.c.l.b16 %v2891
      %v2973 = vunpack.c.l.b16 %v2892
      %v2974 = vunpack.c.h.b16 %v2892
      %v2975 = vunpack.c.l.b16 %v2893
      %v2976 = vunpack.c.l.b16 %v2894
      %v2977 = vunpack.c.h.b16 %v2894
      %v2978 = vunpack.c.l.b16 %v2895
      %v2979 = vunpack.c.l.b16 %v2896
      %v2980 = vunpack.c.h.b16 %v2896
      %v2981 = vunpack.c.l.b16 %v2897
      %v2982 = vunpack.c.l.b16 %v2898
      %v2983 = vunpack.c.h.b16 %v2898
      %v2984 = vunpack.c.l.b16 %v2899
      %v2985 = vunpack.c.l.b16 %v2900
      %v2986 = vunpack.c.h.b16 %v2900
      %v2987 = vunpack.c.l.b16 %v2901
      %v2988 = vunpack.c.l.b16 %v2902
      %v2989 = vunpack.c.h.b16 %v2902
      %v2990 = vunpack.c.l.b16 %v2903
      %v2991 = vunpack.c.l.b16 %v2904
      %v2992 = vunpack.c.h.b16 %v2904
      %v2993 = vunpack.c.l.b16 %v2905
      %v2994 = vunpack.c.l.b16 %v2906
      %v2995 = vunpack.c.h.b16 %v2906
      %v2996 = vunpack.c.l.b16 %v2907
      %v2997 = vunpack.c.l.b16 %v2908
      %v2998 = vunpack.c.h.b16 %v2908
      %v2999 = vunpack.c.l.b16 %v2909
      %v3000 = vpack.c.b16 %v2955, %v2952
      %v3001 = vpack.c.b16 %v2956, %v2953
      %v3002 = vpack.c.b16 %v2957, %v2954
      %v3003 = vpack.c.b16 %v2961, %v2958
      %v3004 = vpack.c.b16 %v2962, %v2959
      %v3005 = vpack.c.b16 %v2963, %v2960
      %v3006 = vpack.c.b16 %v2967, %v2964
      %v3007 = vpack.c.b16 %v2968, %v2965
      %v3008 = vpack.c.b16 %v2969, %v2966
      %v3009 = vpack.c.b16 %v2973, %v2970
      %v3010 = vpack.c.b16 %v2974, %v2971
      %v3011 = vpack.c.b16 %v2975, %v2972
      %v3012 = vpack.c.b16 %v2979, %v2976
      %v3013 = vpack.c.b16 %v2980, %v2977
      %v3014 = vpack.c.b16 %v2981, %v2978
      %v3015 = vpack.c.b16 %v2985, %v2982
      %v3016 = vpack.c.b16 %v2986, %v2983
      %v3017 = vpack.c.b16 %v2987, %v2984
      %v3018 = vpack.c.b16 %v2991, %v2988
      %v3019 = vpack.c.b16 %v2992, %v2989
      %v3020 = vpack.c.b16 %v2993, %v2990
      %v3021 = vpack.c.b16 %v2997, %v2994
      %v3022 = vpack.c.b16 %v2998, %v2995
      %v3023 = vpack.c.b16 %v2999, %v2996
      %3048 = vmatpush.bf16.msra.mxu0 %v3021
      %3049 = vmatpush.bf16.msra.mxu0 %v3018
      %3050 = vmatpush.bf16.msra.mxu0 %v3015
      %3051 = vmatpush.bf16.msra.mxu0 %v3012
      %3052 = vmatpush.bf16.msra.mxu0 %v3009
      %3053 = vmatpush.bf16.msra.mxu0 %v3006
      %3054 = vmatpush.bf16.msra.mxu0 %v3003
      %3055 = vmatpush.bf16.msra.mxu0 %v3000
      %3056 = vmatmul.bf16.gmra.mxu0 %v2912
      %v3057 = vpop.f32.mrf.mxu0
      %v3058 = vadd.f32 %v2914, %v3057
      %v3059 = vpop.f32.mrf.mxu0
      %v3060 = vadd.f32 %v2914, %v3059
      %3061 = vdwg.mxu0
      %3062 = vmatpush.bf16.msra.mxu0 %v3022
      %3063 = vmatpush.bf16.msra.mxu0 %v3019
      %3064 = vmatpush.bf16.msra.mxu0 %v3016
      %3065 = vmatpush.bf16.msra.mxu0 %v3013
      %3066 = vmatpush.bf16.msra.mxu0 %v3010
      %3067 = vmatpush.bf16.msra.mxu0 %v3007
      %3068 = vmatpush.bf16.msra.mxu0 %v3004
      %3069 = vmatpush.bf16.msra.mxu0 %v3001
      %3070 = vmatmul.bf16.gmra.mxu0 %v2912
      %v3071 = vpop.f32.mrf.mxu0
      %v3072 = vadd.f32 %v2915, %v3071
      %v3073 = vpop.f32.mrf.mxu0
      %v3074 = vadd.f32 %v2915, %v3073
      %3075 = vdwg.mxu0
      %3076 = vmatpush.bf16.msra.mxu0 %v3023
      %3077 = vmatpush.bf16.msra.mxu0 %v3020
      %3078 = vmatpush.bf16.msra.mxu0 %v3017
      %3079 = vmatpush.bf16.msra.mxu0 %v3014
      %3080 = vmatpush.bf16.msra.mxu0 %v3011
      %3081 = vmatpush.bf16.msra.mxu0 %v3008
      %3082 = vmatpush.bf16.msra.mxu0 %v3005
      %3083 = vmatpush.bf16.msra.mxu0 %v3002
      %3084 = vmatmul.bf16.gmra.mxu0 %v2912
      %v3085 = vpop.f32.mrf.mxu0
      %v3086 = vadd.f32 %v2916, %v3085
      %v3087 = vpop.f32.mrf.mxu0
      %v3088 = vadd.f32 %v2916, %v3087
      %3089 = vdwg.mxu0
      %v3091 = vsel %vm1469, %v3058, 0
      %v3094 = vsel %vm1469, %v3072, 0
      %3096 = vmatpush.xpose.msra.mxu0 0.0
      %3097 = vmatpush.xpose.msra.mxu0 0.0
      %3098 = vmatpush.xpose.msra.mxu0 0.0
      %3099 = vmatpush.xpose.msra.mxu0 0.0
      %3100 = vmatpush.xpose.msra.mxu0 0.0
      %3101 = vmatpush.xpose.msra.mxu0 0.0
      %3102 = vmatpush.xpose.msra.mxu0 0.0
      %3103 = vmatpush.xpose.msra.mxu0 0.0
      %3104 = vmatpush.xpose.msra.mxu0 0.0
      %3105 = vmatpush.xpose.msra.mxu0 0.0
      %3106 = vmatpush.xpose.msra.mxu0 0.0
      %3107 = vmatpush.xpose.msra.mxu0 0.0
      %3108 = vmatpush.xpose.msra.mxu0 0.0
      %3109 = vmatpush.xpose.msra.mxu0 0.0
      %3110 = vmatpush.xpose.msra.mxu0 0.0
      %3111 = vmatpush.xpose.msra.mxu0 %v3094
      %3112 = vmatmul.f32.gmra.mxu0 %v3091
      %v3113 = vpop.f32.mrf.mxu0
      %v3114 = vadd.f32 0.0, %v3113
      %3115 = vdwg.mxu0
      %v3117 = vsel %vm1469, %v3060, 0
      %v3120 = vsel %vm1469, %v3074, 0
      %3122 = vmatpush.xpose.msra.mxu0 0.0
      %3123 = vmatpush.xpose.msra.mxu0 0.0
      %3124 = vmatpush.xpose.msra.mxu0 0.0
      %3125 = vmatpush.xpose.msra.mxu0 0.0
      %3126 = vmatpush.xpose.msra.mxu0 0.0
      %3127 = vmatpush.xpose.msra.mxu0 0.0
      %3128 = vmatpush.xpose.msra.mxu0 0.0
      %3129 = vmatpush.xpose.msra.mxu0 0.0
      %3130 = vmatpush.xpose.msra.mxu0 0.0
      %3131 = vmatpush.xpose.msra.mxu0 0.0
      %3132 = vmatpush.xpose.msra.mxu0 0.0
      %3133 = vmatpush.xpose.msra.mxu0 0.0
      %3134 = vmatpush.xpose.msra.mxu0 0.0
      %3135 = vmatpush.xpose.msra.mxu0 0.0
      %3136 = vmatpush.xpose.msra.mxu0 0.0
      %3137 = vmatpush.xpose.msra.mxu0 %v3120
      %3138 = vmatmul.f32.gmra.mxu0 %v3117
      %v3139 = vpop.f32.mrf.mxu0
      %v3140 = vadd.f32 0.0, %v3139
      %3141 = vdwg.mxu0
      %v3142 = vmul.f32 %v3114, 0.17677669
      %v3143 = vmul.f32 %v3140, 0.17677669
      %v3144 = vsel %vm1525, %v3142, -1e+30
      %v3145 = vsel %vm1525, %v3143, -1e+30
      %v3146 = vsel %vm1528, %v3144, -inf
      %3147 = vmax.xlane.f32.xlu0 %v3146
      %v3148 = vpop.xlane.xlu0 %3147
      %v3149 = vsel %vm1528, %v3145, -inf
      %3150 = vmax.xlane.f32.xlu0 %v3149
      %v3151 = vpop.xlane.xlu0 %3150
      %v3152 = vsub.f32 %v3144, %v3148
      %v3153 = vsub.f32 %v3145, %v3151
      %v3154 = vmul.f32 %v3152, 1.442695
      %v3155 = vpow.pop %v3154
      %v3156 = vmul.f32 %v3153, 1.442695
      %v3157 = vpow.pop %v3156
      %v3158 = vsel %vm1528, %v3155, 0.0
      %3159 = vadd.xlane.f32.xlu0 %v3158
      %v3160 = vpop.xlane.xlu0 %3159
      %v3161 = vsel %vm1528, %v3157, 0.0
      %3162 = vadd.xlane.f32.xlu0 %v3161
      %v3163 = vpop.xlane.xlu0 %3162
      %v3164 = vrcp.pop %v3160
      %v3165 = vrcp.pop %v3163
      %v3166 = vmul.f32 %v3155, %v3164
      %v3167 = vmul.f32 %v3157, %v3165
      %v3169 = vsel %vm1528, %v3166, 0
      %3171 = vmatpush.msra.mxu0 0.0
      %3172 = vmatpush.msra.mxu0 0.0
      %3173 = vmatpush.msra.mxu0 0.0
      %3174 = vmatpush.msra.mxu0 0.0
      %3175 = vmatpush.msra.mxu0 0.0
      %3176 = vmatpush.msra.mxu0 0.0
      %3177 = vmatpush.msra.mxu0 0.0
      %3178 = vmatpush.msra.mxu0 0.0
      %3179 = vmatpush.msra.mxu0 0.0
      %3180 = vmatpush.msra.mxu0 0.0
      %3181 = vmatpush.msra.mxu0 0.0
      %3182 = vmatpush.msra.mxu0 0.0
      %3183 = vmatpush.msra.mxu0 0.0
      %3184 = vmatpush.msra.mxu0 0.0
      %3185 = vmatpush.msra.mxu0 0.0
      %3186 = vmatpush.msra.mxu0 %v3086
      %3187 = vmatmul.f32.gmra.mxu0 %v3169
      %v3188 = vpop.f32.mrf.mxu0
      %v3189 = vadd.f32 0.0, %v3188
      %3190 = vdwg.mxu0
      %v3192 = vsel %vm1528, %v3167, 0
      %3194 = vmatpush.msra.mxu0 0.0
      %3195 = vmatpush.msra.mxu0 0.0
      %3196 = vmatpush.msra.mxu0 0.0
      %3197 = vmatpush.msra.mxu0 0.0
      %3198 = vmatpush.msra.mxu0 0.0
      %3199 = vmatpush.msra.mxu0 0.0
      %3200 = vmatpush.msra.mxu0 0.0
      %3201 = vmatpush.msra.mxu0 0.0
      %3202 = vmatpush.msra.mxu0 0.0
      %3203 = vmatpush.msra.mxu0 0.0
      %3204 = vmatpush.msra.mxu0 0.0
      %3205 = vmatpush.msra.mxu0 0.0
      %3206 = vmatpush.msra.mxu0 0.0
      %3207 = vmatpush.msra.mxu0 0.0
      %3208 = vmatpush.msra.mxu0 0.0
      %3209 = vmatpush.msra.mxu0 %v3088
      %3210 = vmatmul.f32.gmra.mxu0 %v3192
      %v3211 = vpop.f32.mrf.mxu0
      %v3212 = vadd.f32 0.0, %v3211
      %3213 = vdwg.mxu0
      %3214 = vrot.lane.b32.xlu0 %v3058, 96
      %v3215 = vpop.permute.xlu0 %3214
      %3216 = vrot.lane.b32.xlu0 %v3072, 96
      %v3217 = vpop.permute.xlu0 %3216
      %v3218 = vsel %vm1469, %v3215, 0
      %v3220 = vsel %vm1469, %v3217, 0
      %3222 = vmatpush.xpose.msra.mxu0 0.0
      %3223 = vmatpush.xpose.msra.mxu0 0.0
      %3224 = vmatpush.xpose.msra.mxu0 0.0
      %3225 = vmatpush.xpose.msra.mxu0 0.0
      %3226 = vmatpush.xpose.msra.mxu0 0.0
      %3227 = vmatpush.xpose.msra.mxu0 0.0
      %3228 = vmatpush.xpose.msra.mxu0 0.0
      %3229 = vmatpush.xpose.msra.mxu0 0.0
      %3230 = vmatpush.xpose.msra.mxu0 0.0
      %3231 = vmatpush.xpose.msra.mxu0 0.0
      %3232 = vmatpush.xpose.msra.mxu0 0.0
      %3233 = vmatpush.xpose.msra.mxu0 0.0
      %3234 = vmatpush.xpose.msra.mxu0 0.0
      %3235 = vmatpush.xpose.msra.mxu0 0.0
      %3236 = vmatpush.xpose.msra.mxu0 0.0
      %3237 = vmatpush.xpose.msra.mxu0 %v3220
      %3238 = vmatmul.f32.gmra.mxu0 %v3218
      %v3239 = vpop.f32.mrf.mxu0
      %v3240 = vadd.f32 0.0, %v3239
      %3241 = vdwg.mxu0
      %3242 = vrot.lane.b32.xlu0 %v3060, 96
      %v3243 = vpop.permute.xlu0 %3242
      %3244 = vrot.lane.b32.xlu0 %v3074, 96
      %v3245 = vpop.permute.xlu0 %3244
      %v3246 = vsel %vm1469, %v3243, 0
      %v3248 = vsel %vm1469, %v3245, 0
      %3250 = vmatpush.xpose.msra.mxu0 0.0
      %3251 = vmatpush.xpose.msra.mxu0 0.0
      %3252 = vmatpush.xpose.msra.mxu0 0.0
      %3253 = vmatpush.xpose.msra.mxu0 0.0
      %3254 = vmatpush.xpose.msra.mxu0 0.0
      %3255 = vmatpush.xpose.msra.mxu0 0.0
      %3256 = vmatpush.xpose.msra.mxu0 0.0
      %3257 = vmatpush.xpose.msra.mxu0 0.0
      %3258 = vmatpush.xpose.msra.mxu0 0.0
      %3259 = vmatpush.xpose.msra.mxu0 0.0
      %3260 = vmatpush.xpose.msra.mxu0 0.0
      %3261 = vmatpush.xpose.msra.mxu0 0.0
      %3262 = vmatpush.xpose.msra.mxu0 0.0
      %3263 = vmatpush.xpose.msra.mxu0 0.0
      %3264 = vmatpush.xpose.msra.mxu0 0.0
      %3265 = vmatpush.xpose.msra.mxu0 %v3248
      %3266 = vmatmul.f32.gmra.mxu0 %v3246
      %v3267 = vpop.f32.mrf.mxu0
      %v3268 = vadd.f32 0.0, %v3267
      %3269 = vdwg.mxu0
      %v3270 = vmul.f32 %v3240, 0.17677669
      %v3271 = vmul.f32 %v3268, 0.17677669
      %v3272 = vsel %vm1525, %v3270, -1e+30
      %v3273 = vsel %vm1525, %v3271, -1e+30
      %v3274 = vsel %vm1528, %v3272, -inf
      %3275 = vmax.xlane.f32.xlu0 %v3274
      %v3276 = vpop.xlane.xlu0 %3275
      %v3277 = vsel %vm1528, %v3273, -inf
      %3278 = vmax.xlane.f32.xlu0 %v3277
      %v3279 = vpop.xlane.xlu0 %3278
      %v3280 = vsub.f32 %v3272, %v3276
      %v3281 = vsub.f32 %v3273, %v3279
      %v3282 = vmul.f32 %v3280, 1.442695
      %v3283 = vpow.pop %v3282
      %v3284 = vmul.f32 %v3281, 1.442695
      %v3285 = vpow.pop %v3284
      %v3286 = vsel %vm1528, %v3283, 0.0
      %3287 = vadd.xlane.f32.xlu0 %v3286
      %v3288 = vpop.xlane.xlu0 %3287
      %v3289 = vsel %vm1528, %v3285, 0.0
      %3290 = vadd.xlane.f32.xlu0 %v3289
      %v3291 = vpop.xlane.xlu0 %3290
      %v3292 = vrcp.pop %v3288
      %v3293 = vrcp.pop %v3291
      %v3294 = vmul.f32 %v3283, %v3292
      %v3295 = vmul.f32 %v3285, %v3293
      %3297 = vrot.lane.b32.xlu0 %v3086, 96
      %v3298 = vpop.permute.xlu0 %3297
      %v3301 = vsel %vm1528, %v3294, 0
      %3303 = vmatpush.msra.mxu0 0.0
      %3304 = vmatpush.msra.mxu0 0.0
      %3305 = vmatpush.msra.mxu0 0.0
      %3306 = vmatpush.msra.mxu0 0.0
      %3307 = vmatpush.msra.mxu0 0.0
      %3308 = vmatpush.msra.mxu0 0.0
      %3309 = vmatpush.msra.mxu0 0.0
      %3310 = vmatpush.msra.mxu0 0.0
      %3311 = vmatpush.msra.mxu0 0.0
      %3312 = vmatpush.msra.mxu0 0.0
      %3313 = vmatpush.msra.mxu0 0.0
      %3314 = vmatpush.msra.mxu0 0.0
      %3315 = vmatpush.msra.mxu0 0.0
      %3316 = vmatpush.msra.mxu0 0.0
      %3317 = vmatpush.msra.mxu0 0.0
      %3318 = vmatpush.msra.mxu0 %v3298
      %3319 = vmatmul.f32.gmra.mxu0 %v3301
      %v3320 = vpop.f32.mrf.mxu0
      %v3321 = vadd.f32 0.0, %v3320
      %3322 = vdwg.mxu0
      %3324 = vrot.lane.b32.xlu0 %v3088, 96
      %v3325 = vpop.permute.xlu0 %3324
      %v3328 = vsel %vm1528, %v3295, 0
      %3330 = vmatpush.msra.mxu0 0.0
      %3331 = vmatpush.msra.mxu0 0.0
      %3332 = vmatpush.msra.mxu0 0.0
      %3333 = vmatpush.msra.mxu0 0.0
      %3334 = vmatpush.msra.mxu0 0.0
      %3335 = vmatpush.msra.mxu0 0.0
      %3336 = vmatpush.msra.mxu0 0.0
      %3337 = vmatpush.msra.mxu0 0.0
      %3338 = vmatpush.msra.mxu0 0.0
      %3339 = vmatpush.msra.mxu0 0.0
      %3340 = vmatpush.msra.mxu0 0.0
      %3341 = vmatpush.msra.mxu0 0.0
      %3342 = vmatpush.msra.mxu0 0.0
      %3343 = vmatpush.msra.mxu0 0.0
      %3344 = vmatpush.msra.mxu0 0.0
      %3345 = vmatpush.msra.mxu0 %v3325
      %3346 = vmatmul.f32.gmra.mxu0 %v3328
      %v3347 = vpop.f32.mrf.mxu0
      %v3348 = vadd.f32 0.0, %v3347
      %3349 = vdwg.mxu0
      %3350 = vrot.lane.b32.xlu0 %v3058, 64
      %v3351 = vpop.permute.xlu0 %3350
      %3352 = vrot.lane.b32.xlu0 %v3072, 64
      %v3353 = vpop.permute.xlu0 %3352
      %v3354 = vsel %vm1469, %v3351, 0
      %v3356 = vsel %vm1469, %v3353, 0
      %3358 = vmatpush.xpose.msra.mxu0 0.0
      %3359 = vmatpush.xpose.msra.mxu0 0.0
      %3360 = vmatpush.xpose.msra.mxu0 0.0
      %3361 = vmatpush.xpose.msra.mxu0 0.0
      %3362 = vmatpush.xpose.msra.mxu0 0.0
      %3363 = vmatpush.xpose.msra.mxu0 0.0
      %3364 = vmatpush.xpose.msra.mxu0 0.0
      %3365 = vmatpush.xpose.msra.mxu0 0.0
      %3366 = vmatpush.xpose.msra.mxu0 0.0
      %3367 = vmatpush.xpose.msra.mxu0 0.0
      %3368 = vmatpush.xpose.msra.mxu0 0.0
      %3369 = vmatpush.xpose.msra.mxu0 0.0
      %3370 = vmatpush.xpose.msra.mxu0 0.0
      %3371 = vmatpush.xpose.msra.mxu0 0.0
      %3372 = vmatpush.xpose.msra.mxu0 0.0
      %3373 = vmatpush.xpose.msra.mxu0 %v3356
      %3374 = vmatmul.f32.gmra.mxu0 %v3354
      %v3375 = vpop.f32.mrf.mxu0
      %v3376 = vadd.f32 0.0, %v3375
      %3377 = vdwg.mxu0
      %3378 = vrot.lane.b32.xlu0 %v3060, 64
      %v3379 = vpop.permute.xlu0 %3378
      %3380 = vrot.lane.b32.xlu0 %v3074, 64
      %v3381 = vpop.permute.xlu0 %3380
      %v3382 = vsel %vm1469, %v3379, 0
      %v3384 = vsel %vm1469, %v3381, 0
      %3386 = vmatpush.xpose.msra.mxu0 0.0
      %3387 = vmatpush.xpose.msra.mxu0 0.0
      %3388 = vmatpush.xpose.msra.mxu0 0.0
      %3389 = vmatpush.xpose.msra.mxu0 0.0
      %3390 = vmatpush.xpose.msra.mxu0 0.0
      %3391 = vmatpush.xpose.msra.mxu0 0.0
      %3392 = vmatpush.xpose.msra.mxu0 0.0
      %3393 = vmatpush.xpose.msra.mxu0 0.0
      %3394 = vmatpush.xpose.msra.mxu0 0.0
      %3395 = vmatpush.xpose.msra.mxu0 0.0
      %3396 = vmatpush.xpose.msra.mxu0 0.0
      %3397 = vmatpush.xpose.msra.mxu0 0.0
      %3398 = vmatpush.xpose.msra.mxu0 0.0
      %3399 = vmatpush.xpose.msra.mxu0 0.0
      %3400 = vmatpush.xpose.msra.mxu0 0.0
      %3401 = vmatpush.xpose.msra.mxu0 %v3384
      %3402 = vmatmul.f32.gmra.mxu0 %v3382
      %v3403 = vpop.f32.mrf.mxu0
      %v3404 = vadd.f32 0.0, %v3403
      %3405 = vdwg.mxu0
      %v3406 = vmul.f32 %v3376, 0.17677669
      %v3407 = vmul.f32 %v3404, 0.17677669
      %v3408 = vsel %vm1525, %v3406, -1e+30
      %v3409 = vsel %vm1525, %v3407, -1e+30
      %v3410 = vsel %vm1528, %v3408, -inf
      %3411 = vmax.xlane.f32.xlu0 %v3410
      %v3412 = vpop.xlane.xlu0 %3411
      %v3413 = vsel %vm1528, %v3409, -inf
      %3414 = vmax.xlane.f32.xlu0 %v3413
      %v3415 = vpop.xlane.xlu0 %3414
      %v3416 = vsub.f32 %v3408, %v3412
      %v3417 = vsub.f32 %v3409, %v3415
      %v3418 = vmul.f32 %v3416, 1.442695
      %v3419 = vpow.pop %v3418
      %v3420 = vmul.f32 %v3417, 1.442695
      %v3421 = vpow.pop %v3420
      %v3422 = vsel %vm1528, %v3419, 0.0
      %3423 = vadd.xlane.f32.xlu0 %v3422
      %v3424 = vpop.xlane.xlu0 %3423
      %v3425 = vsel %vm1528, %v3421, 0.0
      %3426 = vadd.xlane.f32.xlu0 %v3425
      %v3427 = vpop.xlane.xlu0 %3426
      %v3428 = vrcp.pop %v3424
      %v3429 = vrcp.pop %v3427
      %v3430 = vmul.f32 %v3419, %v3428
      %v3431 = vmul.f32 %v3421, %v3429
      %3432 = vrot.lane.b32.xlu0 %v3086, 64
      %v3433 = vpop.permute.xlu0 %3432
      %v3436 = vsel %vm1528, %v3430, 0
      %3438 = vmatpush.msra.mxu0 0.0
      %3439 = vmatpush.msra.mxu0 0.0
      %3440 = vmatpush.msra.mxu0 0.0
      %3441 = vmatpush.msra.mxu0 0.0
      %3442 = vmatpush.msra.mxu0 0.0
      %3443 = vmatpush.msra.mxu0 0.0
      %3444 = vmatpush.msra.mxu0 0.0
      %3445 = vmatpush.msra.mxu0 0.0
      %3446 = vmatpush.msra.mxu0 0.0
      %3447 = vmatpush.msra.mxu0 0.0
      %3448 = vmatpush.msra.mxu0 0.0
      %3449 = vmatpush.msra.mxu0 0.0
      %3450 = vmatpush.msra.mxu0 0.0
      %3451 = vmatpush.msra.mxu0 0.0
      %3452 = vmatpush.msra.mxu0 0.0
      %3453 = vmatpush.msra.mxu0 %v3433
      %3454 = vmatmul.f32.gmra.mxu0 %v3436
      %v3455 = vpop.f32.mrf.mxu0
      %v3456 = vadd.f32 0.0, %v3455
      %3457 = vdwg.mxu0
      %3458 = vrot.lane.b32.xlu0 %v3088, 64
      %v3459 = vpop.permute.xlu0 %3458
      %v3462 = vsel %vm1528, %v3431, 0
      %3464 = vmatpush.msra.mxu0 0.0
      %3465 = vmatpush.msra.mxu0 0.0
      %3466 = vmatpush.msra.mxu0 0.0
      %3467 = vmatpush.msra.mxu0 0.0
      %3468 = vmatpush.msra.mxu0 0.0
      %3469 = vmatpush.msra.mxu0 0.0
      %3470 = vmatpush.msra.mxu0 0.0
      %3471 = vmatpush.msra.mxu0 0.0
      %3472 = vmatpush.msra.mxu0 0.0
      %3473 = vmatpush.msra.mxu0 0.0
      %3474 = vmatpush.msra.mxu0 0.0
      %3475 = vmatpush.msra.mxu0 0.0
      %3476 = vmatpush.msra.mxu0 0.0
      %3477 = vmatpush.msra.mxu0 0.0
      %3478 = vmatpush.msra.mxu0 0.0
      %3479 = vmatpush.msra.mxu0 %v3459
      %3480 = vmatmul.f32.gmra.mxu0 %v3462
      %v3481 = vpop.f32.mrf.mxu0
      %v3482 = vadd.f32 0.0, %v3481
      %3483 = vdwg.mxu0
      %3484 = vrot.lane.b32.xlu0 %v3058, 32
      %v3485 = vpop.permute.xlu0 %3484
      %3486 = vrot.lane.b32.xlu0 %v3072, 32
      %v3487 = vpop.permute.xlu0 %3486
      %v3488 = vsel %vm1469, %v3485, 0
      %v3490 = vsel %vm1469, %v3487, 0
      %3492 = vmatpush.xpose.msra.mxu0 0.0
      %3493 = vmatpush.xpose.msra.mxu0 0.0
      %3494 = vmatpush.xpose.msra.mxu0 0.0
      %3495 = vmatpush.xpose.msra.mxu0 0.0
      %3496 = vmatpush.xpose.msra.mxu0 0.0
      %3497 = vmatpush.xpose.msra.mxu0 0.0
      %3498 = vmatpush.xpose.msra.mxu0 0.0
      %3499 = vmatpush.xpose.msra.mxu0 0.0
      %3500 = vmatpush.xpose.msra.mxu0 0.0
      %3501 = vmatpush.xpose.msra.mxu0 0.0
      %3502 = vmatpush.xpose.msra.mxu0 0.0
      %3503 = vmatpush.xpose.msra.mxu0 0.0
      %3504 = vmatpush.xpose.msra.mxu0 0.0
      %3505 = vmatpush.xpose.msra.mxu0 0.0
      %3506 = vmatpush.xpose.msra.mxu0 0.0
      %3507 = vmatpush.xpose.msra.mxu0 %v3490
      %3508 = vmatmul.f32.gmra.mxu0 %v3488
      %v3509 = vpop.f32.mrf.mxu0
      %v3510 = vadd.f32 0.0, %v3509
      %3511 = vdwg.mxu0
      %3512 = vrot.lane.b32.xlu0 %v3060, 32
      %v3513 = vpop.permute.xlu0 %3512
      %3514 = vrot.lane.b32.xlu0 %v3074, 32
      %v3515 = vpop.permute.xlu0 %3514
      %v3516 = vsel %vm1469, %v3513, 0
      %v3518 = vsel %vm1469, %v3515, 0
      %3520 = vmatpush.xpose.msra.mxu0 0.0
      %3521 = vmatpush.xpose.msra.mxu0 0.0
      %3522 = vmatpush.xpose.msra.mxu0 0.0
      %3523 = vmatpush.xpose.msra.mxu0 0.0
      %3524 = vmatpush.xpose.msra.mxu0 0.0
      %3525 = vmatpush.xpose.msra.mxu0 0.0
      %3526 = vmatpush.xpose.msra.mxu0 0.0
      %3527 = vmatpush.xpose.msra.mxu0 0.0
      %3528 = vmatpush.xpose.msra.mxu0 0.0
      %3529 = vmatpush.xpose.msra.mxu0 0.0
      %3530 = vmatpush.xpose.msra.mxu0 0.0
      %3531 = vmatpush.xpose.msra.mxu0 0.0
      %3532 = vmatpush.xpose.msra.mxu0 0.0
      %3533 = vmatpush.xpose.msra.mxu0 0.0
      %3534 = vmatpush.xpose.msra.mxu0 0.0
      %3535 = vmatpush.xpose.msra.mxu0 %v3518
      %3536 = vmatmul.f32.gmra.mxu0 %v3516
      %v3537 = vpop.f32.mrf.mxu0
      %v3538 = vadd.f32 0.0, %v3537
      %3539 = vdwg.mxu0
      %v3540 = vmul.f32 %v3510, 0.17677669
      %v3541 = vmul.f32 %v3538, 0.17677669
      %v3542 = vsel %vm1525, %v3540, -1e+30
      %v3543 = vsel %vm1525, %v3541, -1e+30
      %v3544 = vsel %vm1528, %v3542, -inf
      %3545 = vmax.xlane.f32.xlu0 %v3544
      %v3546 = vpop.xlane.xlu0 %3545
      %v3547 = vsel %vm1528, %v3543, -inf
      %3548 = vmax.xlane.f32.xlu0 %v3547
      %v3549 = vpop.xlane.xlu0 %3548
      %v3550 = vsub.f32 %v3542, %v3546
      %v3551 = vsub.f32 %v3543, %v3549
      %v3552 = vmul.f32 %v3550, 1.442695
      %v3553 = vpow.pop %v3552
      %v3554 = vmul.f32 %v3551, 1.442695
      %v3555 = vpow.pop %v3554
      %v3556 = vsel %vm1528, %v3553, 0.0
      %3557 = vadd.xlane.f32.xlu0 %v3556
      %v3558 = vpop.xlane.xlu0 %3557
      %v3559 = vsel %vm1528, %v3555, 0.0
      %3560 = vadd.xlane.f32.xlu0 %v3559
      %v3561 = vpop.xlane.xlu0 %3560
      %v3562 = vrcp.pop %v3558
      %v3563 = vrcp.pop %v3561
      %v3564 = vmul.f32 %v3553, %v3562
      %v3565 = vmul.f32 %v3555, %v3563
      %3566 = vrot.lane.b32.xlu0 %v3086, 32
      %v3567 = vpop.permute.xlu0 %3566
      %v3570 = vsel %vm1528, %v3564, 0
      %3572 = vmatpush.msra.mxu0 0.0
      %3573 = vmatpush.msra.mxu0 0.0
      %3574 = vmatpush.msra.mxu0 0.0
      %3575 = vmatpush.msra.mxu0 0.0
      %3576 = vmatpush.msra.mxu0 0.0
      %3577 = vmatpush.msra.mxu0 0.0
      %3578 = vmatpush.msra.mxu0 0.0
      %3579 = vmatpush.msra.mxu0 0.0
      %3580 = vmatpush.msra.mxu0 0.0
      %3581 = vmatpush.msra.mxu0 0.0
      %3582 = vmatpush.msra.mxu0 0.0
      %3583 = vmatpush.msra.mxu0 0.0
      %3584 = vmatpush.msra.mxu0 0.0
      %3585 = vmatpush.msra.mxu0 0.0
      %3586 = vmatpush.msra.mxu0 0.0
      %3587 = vmatpush.msra.mxu0 %v3567
      %3588 = vmatmul.f32.gmra.mxu0 %v3570
      %v3589 = vpop.f32.mrf.mxu0
      %v3590 = vadd.f32 0.0, %v3589
      %3591 = vdwg.mxu0
      %3592 = vrot.lane.b32.xlu0 %v3088, 32
      %v3593 = vpop.permute.xlu0 %3592
      %v3596 = vsel %vm1528, %v3565, 0
      %3598 = vmatpush.msra.mxu0 0.0
      %3599 = vmatpush.msra.mxu0 0.0
      %3600 = vmatpush.msra.mxu0 0.0
      %3601 = vmatpush.msra.mxu0 0.0
      %3602 = vmatpush.msra.mxu0 0.0
      %3603 = vmatpush.msra.mxu0 0.0
      %3604 = vmatpush.msra.mxu0 0.0
      %3605 = vmatpush.msra.mxu0 0.0
      %3606 = vmatpush.msra.mxu0 0.0
      %3607 = vmatpush.msra.mxu0 0.0
      %3608 = vmatpush.msra.mxu0 0.0
      %3609 = vmatpush.msra.mxu0 0.0
      %3610 = vmatpush.msra.mxu0 0.0
      %3611 = vmatpush.msra.mxu0 0.0
      %3612 = vmatpush.msra.mxu0 0.0
      %3613 = vmatpush.msra.mxu0 %v3593
      %3614 = vmatmul.f32.gmra.mxu0 %v3596
      %v3615 = vpop.f32.mrf.mxu0
      %v3616 = vadd.f32 0.0, %v3615
      %3617 = vdwg.mxu0
      %3620 = vrot.lane.b32.xlu0 %v3321, 32
      %v3621 = vpop.permute.xlu0 %3620
      %3622 = vrot.lane.b32.xlu0 %v3348, 32
      %v3623 = vpop.permute.xlu0 %3622
      %3628 = vrot.lane.b32.xlu0 %v3456, 64
      %v3629 = vpop.permute.xlu0 %3628
      %3630 = vrot.lane.b32.xlu0 %v3482, 64
      %v3631 = vpop.permute.xlu0 %3630
      %3636 = vrot.lane.b32.xlu0 %v3590, 96
      %v3637 = vpop.permute.xlu0 %3636
      %3638 = vrot.lane.b32.xlu0 %v3616, 96
      %v3639 = vpop.permute.xlu0 %3638
      %v3642 = vsel %vm1469, %v3189, %v3621
      %v3643 = vsel %vm1469, %v3212, %v3623
      %v3644 = vsel %vm2027, %v3642, %v3629
      %v3645 = vsel %vm2027, %v3643, %v3631
      %v3646 = vsel %vm2030, %v3644, %v3637
      %v3647 = vsel %vm2030, %v3645, %v3639
      %s3648 = scalar_lea.vmem %s7, 64
      %v3649 = vld [vmem:[%s3648] sm:$0xf]
      %v3650 = vld [vmem:[%s3648 + $0x4] sm:$0xf]
      %v3651 = vld [vmem:[%s3648 + $0x8] sm:$0xf]
      %v3652 = vld [vmem:[%s3648 + $0xc] sm:$0xf]
      %v3653 = vld [vmem:[%s3648 + $0x10] sm:$0xf]
      %v3654 = vld [vmem:[%s3648 + $0x14] sm:$0xf]
      %v3655 = vld [vmem:[%s3648 + $0x18] sm:$0xf]
      %v3656 = vld [vmem:[%s3648 + $0x1c] sm:$0xf]
      %v3657 = vld [vmem:[%s3648 + $0x20] sm:$0xf]
      %v3658 = vld [vmem:[%s3648 + $0x24] sm:$0xf]
      %v3659 = vld [vmem:[%s3648 + $0x28] sm:$0xf]
      %v3660 = vld [vmem:[%s3648 + $0x2c] sm:$0xf]
      %v3661 = vld [vmem:[%s3648 + $0x30] sm:$0xf]
      %v3662 = vld [vmem:[%s3648 + $0x34] sm:$0xf]
      %v3663 = vld [vmem:[%s3648 + $0x38] sm:$0xf]
      %v3664 = vld [vmem:[%s3648 + $0x3c] sm:$0xf]
      %s3665 = scalar_lea.vmem %s8, 1
      %v3666 = vld [vmem:[%s3665] sm:$0x1]
      %v3667 = vpack.c.bf16 %v3647, %v3646
      %v3669 = vperm.slane %v3666, 0
      %v3687 = vunpack.c.l.b16 %v3649
      %v3688 = vunpack.c.l.b16 %v3650
      %v3689 = vunpack.c.l.b16 %v3651
      %v3690 = vunpack.c.l.b16 %v3652
      %v3691 = vunpack.c.l.b16 %v3653
      %v3692 = vunpack.c.l.b16 %v3654
      %v3693 = vunpack.c.l.b16 %v3655
      %v3694 = vunpack.c.l.b16 %v3656
      %v3695 = vunpack.c.l.b16 %v3657
      %v3696 = vunpack.c.l.b16 %v3658
      %v3697 = vunpack.c.l.b16 %v3659
      %v3698 = vunpack.c.l.b16 %v3660
      %v3699 = vunpack.c.l.b16 %v3661
      %v3700 = vunpack.c.l.b16 %v3662
      %v3701 = vunpack.c.l.b16 %v3663
      %v3702 = vunpack.c.l.b16 %v3664
      %v3703 = vpack.c.b16 %v3688, %v3687
      %v3704 = vpack.c.b16 %v3690, %v3689
      %v3705 = vpack.c.b16 %v3692, %v3691
      %v3706 = vpack.c.b16 %v3694, %v3693
      %v3707 = vpack.c.b16 %v3696, %v3695
      %v3708 = vpack.c.b16 %v3698, %v3697
      %v3709 = vpack.c.b16 %v3700, %v3699
      %v3710 = vpack.c.b16 %v3702, %v3701
      %3719 = vmatpush.bf16.msra.mxu0 %v3710
      %3720 = vmatpush.bf16.msra.mxu0 %v3709
      %3721 = vmatpush.bf16.msra.mxu0 %v3708
      %3722 = vmatpush.bf16.msra.mxu0 %v3707
      %3723 = vmatpush.bf16.msra.mxu0 %v3706
      %3724 = vmatpush.bf16.msra.mxu0 %v3705
      %3725 = vmatpush.bf16.msra.mxu0 %v3704
      %3726 = vmatpush.bf16.msra.mxu0 %v3703
      %3727 = vmatmul.bf16.gmra.mxu0 %v3667
      %v3728 = vpop.f32.mrf.mxu0
      %v3729 = vadd.f32 %v3669, %v3728
      %v3730 = vpop.f32.mrf.mxu0
      %v3731 = vadd.f32 %v3669, %v3730
      %3732 = vdwg.mxu0
      %v3733 = vadd.f32 %v2821, %v3729
      %v3734 = vadd.f32 %v2822, %v3731
      %s3735 = scalar_lea.vmem %s9, 1
      %v3736 = vld [vmem:[%s3735] sm:$0x1]
      %s3737 = scalar_lea.vmem %s10, 1
      %v3738 = vld [vmem:[%s3737] sm:$0x1]
      %3739 = vadd.xlane.f32.xlu0 %v3733
      %v3740 = vpop.xlane.xlu0 %3739
      %3741 = vadd.xlane.f32.xlu0 %v3734
      %v3742 = vpop.xlane.xlu0 %3741
      %v3743 = vmul.f32 %v3740, %v1211
      %v3744 = vmul.f32 %v3742, %v1211
      %v3745 = vsub.f32 %v3733, %v3743
      %v3746 = vsub.f32 %v3734, %v3744
      %v3747 = vmul.f32 %v3745, %v3745
      %v3748 = vmul.f32 %v3746, %v3746
      %3749 = vadd.xlane.f32.xlu0 %v3747
      %v3750 = vpop.xlane.xlu0 %3749
      %3751 = vadd.xlane.f32.xlu0 %v3748
      %v3752 = vpop.xlane.xlu0 %3751
      %v3753 = vmul.f32 %v3750, %v1211
      %v3754 = vmul.f32 %v3752, %v1211
      %v3755 = vadd.f32 %v3753, 1e-06
      %v3756 = vadd.f32 %v3754, 1e-06
      %v3757 = vrsqrt.pop %v3755
      %v3758 = vmul.f32 %v3757, %v3755
      %v3759 = vmul.f32 %v3758, %v3757
      %v3760 = vmul.f32 0.5, %v3759
      %v3761 = vsub.f32 1.5, %v3760
      %v3762 = vmul.f32 %v3757, %v3761
      %vm3763 = vweird.f32 %v3755
      %vm3764 = vweird.f32 %v3757
      %vm3765 = vmor %vm3763, %vm3764
      %v3766 = vsel %vm3765, %v3757, %v3762
      %v3767 = vrsqrt.pop %v3756
      %v3768 = vmul.f32 %v3767, %v3756
      %v3769 = vmul.f32 %v3768, %v3767
      %v3770 = vmul.f32 0.5, %v3769
      %v3771 = vsub.f32 1.5, %v3770
      %v3772 = vmul.f32 %v3767, %v3771
      %vm3773 = vweird.f32 %v3756
      %vm3774 = vweird.f32 %v3767
      %vm3775 = vmor %vm3773, %vm3774
      %v3776 = vsel %vm3775, %v3767, %v3772
      %v3777 = vmul.f32 %v3745, %v3766
      %v3778 = vmul.f32 %v3746, %v3776
      %v3780 = vperm.slane %v3736, 0
      %v3782 = vmul.f32 %v3777, %v3780
      %v3783 = vmul.f32 %v3778, %v3780
      %v3785 = vperm.slane %v3738, 0
      %v3787 = vadd.f32 %v3782, %v3785
      %v3788 = vadd.f32 %v3783, %v3785
      %s3789 = scalar_lea.vmem %s11, 256
      %v3790 = vld [vmem:[%s3789] sm:$0xff]
      %v3791 = vld [vmem:[%s3789 + $0x8] sm:$0xff]
      %v3792 = vld [vmem:[%s3789 + $0x10] sm:$0xff]
      %v3793 = vld [vmem:[%s3789 + $0x18] sm:$0xff]
      %v3794 = vld [vmem:[%s3789 + $0x20] sm:$0xff]
      %v3795 = vld [vmem:[%s3789 + $0x28] sm:$0xff]
      %v3796 = vld [vmem:[%s3789 + $0x30] sm:$0xff]
      %v3797 = vld [vmem:[%s3789 + $0x38] sm:$0xff]
      %v3798 = vld [vmem:[%s3789 + $0x40] sm:$0xff]
      %v3799 = vld [vmem:[%s3789 + $0x48] sm:$0xff]
      %v3800 = vld [vmem:[%s3789 + $0x50] sm:$0xff]
      %v3801 = vld [vmem:[%s3789 + $0x58] sm:$0xff]
      %v3802 = vld [vmem:[%s3789 + $0x60] sm:$0xff]
      %v3803 = vld [vmem:[%s3789 + $0x68] sm:$0xff]
      %v3804 = vld [vmem:[%s3789 + $0x70] sm:$0xff]
      %v3805 = vld [vmem:[%s3789 + $0x78] sm:$0xff]
      %v3806 = vld [vmem:[%s3789 + $0x80] sm:$0xff]
      %v3807 = vld [vmem:[%s3789 + $0x88] sm:$0xff]
      %v3808 = vld [vmem:[%s3789 + $0x90] sm:$0xff]
      %v3809 = vld [vmem:[%s3789 + $0x98] sm:$0xff]
      %v3810 = vld [vmem:[%s3789 + $0xa0] sm:$0xff]
      %v3811 = vld [vmem:[%s3789 + $0xa8] sm:$0xff]
      %v3812 = vld [vmem:[%s3789 + $0xb0] sm:$0xff]
      %v3813 = vld [vmem:[%s3789 + $0xb8] sm:$0xff]
      %v3814 = vld [vmem:[%s3789 + $0xc0] sm:$0xff]
      %v3815 = vld [vmem:[%s3789 + $0xc8] sm:$0xff]
      %v3816 = vld [vmem:[%s3789 + $0xd0] sm:$0xff]
      %v3817 = vld [vmem:[%s3789 + $0xd8] sm:$0xff]
      %v3818 = vld [vmem:[%s3789 + $0xe0] sm:$0xff]
      %v3819 = vld [vmem:[%s3789 + $0xe8] sm:$0xff]
      %v3820 = vld [vmem:[%s3789 + $0xf0] sm:$0xff]
      %v3821 = vld [vmem:[%s3789 + $0xf8] sm:$0xff]
      %s3822 = scalar_lea.vmem %s12, 4
      %v3823 = vld [vmem:[%s3822] sm:$0xf]
      %v3824 = vpack.c.bf16 %v3788, %v3787
      %v3826 = vperm.slane %v3823, 0
      %v3827 = vperm.slane %v3823, 1
      %v3828 = vperm.slane %v3823, 2
      %v3829 = vperm.slane %v3823, 3
      %v3866 = vunpack.c.l.b16 %v3790
      %v3867 = vunpack.c.h.b16 %v3790
      %v3868 = vunpack.c.l.b16 %v3791
      %v3869 = vunpack.c.h.b16 %v3791
      %v3870 = vunpack.c.l.b16 %v3792
      %v3871 = vunpack.c.h.b16 %v3792
      %v3872 = vunpack.c.l.b16 %v3793
      %v3873 = vunpack.c.h.b16 %v3793
      %v3874 = vunpack.c.l.b16 %v3794
      %v3875 = vunpack.c.h.b16 %v3794
      %v3876 = vunpack.c.l.b16 %v3795
      %v3877 = vunpack.c.h.b16 %v3795
      %v3878 = vunpack.c.l.b16 %v3796
      %v3879 = vunpack.c.h.b16 %v3796
      %v3880 = vunpack.c.l.b16 %v3797
      %v3881 = vunpack.c.h.b16 %v3797
      %v3882 = vunpack.c.l.b16 %v3798
      %v3883 = vunpack.c.h.b16 %v3798
      %v3884 = vunpack.c.l.b16 %v3799
      %v3885 = vunpack.c.h.b16 %v3799
      %v3886 = vunpack.c.l.b16 %v3800
      %v3887 = vunpack.c.h.b16 %v3800
      %v3888 = vunpack.c.l.b16 %v3801
      %v3889 = vunpack.c.h.b16 %v3801
      %v3890 = vunpack.c.l.b16 %v3802
      %v3891 = vunpack.c.h.b16 %v3802
      %v3892 = vunpack.c.l.b16 %v3803
      %v3893 = vunpack.c.h.b16 %v3803
      %v3894 = vunpack.c.l.b16 %v3804
      %v3895 = vunpack.c.h.b16 %v3804
      %v3896 = vunpack.c.l.b16 %v3805
      %v3897 = vunpack.c.h.b16 %v3805
      %v3898 = vunpack.c.l.b16 %v3806
      %v3899 = vunpack.c.h.b16 %v3806
      %v3900 = vunpack.c.l.b16 %v3807
      %v3901 = vunpack.c.h.b16 %v3807
      %v3902 = vunpack.c.l.b16 %v3808
      %v3903 = vunpack.c.h.b16 %v3808
      %v3904 = vunpack.c.l.b16 %v3809
      %v3905 = vunpack.c.h.b16 %v3809
      %v3906 = vunpack.c.l.b16 %v3810
      %v3907 = vunpack.c.h.b16 %v3810
      %v3908 = vunpack.c.l.b16 %v3811
      %v3909 = vunpack.c.h.b16 %v3811
      %v3910 = vunpack.c.l.b16 %v3812
      %v3911 = vunpack.c.h.b16 %v3812
      %v3912 = vunpack.c.l.b16 %v3813
      %v3913 = vunpack.c.h.b16 %v3813
      %v3914 = vunpack.c.l.b16 %v3814
      %v3915 = vunpack.c.h.b16 %v3814
      %v3916 = vunpack.c.l.b16 %v3815
      %v3917 = vunpack.c.h.b16 %v3815
      %v3918 = vunpack.c.l.b16 %v3816
      %v3919 = vunpack.c.h.b16 %v3816
      %v3920 = vunpack.c.l.b16 %v3817
      %v3921 = vunpack.c.h.b16 %v3817
      %v3922 = vunpack.c.l.b16 %v3818
      %v3923 = vunpack.c.h.b16 %v3818
      %v3924 = vunpack.c.l.b16 %v3819
      %v3925 = vunpack.c.h.b16 %v3819
      %v3926 = vunpack.c.l.b16 %v3820
      %v3927 = vunpack.c.h.b16 %v3820
      %v3928 = vunpack.c.l.b16 %v3821
      %v3929 = vunpack.c.h.b16 %v3821
      %v3930 = vpack.c.b16 %v3870, %v3866
      %v3931 = vpack.c.b16 %v3871, %v3867
      %v3932 = vpack.c.b16 %v3872, %v3868
      %v3933 = vpack.c.b16 %v3873, %v3869
      %v3934 = vpack.c.b16 %v3878, %v3874
      %v3935 = vpack.c.b16 %v3879, %v3875
      %v3936 = vpack.c.b16 %v3880, %v3876
      %v3937 = vpack.c.b16 %v3881, %v3877
      %v3938 = vpack.c.b16 %v3886, %v3882
      %v3939 = vpack.c.b16 %v3887, %v3883
      %v3940 = vpack.c.b16 %v3888, %v3884
      %v3941 = vpack.c.b16 %v3889, %v3885
      %v3942 = vpack.c.b16 %v3894, %v3890
      %v3943 = vpack.c.b16 %v3895, %v3891
      %v3944 = vpack.c.b16 %v3896, %v3892
      %v3945 = vpack.c.b16 %v3897, %v3893
      %v3946 = vpack.c.b16 %v3902, %v3898
      %v3947 = vpack.c.b16 %v3903, %v3899
      %v3948 = vpack.c.b16 %v3904, %v3900
      %v3949 = vpack.c.b16 %v3905, %v3901
      %v3950 = vpack.c.b16 %v3910, %v3906
      %v3951 = vpack.c.b16 %v3911, %v3907
      %v3952 = vpack.c.b16 %v3912, %v3908
      %v3953 = vpack.c.b16 %v3913, %v3909
      %v3954 = vpack.c.b16 %v3918, %v3914
      %v3955 = vpack.c.b16 %v3919, %v3915
      %v3956 = vpack.c.b16 %v3920, %v3916
      %v3957 = vpack.c.b16 %v3921, %v3917
      %v3958 = vpack.c.b16 %v3926, %v3922
      %v3959 = vpack.c.b16 %v3927, %v3923
      %v3960 = vpack.c.b16 %v3928, %v3924
      %v3961 = vpack.c.b16 %v3929, %v3925
      %3994 = vmatpush.bf16.msra.mxu0 %v3958
      %3995 = vmatpush.bf16.msra.mxu0 %v3954
      %3996 = vmatpush.bf16.msra.mxu0 %v3950
      %3997 = vmatpush.bf16.msra.mxu0 %v3946
      %3998 = vmatpush.bf16.msra.mxu0 %v3942
      %3999 = vmatpush.bf16.msra.mxu0 %v3938
      %4000 = vmatpush.bf16.msra.mxu0 %v3934
      %4001 = vmatpush.bf16.msra.mxu0 %v3930
      %4002 = vmatmul.bf16.gmra.mxu0 %v3824
      %v4003 = vpop.f32.mrf.mxu0
      %v4004 = vadd.f32 %v3826, %v4003
      %v4005 = vpop.f32.mrf.mxu0
      %v4006 = vadd.f32 %v3826, %v4005
      %4007 = vdwg.mxu0
      %4008 = vmatpush.bf16.msra.mxu0 %v3959
      %4009 = vmatpush.bf16.msra.mxu0 %v3955
      %4010 = vmatpush.bf16.msra.mxu0 %v3951
      %4011 = vmatpush.bf16.msra.mxu0 %v3947
      %4012 = vmatpush.bf16.msra.mxu0 %v3943
      %4013 = vmatpush.bf16.msra.mxu0 %v3939
      %4014 = vmatpush.bf16.msra.mxu0 %v3935
      %4015 = vmatpush.bf16.msra.mxu0 %v3931
      %4016 = vmatmul.bf16.gmra.mxu0 %v3824
      %v4017 = vpop.f32.mrf.mxu0
      %v4018 = vadd.f32 %v3827, %v4017
      %v4019 = vpop.f32.mrf.mxu0
      %v4020 = vadd.f32 %v3827, %v4019
      %4021 = vdwg.mxu0
      %4022 = vmatpush.bf16.msra.mxu0 %v3960
      %4023 = vmatpush.bf16.msra.mxu0 %v3956
      %4024 = vmatpush.bf16.msra.mxu0 %v3952
      %4025 = vmatpush.bf16.msra.mxu0 %v3948
      %4026 = vmatpush.bf16.msra.mxu0 %v3944
      %4027 = vmatpush.bf16.msra.mxu0 %v3940
      %4028 = vmatpush.bf16.msra.mxu0 %v3936
      %4029 = vmatpush.bf16.msra.mxu0 %v3932
      %4030 = vmatmul.bf16.gmra.mxu0 %v3824
      %v4031 = vpop.f32.mrf.mxu0
      %v4032 = vadd.f32 %v3828, %v4031
      %v4033 = vpop.f32.mrf.mxu0
      %v4034 = vadd.f32 %v3828, %v4033
      %4035 = vdwg.mxu0
      %4036 = vmatpush.bf16.msra.mxu0 %v3961
      %4037 = vmatpush.bf16.msra.mxu0 %v3957
      %4038 = vmatpush.bf16.msra.mxu0 %v3953
      %4039 = vmatpush.bf16.msra.mxu0 %v3949
      %4040 = vmatpush.bf16.msra.mxu0 %v3945
      %4041 = vmatpush.bf16.msra.mxu0 %v3941
      %4042 = vmatpush.bf16.msra.mxu0 %v3937
      %4043 = vmatpush.bf16.msra.mxu0 %v3933
      %4044 = vmatmul.bf16.gmra.mxu0 %v3824
      %v4045 = vpop.f32.mrf.mxu0
      %v4046 = vadd.f32 %v3829, %v4045
      %v4047 = vpop.f32.mrf.mxu0
      %v4048 = vadd.f32 %v3829, %v4047
      %4049 = vdwg.mxu0
      %v4050 = vmul.f32 %v4004, %v4004
      %v4051 = vmul.f32 %v4018, %v4018
      %v4052 = vmul.f32 %v4032, %v4032
      %v4053 = vmul.f32 %v4046, %v4046
      %v4054 = vmul.f32 %v4006, %v4006
      %v4055 = vmul.f32 %v4020, %v4020
      %v4056 = vmul.f32 %v4034, %v4034
      %v4057 = vmul.f32 %v4048, %v4048
      %v4058 = vmul.f32 %v4004, %v4050
      %v4059 = vmul.f32 %v4018, %v4051
      %v4060 = vmul.f32 %v4032, %v4052
      %v4061 = vmul.f32 %v4046, %v4053
      %v4062 = vmul.f32 %v4006, %v4054
      %v4063 = vmul.f32 %v4020, %v4055
      %v4064 = vmul.f32 %v4034, %v4056
      %v4065 = vmul.f32 %v4048, %v4057
      %v4066 = vmul.f32 %v4058, 0.044715
      %v4067 = vmul.f32 %v4059, 0.044715
      %v4068 = vmul.f32 %v4060, 0.044715
      %v4069 = vmul.f32 %v4061, 0.044715
      %v4070 = vmul.f32 %v4062, 0.044715
      %v4071 = vmul.f32 %v4063, 0.044715
      %v4072 = vmul.f32 %v4064, 0.044715
      %v4073 = vmul.f32 %v4065, 0.044715
      %v4074 = vadd.f32 %v4004, %v4066
      %v4075 = vadd.f32 %v4018, %v4067
      %v4076 = vadd.f32 %v4032, %v4068
      %v4077 = vadd.f32 %v4046, %v4069
      %v4078 = vadd.f32 %v4006, %v4070
      %v4079 = vadd.f32 %v4020, %v4071
      %v4080 = vadd.f32 %v4034, %v4072
      %v4081 = vadd.f32 %v4048, %v4073
      %v4082 = vmul.f32 %v4074, 0.7978846
      %v4083 = vmul.f32 %v4075, 0.7978846
      %v4084 = vmul.f32 %v4076, 0.7978846
      %v4085 = vmul.f32 %v4077, 0.7978846
      %v4086 = vmul.f32 %v4078, 0.7978846
      %v4087 = vmul.f32 %v4079, 0.7978846
      %v4088 = vmul.f32 %v4080, 0.7978846
      %v4089 = vmul.f32 %v4081, 0.7978846
      %v4090 = vtanh.pop %v4082
      %v4091 = vtanh.pop %v4083
      %v4092 = vtanh.pop %v4084
      %v4093 = vtanh.pop %v4085
      %v4094 = vtanh.pop %v4086
      %v4095 = vtanh.pop %v4087
      %v4096 = vtanh.pop %v4088
      %v4097 = vtanh.pop %v4089
      %v4098 = vadd.f32 %v4090, 1.0
      %v4099 = vadd.f32 %v4091, 1.0
      %v4100 = vadd.f32 %v4092, 1.0
      %v4101 = vadd.f32 %v4093, 1.0
      %v4102 = vadd.f32 %v4094, 1.0
      %v4103 = vadd.f32 %v4095, 1.0
      %v4104 = vadd.f32 %v4096, 1.0
      %v4105 = vadd.f32 %v4097, 1.0
      %v4106 = vmul.f32 %v4098, 0.5
      %v4107 = vmul.f32 %v4099, 0.5
      %v4108 = vmul.f32 %v4100, 0.5
      %v4109 = vmul.f32 %v4101, 0.5
      %v4110 = vmul.f32 %v4102, 0.5
      %v4111 = vmul.f32 %v4103, 0.5
      %v4112 = vmul.f32 %v4104, 0.5
      %v4113 = vmul.f32 %v4105, 0.5
      %v4114 = vmul.f32 %v4004, %v4106
      %v4115 = vmul.f32 %v4018, %v4107
      %v4116 = vmul.f32 %v4032, %v4108
      %v4117 = vmul.f32 %v4046, %v4109
      %v4118 = vmul.f32 %v4006, %v4110
      %v4119 = vmul.f32 %v4020, %v4111
      %v4120 = vmul.f32 %v4034, %v4112
      %v4121 = vmul.f32 %v4048, %v4113
      %s4122 = scalar_lea.vmem %s13, 256
      %v4123 = vld [vmem:[%s4122] sm:$0xf]
      %v4124 = vld [vmem:[%s4122 + $0x4] sm:$0xf]
      %v4125 = vld [vmem:[%s4122 + $0x8] sm:$0xf]
      %v4126 = vld [vmem:[%s4122 + $0xc] sm:$0xf]
      %v4127 = vld [vmem:[%s4122 + $0x10] sm:$0xf]
      %v4128 = vld [vmem:[%s4122 + $0x14] sm:$0xf]
      %v4129 = vld [vmem:[%s4122 + $0x18] sm:$0xf]
      %v4130 = vld [vmem:[%s4122 + $0x1c] sm:$0xf]
      %v4131 = vld [vmem:[%s4122 + $0x20] sm:$0xf]
      %v4132 = vld [vmem:[%s4122 + $0x24] sm:$0xf]
      %v4133 = vld [vmem:[%s4122 + $0x28] sm:$0xf]
      %v4134 = vld [vmem:[%s4122 + $0x2c] sm:$0xf]
      %v4135 = vld [vmem:[%s4122 + $0x30] sm:$0xf]
      %v4136 = vld [vmem:[%s4122 + $0x34] sm:$0xf]
      %v4137 = vld [vmem:[%s4122 + $0x38] sm:$0xf]
      %v4138 = vld [vmem:[%s4122 + $0x3c] sm:$0xf]
      %v4139 = vld [vmem:[%s4122 + $0x40] sm:$0xf]
      %v4140 = vld [vmem:[%s4122 + $0x44] sm:$0xf]
      %v4141 = vld [vmem:[%s4122 + $0x48] sm:$0xf]
      %v4142 = vld [vmem:[%s4122 + $0x4c] sm:$0xf]
      %v4143 = vld [vmem:[%s4122 + $0x50] sm:$0xf]
      %v4144 = vld [vmem:[%s4122 + $0x54] sm:$0xf]
      %v4145 = vld [vmem:[%s4122 + $0x58] sm:$0xf]
      %v4146 = vld [vmem:[%s4122 + $0x5c] sm:$0xf]
      %v4147 = vld [vmem:[%s4122 + $0x60] sm:$0xf]
      %v4148 = vld [vmem:[%s4122 + $0x64] sm:$0xf]
      %v4149 = vld [vmem:[%s4122 + $0x68] sm:$0xf]
      %v4150 = vld [vmem:[%s4122 + $0x6c] sm:$0xf]
      %v4151 = vld [vmem:[%s4122 + $0x70] sm:$0xf]
      %v4152 = vld [vmem:[%s4122 + $0x74] sm:$0xf]
      %v4153 = vld [vmem:[%s4122 + $0x78] sm:$0xf]
      %v4154 = vld [vmem:[%s4122 + $0x7c] sm:$0xf]
      %v4155 = vld [vmem:[%s4122 + $0x80] sm:$0xf]
      %v4156 = vld [vmem:[%s4122 + $0x84] sm:$0xf]
      %v4157 = vld [vmem:[%s4122 + $0x88] sm:$0xf]
      %v4158 = vld [vmem:[%s4122 + $0x8c] sm:$0xf]
      %v4159 = vld [vmem:[%s4122 + $0x90] sm:$0xf]
      %v4160 = vld [vmem:[%s4122 + $0x94] sm:$0xf]
      %v4161 = vld [vmem:[%s4122 + $0x98] sm:$0xf]
      %v4162 = vld [vmem:[%s4122 + $0x9c] sm:$0xf]
      %v4163 = vld [vmem:[%s4122 + $0xa0] sm:$0xf]
      %v4164 = vld [vmem:[%s4122 + $0xa4] sm:$0xf]
      %v4165 = vld [vmem:[%s4122 + $0xa8] sm:$0xf]
      %v4166 = vld [vmem:[%s4122 + $0xac] sm:$0xf]
      %v4167 = vld [vmem:[%s4122 + $0xb0] sm:$0xf]
      %v4168 = vld [vmem:[%s4122 + $0xb4] sm:$0xf]
      %v4169 = vld [vmem:[%s4122 + $0xb8] sm:$0xf]
      %v4170 = vld [vmem:[%s4122 + $0xbc] sm:$0xf]
      %v4171 = vld [vmem:[%s4122 + $0xc0] sm:$0xf]
      %v4172 = vld [vmem:[%s4122 + $0xc4] sm:$0xf]
      %v4173 = vld [vmem:[%s4122 + $0xc8] sm:$0xf]
      %v4174 = vld [vmem:[%s4122 + $0xcc] sm:$0xf]
      %v4175 = vld [vmem:[%s4122 + $0xd0] sm:$0xf]
      %v4176 = vld [vmem:[%s4122 + $0xd4] sm:$0xf]
      %v4177 = vld [vmem:[%s4122 + $0xd8] sm:$0xf]
      %v4178 = vld [vmem:[%s4122 + $0xdc] sm:$0xf]
      %v4179 = vld [vmem:[%s4122 + $0xe0] sm:$0xf]
      %v4180 = vld [vmem:[%s4122 + $0xe4] sm:$0xf]
      %v4181 = vld [vmem:[%s4122 + $0xe8] sm:$0xf]
      %v4182 = vld [vmem:[%s4122 + $0xec] sm:$0xf]
      %v4183 = vld [vmem:[%s4122 + $0xf0] sm:$0xf]
      %v4184 = vld [vmem:[%s4122 + $0xf4] sm:$0xf]
      %v4185 = vld [vmem:[%s4122 + $0xf8] sm:$0xf]
      %v4186 = vld [vmem:[%s4122 + $0xfc] sm:$0xf]
      %s4187 = scalar_lea.vmem %s14, 1
      %v4188 = vld [vmem:[%s4187] sm:$0x1]
      %v4189 = vpack.c.bf16 %v4118, %v4114
      %v4190 = vpack.c.bf16 %v4119, %v4115
      %v4191 = vpack.c.bf16 %v4120, %v4116
      %v4192 = vpack.c.bf16 %v4121, %v4117
      %v4194 = vperm.slane %v4188, 0
      %v4260 = vunpack.c.l.b16 %v4123
      %v4261 = vunpack.c.l.b16 %v4124
      %v4262 = vunpack.c.l.b16 %v4125
      %v4263 = vunpack.c.l.b16 %v4126
      %v4264 = vunpack.c.l.b16 %v4127
      %v4265 = vunpack.c.l.b16 %v4128
      %v4266 = vunpack.c.l.b16 %v4129
      %v4267 = vunpack.c.l.b16 %v4130
      %v4268 = vunpack.c.l.b16 %v4131
      %v4269 = vunpack.c.l.b16 %v4132
      %v4270 = vunpack.c.l.b16 %v4133
      %v4271 = vunpack.c.l.b16 %v4134
      %v4272 = vunpack.c.l.b16 %v4135
      %v4273 = vunpack.c.l.b16 %v4136
      %v4274 = vunpack.c.l.b16 %v4137
      %v4275 = vunpack.c.l.b16 %v4138
      %v4276 = vunpack.c.l.b16 %v4139
      %v4277 = vunpack.c.l.b16 %v4140
      %v4278 = vunpack.c.l.b16 %v4141
      %v4279 = vunpack.c.l.b16 %v4142
      %v4280 = vunpack.c.l.b16 %v4143
      %v4281 = vunpack.c.l.b16 %v4144
      %v4282 = vunpack.c.l.b16 %v4145
      %v4283 = vunpack.c.l.b16 %v4146
      %v4284 = vunpack.c.l.b16 %v4147
      %v4285 = vunpack.c.l.b16 %v4148
      %v4286 = vunpack.c.l.b16 %v4149
      %v4287 = vunpack.c.l.b16 %v4150
      %v4288 = vunpack.c.l.b16 %v4151
      %v4289 = vunpack.c.l.b16 %v4152
      %v4290 = vunpack.c.l.b16 %v4153
      %v4291 = vunpack.c.l.b16 %v4154
      %v4292 = vunpack.c.l.b16 %v4155
      %v4293 = vunpack.c.l.b16 %v4156
      %v4294 = vunpack.c.l.b16 %v4157
      %v4295 = vunpack.c.l.b16 %v4158
      %v4296 = vunpack.c.l.b16 %v4159
      %v4297 = vunpack.c.l.b16 %v4160
      %v4298 = vunpack.c.l.b16 %v4161
      %v4299 = vunpack.c.l.b16 %v4162
      %v4300 = vunpack.c.l.b16 %v4163
      %v4301 = vunpack.c.l.b16 %v4164
      %v4302 = vunpack.c.l.b16 %v4165
      %v4303 = vunpack.c.l.b16 %v4166
      %v4304 = vunpack.c.l.b16 %v4167
      %v4305 = vunpack.c.l.b16 %v4168
      %v4306 = vunpack.c.l.b16 %v4169
      %v4307 = vunpack.c.l.b16 %v4170
      %v4308 = vunpack.c.l.b16 %v4171
      %v4309 = vunpack.c.l.b16 %v4172
      %v4310 = vunpack.c.l.b16 %v4173
      %v4311 = vunpack.c.l.b16 %v4174
      %v4312 = vunpack.c.l.b16 %v4175
      %v4313 = vunpack.c.l.b16 %v4176
      %v4314 = vunpack.c.l.b16 %v4177
      %v4315 = vunpack.c.l.b16 %v4178
      %v4316 = vunpack.c.l.b16 %v4179
      %v4317 = vunpack.c.l.b16 %v4180
      %v4318 = vunpack.c.l.b16 %v4181
      %v4319 = vunpack.c.l.b16 %v4182
      %v4320 = vunpack.c.l.b16 %v4183
      %v4321 = vunpack.c.l.b16 %v4184
      %v4322 = vunpack.c.l.b16 %v4185
      %v4323 = vunpack.c.l.b16 %v4186
      %v4324 = vpack.c.b16 %v4261, %v4260
      %v4325 = vpack.c.b16 %v4263, %v4262
      %v4326 = vpack.c.b16 %v4265, %v4264
      %v4327 = vpack.c.b16 %v4267, %v4266
      %v4328 = vpack.c.b16 %v4269, %v4268
      %v4329 = vpack.c.b16 %v4271, %v4270
      %v4330 = vpack.c.b16 %v4273, %v4272
      %v4331 = vpack.c.b16 %v4275, %v4274
      %v4332 = vpack.c.b16 %v4277, %v4276
      %v4333 = vpack.c.b16 %v4279, %v4278
      %v4334 = vpack.c.b16 %v4281, %v4280
      %v4335 = vpack.c.b16 %v4283, %v4282
      %v4336 = vpack.c.b16 %v4285, %v4284
      %v4337 = vpack.c.b16 %v4287, %v4286
      %v4338 = vpack.c.b16 %v4289, %v4288
      %v4339 = vpack.c.b16 %v4291, %v4290
      %v4340 = vpack.c.b16 %v4293, %v4292
      %v4341 = vpack.c.b16 %v4295, %v4294
      %v4342 = vpack.c.b16 %v4297, %v4296
      %v4343 = vpack.c.b16 %v4299, %v4298
      %v4344 = vpack.c.b16 %v4301, %v4300
      %v4345 = vpack.c.b16 %v4303, %v4302
      %v4346 = vpack.c.b16 %v4305, %v4304
      %v4347 = vpack.c.b16 %v4307, %v4306
      %v4348 = vpack.c.b16 %v4309, %v4308
      %v4349 = vpack.c.b16 %v4311, %v4310
      %v4350 = vpack.c.b16 %v4313, %v4312
      %v4351 = vpack.c.b16 %v4315, %v4314
      %v4352 = vpack.c.b16 %v4317, %v4316
      %v4353 = vpack.c.b16 %v4319, %v4318
      %v4354 = vpack.c.b16 %v4321, %v4320
      %v4355 = vpack.c.b16 %v4323, %v4322
      %4388 = vmatpush.bf16.msra.mxu0 %v4331
      %4389 = vmatpush.bf16.msra.mxu0 %v4330
      %4390 = vmatpush.bf16.msra.mxu0 %v4329
      %4391 = vmatpush.bf16.msra.mxu0 %v4328
      %4392 = vmatpush.bf16.msra.mxu0 %v4327
      %4393 = vmatpush.bf16.msra.mxu0 %v4326
      %4394 = vmatpush.bf16.msra.mxu0 %v4325
      %4395 = vmatpush.bf16.msra.mxu0 %v4324
      %4396 = vmatmul.bf16.gmra.mxu0 %v4189
      %v4397 = vpop.f32.mrf.mxu0
      %v4398 = vadd.f32 %v4194, %v4397
      %v4399 = vpop.f32.mrf.mxu0
      %v4400 = vadd.f32 %v4194, %v4399
      %4401 = vdwg.mxu0
      %4402 = vmatpush.bf16.msra.mxu0 %v4339
      %4403 = vmatpush.bf16.msra.mxu0 %v4338
      %4404 = vmatpush.bf16.msra.mxu0 %v4337
      %4405 = vmatpush.bf16.msra.mxu0 %v4336
      %4406 = vmatpush.bf16.msra.mxu0 %v4335
      %4407 = vmatpush.bf16.msra.mxu0 %v4334
      %4408 = vmatpush.bf16.msra.mxu0 %v4333
      %4409 = vmatpush.bf16.msra.mxu0 %v4332
      %4410 = vmatmul.bf16.gmra.mxu0 %v4190
      %v4411 = vpop.f32.mrf.mxu0
      %v4412 = vadd.f32 %v4398, %v4411
      %v4413 = vpop.f32.mrf.mxu0
      %v4414 = vadd.f32 %v4400, %v4413
      %4415 = vdwg.mxu0
      %4416 = vmatpush.bf16.msra.mxu0 %v4347
      %4417 = vmatpush.bf16.msra.mxu0 %v4346
      %4418 = vmatpush.bf16.msra.mxu0 %v4345
      %4419 = vmatpush.bf16.msra.mxu0 %v4344
      %4420 = vmatpush.bf16.msra.mxu0 %v4343
      %4421 = vmatpush.bf16.msra.mxu0 %v4342
      %4422 = vmatpush.bf16.msra.mxu0 %v4341
      %4423 = vmatpush.bf16.msra.mxu0 %v4340
      %4424 = vmatmul.bf16.gmra.mxu0 %v4191
      %v4425 = vpop.f32.mrf.mxu0
      %v4426 = vadd.f32 %v4412, %v4425
      %v4427 = vpop.f32.mrf.mxu0
      %v4428 = vadd.f32 %v4414, %v4427
      %4429 = vdwg.mxu0
      %4430 = vmatpush.bf16.msra.mxu0 %v4355
      %4431 = vmatpush.bf16.msra.mxu0 %v4354
      %4432 = vmatpush.bf16.msra.mxu0 %v4353
      %4433 = vmatpush.bf16.msra.mxu0 %v4352
      %4434 = vmatpush.bf16.msra.mxu0 %v4351
      %4435 = vmatpush.bf16.msra.mxu0 %v4350
      %4436 = vmatpush.bf16.msra.mxu0 %v4349
      %4437 = vmatpush.bf16.msra.mxu0 %v4348
      %4438 = vmatmul.bf16.gmra.mxu0 %v4192
      %v4439 = vpop.f32.mrf.mxu0
      %v4440 = vadd.f32 %v4426, %v4439
      %v4441 = vpop.f32.mrf.mxu0
      %v4442 = vadd.f32 %v4428, %v4441
      %4443 = vdwg.mxu0
      %v4444 = vadd.f32 %v3733, %v4440
      %v4445 = vadd.f32 %v3734, %v4442
      %v4446 = vld [vmem:[%s15] sm:$0x1]
      %v4447 = vld [vmem:[%s16] sm:$0x1]
      %4448 = vadd.xlane.f32.xlu0 %v4444
      %v4449 = vpop.xlane.xlu0 %4448
      %4450 = vadd.xlane.f32.xlu0 %v4445
      %v4451 = vpop.xlane.xlu0 %4450
      %v4452 = vmul.f32 %v4449, %v1211
      %v4453 = vmul.f32 %v4451, %v1211
      %v4454 = vsub.f32 %v4444, %v4452
      %v4455 = vsub.f32 %v4445, %v4453
      %v4456 = vmul.f32 %v4454, %v4454
      %v4457 = vmul.f32 %v4455, %v4455
      %4458 = vadd.xlane.f32.xlu0 %v4456
      %v4459 = vpop.xlane.xlu0 %4458
      %4460 = vadd.xlane.f32.xlu0 %v4457
      %v4461 = vpop.xlane.xlu0 %4460
      %v4462 = vmul.f32 %v4459, %v1211
      %v4463 = vmul.f32 %v4461, %v1211
      %v4464 = vadd.f32 %v4462, 1e-06
      %v4465 = vadd.f32 %v4463, 1e-06
      %v4466 = vrsqrt.pop %v4464
      %v4467 = vmul.f32 %v4466, %v4464
      %v4468 = vmul.f32 %v4467, %v4466
      %v4469 = vmul.f32 0.5, %v4468
      %v4470 = vsub.f32 1.5, %v4469
      %v4471 = vmul.f32 %v4466, %v4470
      %vm4472 = vweird.f32 %v4464
      %vm4473 = vweird.f32 %v4466
      %vm4474 = vmor %vm4472, %vm4473
      %v4475 = vsel %vm4474, %v4466, %v4471
      %v4476 = vrsqrt.pop %v4465
      %v4477 = vmul.f32 %v4476, %v4465
      %v4478 = vmul.f32 %v4477, %v4476
      %v4479 = vmul.f32 0.5, %v4478
      %v4480 = vsub.f32 1.5, %v4479
      %v4481 = vmul.f32 %v4476, %v4480
      %vm4482 = vweird.f32 %v4465
      %vm4483 = vweird.f32 %v4476
      %vm4484 = vmor %vm4482, %vm4483
      %v4485 = vsel %vm4484, %v4476, %v4481
      %v4486 = vmul.f32 %v4454, %v4475
      %v4487 = vmul.f32 %v4455, %v4485
      %v4489 = vperm.slane %v4446, 0
      %v4491 = vmul.f32 %v4486, %v4489
      %v4492 = vmul.f32 %v4487, %v4489
      %v4494 = vperm.slane %v4447, 0
      %v4496 = vadd.f32 %v4491, %v4494
      %v4497 = vadd.f32 %v4492, %v4494
      %4498 = vst [vmem:[%s695] sm:$0xff] %v4496
      %4499 = vst [vmem:[%s695 + $0x8] sm:$0xff] %v4497
      %v4500 = vmul.f32 %v4496, %v709
      %v4501 = vmul.f32 %v4497, %v709
      %v4502 = vrot.slane %v4500, 4
      %v4503 = vadd.f32 %v4500, %v4502
      %v4504 = vrot.slane %v4503, 2
      %v4505 = vadd.f32 %v4503, %v4504
      %v4506 = vrot.slane %v4505, 1
      %v4507 = vadd.f32 %v4505, %v4506
      %v4508 = vrot.slane %v4501, 4
      %v4509 = vadd.f32 %v4501, %v4508
      %v4510 = vrot.slane %v4509, 2
      %v4511 = vadd.f32 %v4509, %v4510
      %v4512 = vrot.slane %v4511, 1
      %v4513 = vadd.f32 %v4511, %v4512
      %v4514 = vmul.f32 %v4507, 0.2
      %v4515 = vmul.f32 %v4513, 0.2
      %v4516 = vld [vmem:[%s17] sm:$0xf]
      %v4517 = vld [vmem:[%s17 + $0x4] sm:$0xf]
      %v4518 = vld [vmem:[%s17 + $0x8] sm:$0xf]
      %v4519 = vld [vmem:[%s17 + $0xc] sm:$0xf]
      %v4520 = vld [vmem:[%s17 + $0x10] sm:$0xf]
      %v4521 = vld [vmem:[%s17 + $0x14] sm:$0xf]
      %v4522 = vld [vmem:[%s17 + $0x18] sm:$0xf]
      %v4523 = vld [vmem:[%s17 + $0x1c] sm:$0xf]
      %v4524 = vld [vmem:[%s17 + $0x20] sm:$0xf]
      %v4525 = vld [vmem:[%s17 + $0x24] sm:$0xf]
      %v4526 = vld [vmem:[%s17 + $0x28] sm:$0xf]
      %v4527 = vld [vmem:[%s17 + $0x2c] sm:$0xf]
      %v4528 = vld [vmem:[%s17 + $0x30] sm:$0xf]
      %v4529 = vld [vmem:[%s17 + $0x34] sm:$0xf]
      %v4530 = vld [vmem:[%s17 + $0x38] sm:$0xf]
      %v4531 = vld [vmem:[%s17 + $0x3c] sm:$0xf]
      %v4532 = vld [vmem:[%s18] sm:$0x1]
      %v4533 = vpack.c.bf16 %v4514, %v4514
      %v4534 = vpack.c.bf16 %v4515, %v4515
      %v4536 = vperm.slane %v4532, 0
      %v4540 = vunpack.c.l.b16 %v4533
      %v4541 = vunpack.c.l.b16 %v4534
      %vm4542 = vcmask 1041409
      %v4543 = vsel %vm4542, %v4541, %v4540
      %v4544 = vpack.c.b16 %v4543, %v4543
      %v4562 = vunpack.c.l.b16 %v4516
      %v4563 = vunpack.c.l.b16 %v4517
      %v4564 = vunpack.c.l.b16 %v4518
      %v4565 = vunpack.c.l.b16 %v4519
      %v4566 = vunpack.c.l.b16 %v4520
      %v4567 = vunpack.c.l.b16 %v4521
      %v4568 = vunpack.c.l.b16 %v4522
      %v4569 = vunpack.c.l.b16 %v4523
      %v4570 = vunpack.c.l.b16 %v4524
      %v4571 = vunpack.c.l.b16 %v4525
      %v4572 = vunpack.c.l.b16 %v4526
      %v4573 = vunpack.c.l.b16 %v4527
      %v4574 = vunpack.c.l.b16 %v4528
      %v4575 = vunpack.c.l.b16 %v4529
      %v4576 = vunpack.c.l.b16 %v4530
      %v4577 = vunpack.c.l.b16 %v4531
      %v4578 = vpack.c.b16 %v4563, %v4562
      %v4579 = vpack.c.b16 %v4565, %v4564
      %v4580 = vpack.c.b16 %v4567, %v4566
      %v4581 = vpack.c.b16 %v4569, %v4568
      %v4582 = vpack.c.b16 %v4571, %v4570
      %v4583 = vpack.c.b16 %v4573, %v4572
      %v4584 = vpack.c.b16 %v4575, %v4574
      %v4585 = vpack.c.b16 %v4577, %v4576
      %4594 = vmatpush.bf16.msra.mxu0 %v4585
      %4595 = vmatpush.bf16.msra.mxu0 %v4584
      %4596 = vmatpush.bf16.msra.mxu0 %v4583
      %4597 = vmatpush.bf16.msra.mxu0 %v4582
      %4598 = vmatpush.bf16.msra.mxu0 %v4581
      %4599 = vmatpush.bf16.msra.mxu0 %v4580
      %4600 = vmatpush.bf16.msra.mxu0 %v4579
      %4601 = vmatpush.bf16.msra.mxu0 %v4578
      %4602 = vmatmul.bf16.gmra.mxu0 %v4544
      %v4603 = vpop.f32.mrf.mxu0
      %v4604 = vadd.f32 %v4536, %v4603
      %v4605 = vpop.f32.mrf.mxu0
      %4606 = vdwg.mxu0
      %v4607 = vmax.f32 %v4604, 0.0
      %v4608 = vld [vmem:[%s19] sm:$0xf]
      %v4609 = vld [vmem:[%s19 + $0x4] sm:$0xf]
      %v4610 = vld [vmem:[%s19 + $0x8] sm:$0xf]
      %v4611 = vld [vmem:[%s19 + $0xc] sm:$0xf]
      %v4612 = vld [vmem:[%s19 + $0x10] sm:$0xf]
      %v4613 = vld [vmem:[%s19 + $0x14] sm:$0xf]
      %v4614 = vld [vmem:[%s19 + $0x18] sm:$0xf]
      %v4615 = vld [vmem:[%s19 + $0x1c] sm:$0xf]
      %v4616 = vld [vmem:[%s19 + $0x20] sm:$0xf]
      %v4617 = vld [vmem:[%s19 + $0x24] sm:$0xf]
      %v4618 = vld [vmem:[%s19 + $0x28] sm:$0xf]
      %v4619 = vld [vmem:[%s19 + $0x2c] sm:$0xf]
      %v4620 = vld [vmem:[%s19 + $0x30] sm:$0xf]
      %v4621 = vld [vmem:[%s19 + $0x34] sm:$0xf]
      %v4622 = vld [vmem:[%s19 + $0x38] sm:$0xf]
      %v4623 = vld [vmem:[%s19 + $0x3c] sm:$0xf]
      %v4624 = vld [vmem:[%s20] sm:$0x1]
      %v4625 = vpack.c.bf16 %v4607, %v4607
      %v4627 = vperm.slane %v4624, 0
      %v4645 = vunpack.c.l.b16 %v4608
      %v4646 = vunpack.c.l.b16 %v4609
      %v4647 = vunpack.c.l.b16 %v4610
      %v4648 = vunpack.c.l.b16 %v4611
      %v4649 = vunpack.c.l.b16 %v4612
      %v4650 = vunpack.c.l.b16 %v4613
      %v4651 = vunpack.c.l.b16 %v4614
      %v4652 = vunpack.c.l.b16 %v4615
      %v4653 = vunpack.c.l.b16 %v4616
      %v4654 = vunpack.c.l.b16 %v4617
      %v4655 = vunpack.c.l.b16 %v4618
      %v4656 = vunpack.c.l.b16 %v4619
      %v4657 = vunpack.c.l.b16 %v4620
      %v4658 = vunpack.c.l.b16 %v4621
      %v4659 = vunpack.c.l.b16 %v4622
      %v4660 = vunpack.c.l.b16 %v4623
      %v4661 = vpack.c.b16 %v4646, %v4645
      %v4662 = vpack.c.b16 %v4648, %v4647
      %v4663 = vpack.c.b16 %v4650, %v4649
      %v4664 = vpack.c.b16 %v4652, %v4651
      %v4665 = vpack.c.b16 %v4654, %v4653
      %v4666 = vpack.c.b16 %v4656, %v4655
      %v4667 = vpack.c.b16 %v4658, %v4657
      %v4668 = vpack.c.b16 %v4660, %v4659
      %4677 = vmatpush.bf16.msra.mxu0 %v4668
      %4678 = vmatpush.bf16.msra.mxu0 %v4667
      %4679 = vmatpush.bf16.msra.mxu0 %v4666
      %4680 = vmatpush.bf16.msra.mxu0 %v4665
      %4681 = vmatpush.bf16.msra.mxu0 %v4664
      %4682 = vmatpush.bf16.msra.mxu0 %v4663
      %4683 = vmatpush.bf16.msra.mxu0 %v4662
      %4684 = vmatpush.bf16.msra.mxu0 %v4661
      %4685 = vmatmul.bf16.gmra.mxu0 %v4625
      %v4686 = vpop.f32.mrf.mxu0
      %v4687 = vadd.f32 %v4627, %v4686
      %v4688 = vpop.f32.mrf.mxu0
      %4689 = vdwg.mxu0
      %v4691 = vrot.slane %v4687, 1
      %4693 = vst [vmem:[%s700] sm:$0x1] %v4687
      %4694 = vst [vmem:[%s700 + $0x1] sm:$0x1] %v4691
      %s4695 = smul.u32 2, %s34
      %p4696 = scmp.lt.s32.totalorder %s4695, 3
      %s4697 = scalar_select %p4696, %s4695, 3
      %s4698 = smul.addr %s4697, 8
      %s4699 = scalar_lea.vmem %s21, %s4698
      %s4700 = smul.u32 2, %s34
      %p4701 = scmp.lt.s32.totalorder %s4700, 3
      %s4702 = scalar_select %p4701, %s4700, 3
      %s4703 = scalar_lea.vmem %s22, %s4702
      // Predicated region
      $region105: #{swin_model_forward.1} parent=103 // pred_check
        %p4704 = pneg %p498
      $region106: #{swin_model_forward.1} parent=103 // pred_check_branch
        %4706 = sbr.rel (%p4704) target = $region108
      $region107: #{swin_model_forward.1} parent=103 // pred_region
        %s4707 = smul.u32 2, %s34
      $region108: #{swin_model_forward.1} parent=103 // pred_fallthru
        _
      // Predicated region
      $region109: #{swin_model_forward.1} parent=103 // pred_check
        %p4708 = pneg %p524
      $region110: #{swin_model_forward.1} parent=103 // pred_check_branch
        %4710 = sbr.rel (%p4708) target = $region112
      $region111: #{swin_model_forward.1} parent=103 // pred_region
        %s4711 = smul.u32 2, %s34
      $region112: #{swin_model_forward.1} parent=103 // pred_fallthru
        _
    $region104: #{swin_model_forward.1} parent=5 // pred_fallthru
      _
    %p4712 = scmp.le.s32.totalorder 2, %s29
    // Predicated region
    $region113: #{swin_model_forward.1} parent=5 // pred_check
      %p4713 = pneg %p4712
    $region114: #{swin_model_forward.1} parent=5 // pred_check_branch
      %4715 = sbr.rel (%p4713) target = $region116
    $region115: #{swin_model_forward.1} parent=5 // pred_region
      %s4716 = ssub.s32 %s29, 2
      // Predicated region
      $region117: #{swin_model_forward.1} parent=115 // pred_check
        %p4717 = pneg %p504
      $region118: #{swin_model_forward.1} parent=115 // pred_check_branch
        %4719 = sbr.rel (%p4717) target = $region120
      $region119: #{swin_model_forward.1} parent=115 // pred_region
        %s4720 = smul.u32 2, %s35
        %p4721 = scmp.lt.s32.totalorder %s4720, 3
        %s4722 = scalar_select %p4721, %s4720, 3
        %s4723 = smul.addr %s4722, 8
        %s4724 = scalar_lea.vmem %s21, %s4723
      $region120: #{swin_model_forward.1} parent=115 // pred_fallthru
        _
      // Predicated region
      $region121: #{swin_model_forward.1} parent=115 // pred_check
        %p4725 = pneg %p530
      $region122: #{swin_model_forward.1} parent=115 // pred_check_branch
        %4727 = sbr.rel (%p4725) target = $region124
      $region123: #{swin_model_forward.1} parent=115 // pred_region
        %s4728 = smul.u32 2, %s35
        %p4729 = scmp.lt.s32.totalorder %s4728, 3
        %s4730 = scalar_select %p4729, %s4728, 3
        %s4731 = scalar_lea.vmem %s22, %s4730
      $region124: #{swin_model_forward.1} parent=115 // pred_fallthru
        _
    $region116: #{swin_model_forward.1} parent=5 // pred_fallthru
      _
  $region6: #{swin_model_forward.1} parent=0 // loop_footer
    %s33 = sadd.s32 1, %s29
  $region7: #{swin_model_forward.1} parent=0 // loop_footer_branch
    %28 = sbr.rel target = $region3
  $region8: #{swin_model_forward.1} parent=0 // loop_exit
    _

</llo_original>
